<compile_context>
chip_gen: v7x
topology: tpu7x:2x2x1
jax: 0.10.0
libtpu: 0.0.40
codegen_flags: <defaults>
</compile_context>

<pallas_src>
import numpy as np

import jax
import jax.numpy as jnp
from jax import lax
from jax.experimental import pallas as pl
from jax.experimental.pallas import tpu as pltpu

# Accurate f32 matmuls/convs in the pure-JAX reference (does not affect Pallas).
jax.config.update("jax_default_matmul_precision", "highest")

_VMEM = pl.BlockSpec(memory_space=pltpu.MemorySpace.VMEM)
_EPS = 1e-5


# ----------------------------------------------------------------------------
# Fused kernel (built once per model config; `off` maps param name -> slab slice)
# ----------------------------------------------------------------------------
def _make_kernel(off):
    def rd(ref, name):
        r0, r, c = off[name]                       # static python ints
        return ref[r0:r0 + r, 0:c]                 # zero-cost static slice

    def kernel(orig_ref, img_ref, mimg_ref, slab_ref, out_ref):
        def mm(a, w):
            return jnp.dot(a, w, preferred_element_type=jnp.float32)

        def ln_hat(y):                             # LayerNorm, affine folded downstream
            mu = jnp.mean(y, axis=-1, keepdims=True)
            var = jnp.mean((y - mu) ** 2, axis=-1, keepdims=True)
            return (y - mu) * lax.rsqrt(var + _EPS)

        # --- att1: seq-len==1 => softmax==1 => context==V.  V + output
        #     projections folded into one matmul; LN affine folded into linear_1.
        x = orig_ref[...]                                                   # [B, C]
        y1 = ln_hat(x + mm(x, rd(slab_ref, "W1")) + rd(slab_ref, "B1"))
        out1 = jnp.maximum(mm(y1, rd(slab_ref, "L1W")) + rd(slab_ref, "L1B"), 0.0)   # [B, 8]

        # --- image branch: 4 convs + linear_2 pre-folded into ONE matmul -----
        out2 = jnp.maximum(mm(img_ref[...], mimg_ref[...]) + rd(slab_ref, "BIMG"), 0.0)  # [B, 4]

        # --- att2: folded projection split into top/bottom input blocks so the
        #     two matmuls overlap with the concat (concat kept only for residual).
        o2 = (mm(out1, rd(slab_ref, "W2T")) + mm(out2, rd(slab_ref, "W2B"))
              + rd(slab_ref, "B2"))                                         # [B, 12]
        cat = jnp.concatenate([out1, out2], axis=-1)                        # [B, 12]
        out3 = ln_hat(cat + o2) * rd(slab_ref, "G2") + rd(slab_ref, "BE2")

        # --- output head: BatchNorm1d (training-mode batch stats, biased var);
        #     BN affine folded into the first output Linear.
        mu = jnp.mean(out3, axis=0, keepdims=True)
        var = jnp.mean((out3 - mu) ** 2, axis=0, keepdims=True)
        z = (out3 - mu) * lax.rsqrt(var + _EPS)
        h = jnp.maximum(mm(z, rd(slab_ref, "O1W")) + rd(slab_ref, "O1B"), 0.0)      # [B, 8]
        h = jnp.maximum(mm(h, rd(slab_ref, "O2W")) + rd(slab_ref, "O2B"), 0.0)      # [B, 4]
        # Final Linear(4, 1): VPU broadcast-mul + lane reduce (skip padded MXU pass)
        out_ref[...] = (jnp.sum(h * rd(slab_ref, "O3W"), axis=-1, keepdims=True)
                        + rd(slab_ref, "O3B"))

    return kernel


def make_mcvn_forward(off):
    kernel = _make_kernel(off)

    @jax.jit
    def fwd(images, original, mimg, slab):
        B = images.shape[0]
        C = original.shape[1]
        K = images.shape[1] * images.shape[2] * images.shape[3]
        K_pad = mimg.shape[0]
        img = images.reshape(B, K)                 # NCHW flatten (layout no-op)
        if K_pad > K:                              # K padded to a 128 multiple
            img = jnp.pad(img, ((0, 0), (0, K_pad - K)))

        macs = K_pad * 4 + C * C + C * 8 + 8 * 12 + 4 * 12 + 12 * 8 + 8 * 4 + 4
        cost = pl.CostEstimate(
            flops=int(2 * B * macs + 100 * B),
            transcendentals=int(2 * B + 12),
            bytes_accessed=int(4 * (B * C + B * K_pad + mimg.size + slab.size + B)))

        return pl.pallas_call(
            kernel,
            out_shape=jax.ShapeDtypeStruct((B, 1), jnp.float32),
            in_specs=[_VMEM] * 4,
            out_specs=_VMEM,
            cost_estimate=cost,
        )(original, img, mimg, slab)

    return fwd


# ----------------------------------------------------------------------------
# One-time parameter preprocessing (pure numpy, outside the forward jit):
# dense-conv construction, algebraic folding, and slab packing.
# ----------------------------------------------------------------------------
def _dense_conv_matrix(w, b, H, W, stride):
    """Dense [Cin*H*W, Cout*OH*OW] equivalent of a VALID Conv2d on NCHW-flat input."""
    Cout, Cin, KH, KW = w.shape
    OH = (H - KH) // stride + 1
    OW = (W - KW) // stride + 1
    shape = (Cout, OH, OW, Cin, KH, KW)
    co, oh, ow, ci, kh, kw = np.ix_(*(np.arange(s) for s in shape))
    out_idx = np.broadcast_to((co * OH + oh) * OW + ow, shape).ravel()
    in_idx = np.broadcast_to((ci * H + (oh * stride + kh)) * W + (ow * stride + kw),
                             shape).ravel()
    vals = np.broadcast_to(w[:, None, None, :, :, :], shape).ravel()
    M = np.zeros((Cin * H * W, Cout * OH * OW), np.float32)
    M[in_idx, out_idx] = vals
    bias = np.repeat(b, OH * OW).reshape(1, -1).astype(np.float32)
    return M, bias, OH, OW


def _pack_slab(entries):
    """Pack small 2-D params into one [rows, width] f32 slab, 8-row aligned."""
    width = max(a.shape[1] for _, a in entries)
    off, cursor = {}, 0
    for name, a in entries:
        r, c = a.shape
        off[name] = (cursor, r, c)
        cursor += -(-r // 8) * 8                   # next block starts 8-aligned
    slab = np.zeros((cursor, width), np.float32)
    for name, a in entries:
        r0, r, c = off[name]
        slab[r0:r0 + r, :c] = a
    return jnp.asarray(slab), off


def preprocess_params(params, image_shape):
    _, _, H, W = image_shape
    A = lambda t: np.asarray(t, np.float32)

    # --- att1: fold V & output projections; LN affine folds into linear_1 ----
    a1 = params["att1"]
    Wv1, bv1, Wa1, ba1 = A(a1["wv"]), A(a1["bv"]), A(a1["wa"]), A(a1["ba"])
    g1, be1 = A(a1["gamma"]), A(a1["beta"])
    W1 = Wv1.T @ Wa1.T
    B1 = bv1 @ Wa1.T + ba1
    l1w, l1b = A(params["lin1"][0]), A(params["lin1"][1])
    L1W = g1[:, None] * l1w.T
    L1B = be1 @ l1w.T + l1b

    # --- conv chain (no inter-conv nonlinearity) + linear_2 pre-ReLU matmul ---
    M, bias, h, w = None, None, H, W
    for name, stride in (("c1", 3), ("c2", 1), ("c3", 1), ("c4", 1)):
        cw, cb = A(params[name][0]), A(params[name][1])
        Mi, bi, h, w = _dense_conv_matrix(cw, cb, h, w, stride)
        if M is None:
            M, bias = Mi, bi
        else:
            M, bias = M @ Mi, bias @ Mi + bi
    l2w, l2b = A(params["lin2"][0]), A(params["lin2"][1])
    MIMG = M @ l2w.T                               # [Cin*H*W, 4]
    BIMG = bias @ l2w.T + l2b                      # [1, 4]
    K = MIMG.shape[0]
    K_pad = -(-K // 128) * 128                     # 504 -> 512 (v5e-friendly K)
    MIMG_pad = np.zeros((K_pad, MIMG.shape[1]), np.float32)
    MIMG_pad[:K] = MIMG

    # --- att2: fold V & output projections; split by input rows (out1|out2) ---
    a2 = params["att2"]
    Wv2, bv2, Wa2, ba2 = A(a2["wv"]), A(a2["bv"]), A(a2["wa"]), A(a2["ba"])
    W2 = Wv2.T @ Wa2.T
    B2 = bv2 @ Wa2.T + ba2

    # --- BatchNorm affine folds into the first output Linear ------------------
    bn_g, bn_b = A(params["bn_gamma"]), A(params["bn_beta"])
    o1w, o1b = A(params["out1"][0]), A(params["out1"][1])
    O1W = bn_g[:, None] * o1w.T
    O1B = bn_b @ o1w.T + o1b
    o2w, o2b = A(params["out2"][0]), A(params["out2"][1])
    o3w, o3b = A(params["out3"][0]), A(params["out3"][1])

    entries = [
        ("W1", W1), ("B1", B1.reshape(1, -1)),
        ("L1W", L1W), ("L1B", L1B.reshape(1, -1)),
        ("BIMG", BIMG.reshape(1, -1)),
        ("W2T", W2[:8, :]), ("W2B", W2[8:, :]), ("B2", B2.reshape(1, -1)),
        ("G2", A(a2["gamma"]).reshape(1, -1)), ("BE2", A(a2["beta"]).reshape(1, -1)),
        ("O1W", O1W), ("O1B", O1B.reshape(1, -1)),
        ("O2W", o2w.T), ("O2B", o2b.reshape(1, -1)),
        ("O3W", o3w.reshape(1, -1)), ("O3B", o3b.reshape(1, 1)),
    ]
    slab, off = _pack_slab(entries)
    return dict(mimg=jnp.asarray(MIMG_pad), slab=slab, off=off)


# ----------------------------------------------------------------------------
# Deterministic parameter initialization (PyTorch-style uniform bounds).
# ----------------------------------------------------------------------------
def init_linear(key, out_f, in_f):
    k1, k2 = jax.random.split(key)
    bound = 1.0 / (in_f ** 0.5)
    w = jax.random.uniform(k1, (out_f, in_f), jnp.float32, -bound, bound)
    b = jax.random.uniform(k2, (out_f,), jnp.float32, -bound, bound)
    return w, b


def init_conv(key, cout, cin, ksz):
    fan_in = cin * ksz * ksz
    bound = 1.0 / (fan_in ** 0.5)
    k1, k2 = jax.random.split(key)
    w = jax.random.uniform(k1, (cout, cin, ksz, ksz), jnp.float32, -bound, bound)
    b = jax.random.uniform(k2, (cout,), jnp.float32, -bound, bound)
    return w, b


def init_mhsa(key, feature_dim):
    ks = jax.random.split(key, 4)
    wq, bq = init_linear(ks[0], feature_dim, feature_dim)   # dead at runtime (softmax==1)
    wk, bk = init_linear(ks[1], feature_dim, feature_dim)   # dead at runtime (softmax==1)
    wv, bv = init_linear(ks[2], feature_dim, feature_dim)
    wa, ba = init_linear(ks[3], feature_dim, feature_dim)
    return dict(wq=wq, bq=bq, wk=wk, bk=bk, wv=wv, bv=bv, wa=wa, ba=ba,
                gamma=jnp.ones((feature_dim,), jnp.float32),
                beta=jnp.zeros((feature_dim,), jnp.float32))


def init_mcvn(key, original_channels):
    ks = jax.random.split(key, 10)
    p = {}
    p["c1"] = init_conv(ks[0], 3, 1, 3)
    p["c2"] = init_conv(ks[1], 8, 3, 3)
    p["c3"] = init_conv(ks[2], 4, 8, 3)
    p["c4"] = init_conv(ks[3], 1, 4, 2)
    p["att1"] = init_mhsa(ks[4], original_channels)
    p["lin1"] = init_linear(ks[5], 8, original_channels)
    p["lin2"] = init_linear(ks[6], 4, 6)
    p["att2"] = init_mhsa(ks[7], 12)
    p["bn_gamma"] = jnp.ones((12,), jnp.float32)
    p["bn_beta"] = jnp.zeros((12,), jnp.float32)
    p["out1"] = init_linear(ks[8], 8, 12)
    ko1, ko2 = jax.random.split(ks[9])
    p["out2"] = init_linear(ko1, 4, 8)
    p["out3"] = init_linear(ko2, 1, 4)
    return p


# ----------------------------------------------------------------------------
# Unfused pure-JAX reference of the PyTorch module (full Q/K/softmax path +
# real convolutions) -- used to numerically validate every fold.
# ----------------------------------------------------------------------------
def reference_forward(params, images, original):
    def linear(x, wb):
        w, b = wb
        return x @ w.T + b

    def mhsa(x, a, num_heads):
        bsz, feat = x.shape
        dph = feat // num_heads
        q = (x @ a["wq"].T + a["bq"]).reshape(bsz * num_heads, -1, dph)
        k = (x @ a["wk"].T + a["bk"]).reshape(bsz * num_heads, -1, dph)
        v = (x @ a["wv"].T + a["bv"]).reshape(bsz * num_heads, -1, dph)
        scale = (k.shape[-1] // num_heads) ** (-0.5) if (k.shape[-1] // num_heads) != 0 else 1.0
        att = jax.nn.softmax(jnp.einsum("ijk,ilk->ijl", q, k) * scale, axis=2)
        ctx = jnp.einsum("ijl,ilk->ijk", att, v).reshape(bsz, -1, feat)
        out = jnp.squeeze(ctx @ a["wa"].T + a["ba"], axis=1)
        y = x + out
        mu = y.mean(-1, keepdims=True)
        var = ((y - mu) ** 2).mean(-1, keepdims=True)
        return (y - mu) / jnp.sqrt(var + _EPS) * a["gamma"] + a["beta"]

    def conv2d(x, wb, stride):
        w, b = wb
        y = lax.conv_general_dilated(x, w, (stride, stride), "VALID",
                                     dimension_numbers=("NCHW", "OIHW", "NCHW"))
        return y + b.reshape(1, -1, 1, 1)

    out1 = jax.nn.relu(linear(mhsa(original, params["att1"], 2), params["lin1"]))
    h = conv2d(images, params["c1"], 3)
    h = conv2d(h, params["c2"], 1)
    h = conv2d(h, params["c3"], 1)
    h = conv2d(h, params["c4"], 1)
    out2 = jax.nn.relu(linear(h.reshape(h.shape[0], -1), params["lin2"]))
    out3 = mhsa(jnp.concatenate([out1, out2], axis=1), params["att2"], 2)
    mu = out3.mean(0, keepdims=True)
    var = ((out3 - mu) ** 2).mean(0, keepdims=True)          # biased, training-mode BN
    z = (out3 - mu) / jnp.sqrt(var + _EPS) * params["bn_gamma"] + params["bn_beta"]
    z = jax.nn.relu(linear(z, params["out1"]))
    z = jax.nn.relu(linear(z, params["out2"]))
    return linear(z, params["out3"])


if __name__ == "__main__":
    key = jax.random.PRNGKey(0)
    k_img, k_orig, k_par = jax.random.split(key, 3)

    # B multiple of 8 (f32 sublane tile).  Image 21x24 so the conv chain
    # flattens to 6 features, matching the module's Linear(6, 4):
    # 21x24 -> 7x8 -> 5x6 -> 3x4 -> 2x3  => 1*2*3 = 6
    B, original_channels = 8, 16
    images = jax.random.normal(k_img, (B, 1, 21, 24), jnp.float32)
    original = jax.random.normal(k_orig, (B, original_channels), jnp.float32)

    params = init_mcvn(k_par, original_channels)
    prep = preprocess_params(params, images.shape)          # one-time, outside jit

    fwd = make_mcvn_forward(prep["off"])
    out = fwd(images, original, prep["mimg"], prep["slab"])
    jax.block_until_ready(out)
    assert out.shape == (B, 1) and out.dtype == jnp.float32

    # Validate the folded kernel against the unfused reference.
    ref = jax.jit(reference_forward)(params, images, original)
    np.testing.assert_allclose(np.asarray(out), np.asarray(ref), rtol=2e-3, atol=2e-3)

    print("KERNEL_OK")
</pallas_src>

<mosaic_0001>
module attributes {stable_mosaic.version = 11 : i64} {
  func.func @kernel(%arg0: memref<8x16xf32, #tpu.memory_space<vmem>>, %arg1: memref<8x512xf32, #tpu.memory_space<vmem>>, %arg2: memref<512x4xf32, #tpu.memory_space<vmem>>, %arg3: memref<152x16xf32, #tpu.memory_space<vmem>>, %arg4: memref<8x1xf32, #tpu.memory_space<vmem>>) attributes {dimension_semantics = [], scalar_prefetch = 0 : i64, scratch_operands = 0 : i64, tpu.core_type = #tpu.core_type<tc>} {
    %c0 = arith.constant 0 : index
    %c0_0 = arith.constant 0 : index
    %0 = vector.load %arg0[%c0, %c0_0] : memref<8x16xf32, #tpu.memory_space<vmem>>, vector<8x16xf32>
    %c0_1 = arith.constant 0 : index
    %c0_2 = arith.constant 0 : index
    %1 = vector.load %arg3[%c0_1, %c0_2] : memref<152x16xf32, #tpu.memory_space<vmem>>, vector<16x16xf32>
    %cst = arith.constant dense<0.000000e+00> : vector<8x16xf32>
    %2 = tpu.matmul %0, %1, %cst {dimension_numbers = #tpu.dot_dimension_numbers<[1], [0], [0], [1], [0, 0, 1, 1], [], []>, precision = #tpu.contract_precision<fp32>} : vector<8x16xf32>, vector<16x16xf32>, vector<8x16xf32> -> vector<8x16xf32>
    %3 = arith.addf %0, %2 : vector<8x16xf32>
    %c16 = arith.constant 16 : index
    %c0_3 = arith.constant 0 : index
    %4 = vector.load %arg3[%c16, %c0_3] : memref<152x16xf32, #tpu.memory_space<vmem>>, vector<1x16xf32>
    %5 = vector.broadcast %4 : vector<1x16xf32> to vector<8x16xf32>
    %6 = arith.addf %3, %5 : vector<8x16xf32>
    %cst_4 = arith.constant dense<0.000000e+00> : vector<8xf32>
    %7 = vector.multi_reduction <add>, %6, %cst_4 [1] : vector<8x16xf32> to vector<8xf32>
    %8 = vector.shape_cast %7 : vector<8xf32> to vector<8x1xf32>
    %cst_5 = arith.constant 1.600000e+01 : f32
    %9 = vector.broadcast %cst_5 : f32 to vector<8x1xf32>
    %10 = arith.divf %8, %9 : vector<8x1xf32>
    %11 = vector.broadcast %10 : vector<8x1xf32> to vector<8x16xf32>
    %12 = arith.subf %6, %11 : vector<8x16xf32>
    %13 = arith.mulf %12, %12 : vector<8x16xf32>
    %cst_6 = arith.constant dense<0.000000e+00> : vector<8xf32>
    %14 = vector.multi_reduction <add>, %13, %cst_6 [1] : vector<8x16xf32> to vector<8xf32>
    %15 = vector.shape_cast %14 : vector<8xf32> to vector<8x1xf32>
    %cst_7 = arith.constant 1.600000e+01 : f32
    %16 = vector.broadcast %cst_7 : f32 to vector<8x1xf32>
    %17 = arith.divf %15, %16 : vector<8x1xf32>
    %18 = vector.broadcast %10 : vector<8x1xf32> to vector<8x16xf32>
    %19 = arith.subf %6, %18 : vector<8x16xf32>
    %cst_8 = arith.constant 9.99999974E-6 : f32
    %20 = vector.broadcast %cst_8 : f32 to vector<8x1xf32>
    %21 = arith.addf %17, %20 : vector<8x1xf32>
    %22 = math.rsqrt %21 : vector<8x1xf32>
    %23 = vector.broadcast %22 : vector<8x1xf32> to vector<8x16xf32>
    %24 = arith.mulf %19, %23 : vector<8x16xf32>
    %c24 = arith.constant 24 : index
    %c0_9 = arith.constant 0 : index
    %25 = vector.load %arg3[%c24, %c0_9] : memref<152x16xf32, #tpu.memory_space<vmem>>, vector<16x8xf32>
    %cst_10 = arith.constant dense<0.000000e+00> : vector<8x8xf32>
    %26 = tpu.matmul %24, %25, %cst_10 {dimension_numbers = #tpu.dot_dimension_numbers<[1], [0], [0], [1], [0, 0, 1, 1], [], []>, precision = #tpu.contract_precision<fp32>} : vector<8x16xf32>, vector<16x8xf32>, vector<8x8xf32> -> vector<8x8xf32>
    %c40 = arith.constant 40 : index
    %c0_11 = arith.constant 0 : index
    %27 = vector.load %arg3[%c40, %c0_11] : memref<152x16xf32, #tpu.memory_space<vmem>>, vector<1x8xf32>
    %28 = vector.broadcast %27 : vector<1x8xf32> to vector<8x8xf32>
    %29 = arith.addf %26, %28 : vector<8x8xf32>
    %cst_12 = arith.constant 0.000000e+00 : f32
    %30 = vector.broadcast %cst_12 : f32 to vector<8x8xf32>
    %31 = arith.maximumf %29, %30 : vector<8x8xf32>
    %c0_13 = arith.constant 0 : index
    %c0_14 = arith.constant 0 : index
    %32 = vector.load %arg1[%c0_13, %c0_14] : memref<8x512xf32, #tpu.memory_space<vmem>>, vector<8x512xf32>
    %c0_15 = arith.constant 0 : index
    %c0_16 = arith.constant 0 : index
    %33 = vector.load %arg2[%c0_15, %c0_16] : memref<512x4xf32, #tpu.memory_space<vmem>>, vector<512x4xf32>
    %cst_17 = arith.constant dense<0.000000e+00> : vector<8x4xf32>
    %34 = tpu.matmul %32, %33, %cst_17 {dimension_numbers = #tpu.dot_dimension_numbers<[1], [0], [0], [1], [0, 0, 1, 1], [], []>, precision = #tpu.contract_precision<fp32>} : vector<8x512xf32>, vector<512x4xf32>, vector<8x4xf32> -> vector<8x4xf32>
    %c48 = arith.constant 48 : index
    %c0_18 = arith.constant 0 : index
    %35 = vector.load %arg3[%c48, %c0_18] : memref<152x16xf32, #tpu.memory_space<vmem>>, vector<1x4xf32>
    %36 = vector.broadcast %35 : vector<1x4xf32> to vector<8x4xf32>
    %37 = arith.addf %34, %36 : vector<8x4xf32>
    %cst_19 = arith.constant 0.000000e+00 : f32
    %38 = vector.broadcast %cst_19 : f32 to vector<8x4xf32>
    %39 = arith.maximumf %37, %38 : vector<8x4xf32>
    %c56 = arith.constant 56 : index
    %c0_20 = arith.constant 0 : index
    %40 = vector.load %arg3[%c56, %c0_20] : memref<152x16xf32, #tpu.memory_space<vmem>>, vector<8x12xf32>
    %cst_21 = arith.constant dense<0.000000e+00> : vector<8x12xf32>
    %41 = tpu.matmul %31, %40, %cst_21 {dimension_numbers = #tpu.dot_dimension_numbers<[1], [0], [0], [1], [0, 0, 1, 1], [], []>, precision = #tpu.contract_precision<fp32>} : vector<8x8xf32>, vector<8x12xf32>, vector<8x12xf32> -> vector<8x12xf32>
    %c64 = arith.constant 64 : index
    %c0_22 = arith.constant 0 : index
    %42 = vector.load %arg3[%c64, %c0_22] : memref<152x16xf32, #tpu.memory_space<vmem>>, vector<4x12xf32>
    %cst_23 = arith.constant dense<0.000000e+00> : vector<8x12xf32>
    %43 = tpu.matmul %39, %42, %cst_23 {dimension_numbers = #tpu.dot_dimension_numbers<[1], [0], [0], [1], [0, 0, 1, 1], [], []>, precision = #tpu.contract_precision<fp32>} : vector<8x4xf32>, vector<4x12xf32>, vector<8x12xf32> -> vector<8x12xf32>
    %44 = arith.addf %41, %43 : vector<8x12xf32>
    %c72 = arith.constant 72 : index
    %c0_24 = arith.constant 0 : index
    %45 = vector.load %arg3[%c72, %c0_24] : memref<152x16xf32, #tpu.memory_space<vmem>>, vector<1x12xf32>
    %46 = vector.broadcast %45 : vector<1x12xf32> to vector<8x12xf32>
    %47 = arith.addf %44, %46 : vector<8x12xf32>
    %48 = tpu.concatenate %31, %39 in 1 : vector<8x8xf32>, vector<8x4xf32> -> vector<8x12xf32>
    %49 = arith.addf %48, %47 : vector<8x12xf32>
    %cst_25 = arith.constant dense<0.000000e+00> : vector<8xf32>
    %50 = vector.multi_reduction <add>, %49, %cst_25 [1] : vector<8x12xf32> to vector<8xf32>
    %51 = vector.shape_cast %50 : vector<8xf32> to vector<8x1xf32>
    %cst_26 = arith.constant 1.200000e+01 : f32
    %52 = vector.broadcast %cst_26 : f32 to vector<8x1xf32>
    %53 = arith.divf %51, %52 : vector<8x1xf32>
    %54 = vector.broadcast %53 : vector<8x1xf32> to vector<8x12xf32>
    %55 = arith.subf %49, %54 : vector<8x12xf32>
    %56 = arith.mulf %55, %55 : vector<8x12xf32>
    %cst_27 = arith.constant dense<0.000000e+00> : vector<8xf32>
    %57 = vector.multi_reduction <add>, %56, %cst_27 [1] : vector<8x12xf32> to vector<8xf32>
    %58 = vector.shape_cast %57 : vector<8xf32> to vector<8x1xf32>
    %cst_28 = arith.constant 1.200000e+01 : f32
    %59 = vector.broadcast %cst_28 : f32 to vector<8x1xf32>
    %60 = arith.divf %58, %59 : vector<8x1xf32>
    %61 = vector.broadcast %53 : vector<8x1xf32> to vector<8x12xf32>
    %62 = arith.subf %49, %61 : vector<8x12xf32>
    %cst_29 = arith.constant 9.99999974E-6 : f32
    %63 = vector.broadcast %cst_29 : f32 to vector<8x1xf32>
    %64 = arith.addf %60, %63 : vector<8x1xf32>
    %65 = math.rsqrt %64 : vector<8x1xf32>
    %66 = vector.broadcast %65 : vector<8x1xf32> to vector<8x12xf32>
    %67 = arith.mulf %62, %66 : vector<8x12xf32>
    %c80 = arith.constant 80 : index
    %c0_30 = arith.constant 0 : index
    %68 = vector.load %arg3[%c80, %c0_30] : memref<152x16xf32, #tpu.memory_space<vmem>>, vector<1x12xf32>
    %69 = vector.broadcast %68 : vector<1x12xf32> to vector<8x12xf32>
    %70 = arith.mulf %67, %69 : vector<8x12xf32>
    %c88 = arith.constant 88 : index
    %c0_31 = arith.constant 0 : index
    %71 = vector.load %arg3[%c88, %c0_31] : memref<152x16xf32, #tpu.memory_space<vmem>>, vector<1x12xf32>
    %72 = vector.broadcast %71 : vector<1x12xf32> to vector<8x12xf32>
    %73 = arith.addf %70, %72 : vector<8x12xf32>
    %cst_32 = arith.constant dense<0.000000e+00> : vector<12xf32>
    %74 = vector.multi_reduction <add>, %73, %cst_32 [0] : vector<8x12xf32> to vector<12xf32>
    %75 = vector.shape_cast %74 : vector<12xf32> to vector<1x12xf32>
    %cst_33 = arith.constant 8.000000e+00 : f32
    %76 = vector.broadcast %cst_33 : f32 to vector<1x12xf32>
    %77 = arith.divf %75, %76 : vector<1x12xf32>
    %78 = vector.broadcast %77 : vector<1x12xf32> to vector<8x12xf32>
    %79 = arith.subf %73, %78 : vector<8x12xf32>
    %80 = arith.mulf %79, %79 : vector<8x12xf32>
    %cst_34 = arith.constant dense<0.000000e+00> : vector<12xf32>
    %81 = vector.multi_reduction <add>, %80, %cst_34 [0] : vector<8x12xf32> to vector<12xf32>
    %82 = vector.shape_cast %81 : vector<12xf32> to vector<1x12xf32>
    %cst_35 = arith.constant 8.000000e+00 : f32
    %83 = vector.broadcast %cst_35 : f32 to vector<1x12xf32>
    %84 = arith.divf %82, %83 : vector<1x12xf32>
    %85 = vector.broadcast %77 : vector<1x12xf32> to vector<8x12xf32>
    %86 = arith.subf %73, %85 : vector<8x12xf32>
    %cst_36 = arith.constant 9.99999974E-6 : f32
    %87 = vector.broadcast %cst_36 : f32 to vector<1x12xf32>
    %88 = arith.addf %84, %87 : vector<1x12xf32>
    %89 = math.rsqrt %88 : vector<1x12xf32>
    %90 = vector.broadcast %89 : vector<1x12xf32> to vector<8x12xf32>
    %91 = arith.mulf %86, %90 : vector<8x12xf32>
    %c96 = arith.constant 96 : index
    %c0_37 = arith.constant 0 : index
    %92 = vector.load %arg3[%c96, %c0_37] : memref<152x16xf32, #tpu.memory_space<vmem>>, vector<12x8xf32>
    %cst_38 = arith.constant dense<0.000000e+00> : vector<8x8xf32>
    %93 = tpu.matmul %91, %92, %cst_38 {dimension_numbers = #tpu.dot_dimension_numbers<[1], [0], [0], [1], [0, 0, 1, 1], [], []>, precision = #tpu.contract_precision<fp32>} : vector<8x12xf32>, vector<12x8xf32>, vector<8x8xf32> -> vector<8x8xf32>
    %c112 = arith.constant 112 : index
    %c0_39 = arith.constant 0 : index
    %94 = vector.load %arg3[%c112, %c0_39] : memref<152x16xf32, #tpu.memory_space<vmem>>, vector<1x8xf32>
    %95 = vector.broadcast %94 : vector<1x8xf32> to vector<8x8xf32>
    %96 = arith.addf %93, %95 : vector<8x8xf32>
    %cst_40 = arith.constant 0.000000e+00 : f32
    %97 = vector.broadcast %cst_40 : f32 to vector<8x8xf32>
    %98 = arith.maximumf %96, %97 : vector<8x8xf32>
    %c120 = arith.constant 120 : index
    %c0_41 = arith.constant 0 : index
    %99 = vector.load %arg3[%c120, %c0_41] : memref<152x16xf32, #tpu.memory_space<vmem>>, vector<8x4xf32>
    %cst_42 = arith.constant dense<0.000000e+00> : vector<8x4xf32>
    %100 = tpu.matmul %98, %99, %cst_42 {dimension_numbers = #tpu.dot_dimension_numbers<[1], [0], [0], [1], [0, 0, 1, 1], [], []>, precision = #tpu.contract_precision<fp32>} : vector<8x8xf32>, vector<8x4xf32>, vector<8x4xf32> -> vector<8x4xf32>
    %c128 = arith.constant 128 : index
    %c0_43 = arith.constant 0 : index
    %101 = vector.load %arg3[%c128, %c0_43] : memref<152x16xf32, #tpu.memory_space<vmem>>, vector<1x4xf32>
    %102 = vector.broadcast %101 : vector<1x4xf32> to vector<8x4xf32>
    %103 = arith.addf %100, %102 : vector<8x4xf32>
    %cst_44 = arith.constant 0.000000e+00 : f32
    %104 = vector.broadcast %cst_44 : f32 to vector<8x4xf32>
    %105 = arith.maximumf %103, %104 : vector<8x4xf32>
    %c136 = arith.constant 136 : index
    %c0_45 = arith.constant 0 : index
    %106 = vector.load %arg3[%c136, %c0_45] : memref<152x16xf32, #tpu.memory_space<vmem>>, vector<1x4xf32>
    %107 = vector.broadcast %106 : vector<1x4xf32> to vector<8x4xf32>
    %108 = arith.mulf %105, %107 : vector<8x4xf32>
    %cst_46 = arith.constant dense<0.000000e+00> : vector<8xf32>
    %109 = vector.multi_reduction <add>, %108, %cst_46 [1] : vector<8x4xf32> to vector<8xf32>
    %110 = vector.shape_cast %109 : vector<8xf32> to vector<8x1xf32>
    %c144 = arith.constant 144 : index
    %c0_47 = arith.constant 0 : index
    %111 = vector.load %arg3[%c144, %c0_47] : memref<152x16xf32, #tpu.memory_space<vmem>>, vector<1x1xf32>
    %112 = vector.broadcast %111 : vector<1x1xf32> to vector<8x1xf32>
    %113 = arith.addf %110, %112 : vector<8x1xf32>
    %c0_48 = arith.constant 0 : index
    %c0_49 = arith.constant 0 : index
    %114 = vector.load %arg4[%c0_48, %c0_49] : memref<8x1xf32, #tpu.memory_space<vmem>>, vector<8x1xf32>
    tpu.vector_store %arg4[%c0_48, %c0_49], %113 {strides = array<i32>} : memref<8x1xf32, #tpu.memory_space<vmem>>, vector<8x1xf32>,
    return
  }
}

</mosaic_0001>

<llo_original>
// kernel: fwd.1
$region0: #{fwd.1}
  #allocation0 [shape = 'u32[]', space=smem, size = 0x4, offset = 0x4, fixed_abs, tag = 'smem constant byte address 0x4 - core index']
  #allocation1 [shape = 'u32[144,128]{1,0:T(1,128)}', space=vmem, size = 0x12000, scoped, tag = 'internal scratch']
  %s0 = inlined_call_operand.vmem [shape: f32[8,16], index: 0, kind: input, shape index: {}]
  %s1 = inlined_call_operand.vmem [shape: f32[8,512], index: 1, kind: input, shape index: {}]
  %s2 = inlined_call_operand.vmem [shape: f32[512,4], index: 2, kind: input, shape index: {}]
  %s3 = inlined_call_operand.vmem [shape: f32[152,16], index: 3, kind: input, shape index: {}]
  %s4 = inlined_call_operand.vmem [shape: f32[8,1], index: 4, kind: output, shape index: {}]
  %s5 = sld [smem:[#allocation0]]
  $region26: #{fwd.1} parent=0
    _
  %s7 = ssub.s32 1, %s5
  %s8 = scalar_select 0, %s7, %s5
  // Predicated region
  $region2: #{fwd.1} parent=0 // pred_check
    _
  $region3: #{fwd.1} parent=0 // pred_check_branch
    %10 = sbr.rel (0) target = $region5
  $region4: #{fwd.1} parent=0 // pred_region
    _
  $region5: #{fwd.1} parent=0 // pred_fallthru
    _
  // Predicated region
  $region6: #{fwd.1} parent=0 // pred_check
    _
  $region7: #{fwd.1} parent=0 // pred_check_branch
    %12 = sbr.rel (0) target = $region9
  $region8: #{fwd.1} parent=0 // pred_region
    _
  $region9: #{fwd.1} parent=0 // pred_fallthru
    _
  // Predicated region
  $region10: #{fwd.1} parent=0 // pred_check
    _
  $region11: #{fwd.1} parent=0 // pred_check_branch
    %14 = sbr.rel (0) target = $region13
  $region12: #{fwd.1} parent=0 // pred_region
    _
  $region13: #{fwd.1} parent=0 // pred_fallthru
    _
  // Predicated region
  $region14: #{fwd.1} parent=0 // pred_check
    _
  $region15: #{fwd.1} parent=0 // pred_check_branch
    %16 = sbr.rel (0) target = $region17
  $region16: #{fwd.1} parent=0 // pred_region
    _
  $region17: #{fwd.1} parent=0 // pred_fallthru
    _
  %v17 = vld [vmem:[%s0] sm:$0xff]
  %v18 = vld [vmem:[%s3] sm:$0xff]
  %v19 = vld [vmem:[%s3 + $0x8] sm:$0xff]
  %vm20 = vcmask 130048
  %v22 = vsel %vm20, %v17, 0
  %24 = vmatprep.subr.mxu0 0.0
  %v25 = vand.u32 %v18, 4294901760
  %26 = vmatpush1.msra.mxu0 %v25
  %27 = vmatprep.subr.mxu0 0.0
  %v28 = vand.u32 %v19, 4294901760
  %29 = vmatpush1.msra.mxu0 %v28
  %30 = vmatprep.subr.mxu0 0.0
  %31 = vmatpush1.msra.mxu0 0.0
  %32 = vmatprep.subr.mxu0 0.0
  %33 = vmatpush1.msra.mxu0 0.0
  %34 = vmatprep.subr.mxu0 0.0
  %35 = vmatpush1.msra.mxu0 0.0
  %36 = vmatprep.subr.mxu0 0.0
  %37 = vmatpush1.msra.mxu0 0.0
  %38 = vmatprep.subr.mxu0 0.0
  %39 = vmatpush1.msra.mxu0 0.0
  %40 = vmatprep.subr.mxu0 0.0
  %41 = vmatpush1.msra.mxu0 0.0
  %42 = vmatprep.subr.mxu0 0.0
  %43 = vmatpush1.msra.mxu0 0.0
  %44 = vmatprep.subr.mxu0 0.0
  %45 = vmatpush1.msra.mxu0 0.0
  %46 = vmatprep.subr.mxu0 0.0
  %47 = vmatpush1.msra.mxu0 0.0
  %48 = vmatprep.subr.mxu0 0.0
  %49 = vmatpush1.msra.mxu0 0.0
  %50 = vmatprep.subr.mxu0 0.0
  %51 = vmatpush1.msra.mxu0 0.0
  %52 = vmatprep.subr.mxu0 0.0
  %53 = vmatpush1.msra.mxu0 0.0
  %54 = vmatprep.subr.mxu0 0.0
  %55 = vmatpush1.msra.mxu0 0.0
  %56 = vmatprep.subr.mxu0 0.0
  %57 = vmatpush1.msra.mxu0 0.0
  %58 = vmatprep.subr.mxu0 0.0
  %59 = vmatpush1.msra.mxu0 0.0
  %60 = vmatprep.subr.mxu0 0.0
  %61 = vmatpush1.msra.mxu0 0.0
  %62 = vmatprep.subr.mxu0 0.0
  %63 = vmatpush1.msra.mxu0 0.0
  %64 = vmatprep.subr.mxu0 0.0
  %65 = vmatpush1.msra.mxu0 0.0
  %66 = vmatprep.subr.mxu0 0.0
  %67 = vmatpush1.msra.mxu0 0.0
  %68 = vmatprep.subr.mxu0 0.0
  %69 = vmatpush1.msra.mxu0 0.0
  %70 = vmatprep.subr.mxu0 0.0
  %71 = vmatpush1.msra.mxu0 0.0
  %72 = vmatprep.subr.mxu0 0.0
  %73 = vmatpush1.msra.mxu0 0.0
  %74 = vmatprep.subr.mxu0 0.0
  %75 = vmatpush1.msra.mxu0 0.0
  %76 = vmatprep.subr.mxu0 0.0
  %77 = vmatpush1.msra.mxu0 0.0
  %78 = vmatprep.subr.mxu0 0.0
  %79 = vmatpush1.msra.mxu0 0.0
  %80 = vmatprep.subr.mxu0 0.0
  %81 = vmatpush1.msra.mxu0 0.0
  %82 = vmatprep.subr.mxu0 0.0
  %83 = vmatpush1.msra.mxu0 0.0
  %84 = vmatprep.subr.mxu0 0.0
  %85 = vmatpush1.msra.mxu0 0.0
  %86 = vmatprep.subr.mxu0 0.0
  %87 = vmatpush1.msra.mxu0 0.0
  %88 = vmatprep.subr.mxu0 0.0
  %89 = vmatpush1.msra.mxu0 0.0
  %90 = vmatprep.mubr.f32.mxu0 0.0
  %v91 = vand.u32 %v22, 4294901760
  %v92 = vsub.f32 %v22, %v91
  %v93 = vand.u32 %v92, 4294901760
  %v94 = vsub.f32 %v92, %v93
  %v95 = vand.u32 %v94, 4294901760
  %96 = vmatmul.mubr.f32.gmra.mrb[0].mxu0 %v95
  %v97 = vpop.f32.mrb[0].mxu0
  %v98 = vadd.f32 0.0, %v97
  %v99 = vpop.f32.mrb[0].mxu0
  %100 = vdwg.mxu0
  %101 = vmatprep.subr.mxu0 0.0
  %v102 = vand.u32 %v18, 4294901760
  %v103 = vsub.f32 %v18, %v102
  %v104 = vand.u32 %v103, 4294901760
  %v105 = vsub.f32 %v103, %v104
  %v106 = vand.u32 %v105, 4294901760
  %107 = vmatpush1.msra.mxu0 %v106
  %108 = vmatprep.subr.mxu0 0.0
  %v109 = vand.u32 %v19, 4294901760
  %v110 = vsub.f32 %v19, %v109
  %v111 = vand.u32 %v110, 4294901760
  %v112 = vsub.f32 %v110, %v111
  %v113 = vand.u32 %v112, 4294901760
  %114 = vmatpush1.msra.mxu0 %v113
  %115 = vmatprep.subr.mxu0 0.0
  %116 = vmatpush1.msra.mxu0 0.0
  %117 = vmatprep.subr.mxu0 0.0
  %118 = vmatpush1.msra.mxu0 0.0
  %119 = vmatprep.subr.mxu0 0.0
  %120 = vmatpush1.msra.mxu0 0.0
  %121 = vmatprep.subr.mxu0 0.0
  %122 = vmatpush1.msra.mxu0 0.0
  %123 = vmatprep.subr.mxu0 0.0
  %124 = vmatpush1.msra.mxu0 0.0
  %125 = vmatprep.subr.mxu0 0.0
  %126 = vmatpush1.msra.mxu0 0.0
  %127 = vmatprep.subr.mxu0 0.0
  %128 = vmatpush1.msra.mxu0 0.0
  %129 = vmatprep.subr.mxu0 0.0
  %130 = vmatpush1.msra.mxu0 0.0
  %131 = vmatprep.subr.mxu0 0.0
  %132 = vmatpush1.msra.mxu0 0.0
  %133 = vmatprep.subr.mxu0 0.0
  %134 = vmatpush1.msra.mxu0 0.0
  %135 = vmatprep.subr.mxu0 0.0
  %136 = vmatpush1.msra.mxu0 0.0
  %137 = vmatprep.subr.mxu0 0.0
  %138 = vmatpush1.msra.mxu0 0.0
  %139 = vmatprep.subr.mxu0 0.0
  %140 = vmatpush1.msra.mxu0 0.0
  %141 = vmatprep.subr.mxu0 0.0
  %142 = vmatpush1.msra.mxu0 0.0
  %143 = vmatprep.subr.mxu0 0.0
  %144 = vmatpush1.msra.mxu0 0.0
  %145 = vmatprep.subr.mxu0 0.0
  %146 = vmatpush1.msra.mxu0 0.0
  %147 = vmatprep.subr.mxu0 0.0
  %148 = vmatpush1.msra.mxu0 0.0
  %149 = vmatprep.subr.mxu0 0.0
  %150 = vmatpush1.msra.mxu0 0.0
  %151 = vmatprep.subr.mxu0 0.0
  %152 = vmatpush1.msra.mxu0 0.0
  %153 = vmatprep.subr.mxu0 0.0
  %154 = vmatpush1.msra.mxu0 0.0
  %155 = vmatprep.subr.mxu0 0.0
  %156 = vmatpush1.msra.mxu0 0.0
  %157 = vmatprep.subr.mxu0 0.0
  %158 = vmatpush1.msra.mxu0 0.0
  %159 = vmatprep.subr.mxu0 0.0
  %160 = vmatpush1.msra.mxu0 0.0
  %161 = vmatprep.subr.mxu0 0.0
  %162 = vmatpush1.msra.mxu0 0.0
  %163 = vmatprep.subr.mxu0 0.0
  %164 = vmatpush1.msra.mxu0 0.0
  %165 = vmatprep.subr.mxu0 0.0
  %166 = vmatpush1.msra.mxu0 0.0
  %167 = vmatprep.subr.mxu0 0.0
  %168 = vmatpush1.msra.mxu0 0.0
  %169 = vmatprep.subr.mxu0 0.0
  %170 = vmatpush1.msra.mxu0 0.0
  %171 = vmatprep.subr.mxu0 0.0
  %172 = vmatpush1.msra.mxu0 0.0
  %173 = vmatprep.subr.mxu0 0.0
  %174 = vmatpush1.msra.mxu0 0.0
  %175 = vmatprep.mubr.f32.mxu0 0.0
  %v176 = vand.u32 %v22, 4294901760
  %177 = vmatmul.mubr.f32.gmra.mrb[0].mxu0 %v176
  %v178 = vpop.f32.mrb[0].mxu0
  %v179 = vadd.f32 %v98, %v178
  %v180 = vpop.f32.mrb[0].mxu0
  %181 = vdwg.mxu0
  %182 = vmatprep.subr.mxu0 0.0
  %v183 = vand.u32 %v18, 4294901760
  %v184 = vsub.f32 %v18, %v183
  %185 = vmatpush1.msra.mxu0 %v184
  %186 = vmatprep.subr.mxu0 0.0
  %v187 = vand.u32 %v19, 4294901760
  %v188 = vsub.f32 %v19, %v187
  %189 = vmatpush1.msra.mxu0 %v188
  %190 = vmatprep.subr.mxu0 0.0
  %191 = vmatpush1.msra.mxu0 0.0
  %192 = vmatprep.subr.mxu0 0.0
  %193 = vmatpush1.msra.mxu0 0.0
  %194 = vmatprep.subr.mxu0 0.0
  %195 = vmatpush1.msra.mxu0 0.0
  %196 = vmatprep.subr.mxu0 0.0
  %197 = vmatpush1.msra.mxu0 0.0
  %198 = vmatprep.subr.mxu0 0.0
  %199 = vmatpush1.msra.mxu0 0.0
  %200 = vmatprep.subr.mxu0 0.0
  %201 = vmatpush1.msra.mxu0 0.0
  %202 = vmatprep.subr.mxu0 0.0
  %203 = vmatpush1.msra.mxu0 0.0
  %204 = vmatprep.subr.mxu0 0.0
  %205 = vmatpush1.msra.mxu0 0.0
  %206 = vmatprep.subr.mxu0 0.0
  %207 = vmatpush1.msra.mxu0 0.0
  %208 = vmatprep.subr.mxu0 0.0
  %209 = vmatpush1.msra.mxu0 0.0
  %210 = vmatprep.subr.mxu0 0.0
  %211 = vmatpush1.msra.mxu0 0.0
  %212 = vmatprep.subr.mxu0 0.0
  %213 = vmatpush1.msra.mxu0 0.0
  %214 = vmatprep.subr.mxu0 0.0
  %215 = vmatpush1.msra.mxu0 0.0
  %216 = vmatprep.subr.mxu0 0.0
  %217 = vmatpush1.msra.mxu0 0.0
  %218 = vmatprep.subr.mxu0 0.0
  %219 = vmatpush1.msra.mxu0 0.0
  %220 = vmatprep.subr.mxu0 0.0
  %221 = vmatpush1.msra.mxu0 0.0
  %222 = vmatprep.subr.mxu0 0.0
  %223 = vmatpush1.msra.mxu0 0.0
  %224 = vmatprep.subr.mxu0 0.0
  %225 = vmatpush1.msra.mxu0 0.0
  %226 = vmatprep.subr.mxu0 0.0
  %227 = vmatpush1.msra.mxu0 0.0
  %228 = vmatprep.subr.mxu0 0.0
  %229 = vmatpush1.msra.mxu0 0.0
  %230 = vmatprep.subr.mxu0 0.0
  %231 = vmatpush1.msra.mxu0 0.0
  %232 = vmatprep.subr.mxu0 0.0
  %233 = vmatpush1.msra.mxu0 0.0
  %234 = vmatprep.subr.mxu0 0.0
  %235 = vmatpush1.msra.mxu0 0.0
  %236 = vmatprep.subr.mxu0 0.0
  %237 = vmatpush1.msra.mxu0 0.0
  %238 = vmatprep.subr.mxu0 0.0
  %239 = vmatpush1.msra.mxu0 0.0
  %240 = vmatprep.subr.mxu0 0.0
  %241 = vmatpush1.msra.mxu0 0.0
  %242 = vmatprep.subr.mxu0 0.0
  %243 = vmatpush1.msra.mxu0 0.0
  %244 = vmatprep.subr.mxu0 0.0
  %245 = vmatpush1.msra.mxu0 0.0
  %246 = vmatprep.subr.mxu0 0.0
  %247 = vmatpush1.msra.mxu0 0.0
  %248 = vmatprep.subr.mxu0 0.0
  %249 = vmatpush1.msra.mxu0 0.0
  %250 = vmatprep.mubr.f32.mxu0 0.0
  %v251 = vand.u32 %v22, 4294901760
  %v252 = vsub.f32 %v22, %v251
  %253 = vmatmul.mubr.f32.gmra.mrb[0].mxu0 %v252
  %v254 = vpop.f32.mrb[0].mxu0
  %v255 = vadd.f32 %v179, %v254
  %v256 = vpop.f32.mrb[0].mxu0
  %257 = vdwg.mxu0
  %258 = vmatprep.subr.mxu0 0.0
  %v259 = vand.u32 %v18, 4294901760
  %260 = vmatpush1.msra.mxu0 %v259
  %261 = vmatprep.subr.mxu0 0.0
  %v262 = vand.u32 %v19, 4294901760
  %263 = vmatpush1.msra.mxu0 %v262
  %264 = vmatprep.subr.mxu0 0.0
  %265 = vmatpush1.msra.mxu0 0.0
  %266 = vmatprep.subr.mxu0 0.0
  %267 = vmatpush1.msra.mxu0 0.0
  %268 = vmatprep.subr.mxu0 0.0
  %269 = vmatpush1.msra.mxu0 0.0
  %270 = vmatprep.subr.mxu0 0.0
  %271 = vmatpush1.msra.mxu0 0.0
  %272 = vmatprep.subr.mxu0 0.0
  %273 = vmatpush1.msra.mxu0 0.0
  %274 = vmatprep.subr.mxu0 0.0
  %275 = vmatpush1.msra.mxu0 0.0
  %276 = vmatprep.subr.mxu0 0.0
  %277 = vmatpush1.msra.mxu0 0.0
  %278 = vmatprep.subr.mxu0 0.0
  %279 = vmatpush1.msra.mxu0 0.0
  %280 = vmatprep.subr.mxu0 0.0
  %281 = vmatpush1.msra.mxu0 0.0
  %282 = vmatprep.subr.mxu0 0.0
  %283 = vmatpush1.msra.mxu0 0.0
  %284 = vmatprep.subr.mxu0 0.0
  %285 = vmatpush1.msra.mxu0 0.0
  %286 = vmatprep.subr.mxu0 0.0
  %287 = vmatpush1.msra.mxu0 0.0
  %288 = vmatprep.subr.mxu0 0.0
  %289 = vmatpush1.msra.mxu0 0.0
  %290 = vmatprep.subr.mxu0 0.0
  %291 = vmatpush1.msra.mxu0 0.0
  %292 = vmatprep.subr.mxu0 0.0
  %293 = vmatpush1.msra.mxu0 0.0
  %294 = vmatprep.subr.mxu0 0.0
  %295 = vmatpush1.msra.mxu0 0.0
  %296 = vmatprep.subr.mxu0 0.0
  %297 = vmatpush1.msra.mxu0 0.0
  %298 = vmatprep.subr.mxu0 0.0
  %299 = vmatpush1.msra.mxu0 0.0
  %300 = vmatprep.subr.mxu0 0.0
  %301 = vmatpush1.msra.mxu0 0.0
  %302 = vmatprep.subr.mxu0 0.0
  %303 = vmatpush1.msra.mxu0 0.0
  %304 = vmatprep.subr.mxu0 0.0
  %305 = vmatpush1.msra.mxu0 0.0
  %306 = vmatprep.subr.mxu0 0.0
  %307 = vmatpush1.msra.mxu0 0.0
  %308 = vmatprep.subr.mxu0 0.0
  %309 = vmatpush1.msra.mxu0 0.0
  %310 = vmatprep.subr.mxu0 0.0
  %311 = vmatpush1.msra.mxu0 0.0
  %312 = vmatprep.subr.mxu0 0.0
  %313 = vmatpush1.msra.mxu0 0.0
  %314 = vmatprep.subr.mxu0 0.0
  %315 = vmatpush1.msra.mxu0 0.0
  %316 = vmatprep.subr.mxu0 0.0
  %317 = vmatpush1.msra.mxu0 0.0
  %318 = vmatprep.subr.mxu0 0.0
  %319 = vmatpush1.msra.mxu0 0.0
  %320 = vmatprep.subr.mxu0 0.0
  %321 = vmatpush1.msra.mxu0 0.0
  %322 = vmatprep.subr.mxu0 0.0
  %323 = vmatpush1.msra.mxu0 0.0
  %324 = vmatprep.mubr.f32.mxu0 0.0
  %v325 = vand.u32 %v22, 4294901760
  %v326 = vsub.f32 %v22, %v325
  %v327 = vand.u32 %v326, 4294901760
  %328 = vmatmul.mubr.f32.gmra.mrb[0].mxu0 %v327
  %v329 = vpop.f32.mrb[0].mxu0
  %v330 = vadd.f32 %v255, %v329
  %v331 = vpop.f32.mrb[0].mxu0
  %332 = vdwg.mxu0
  %333 = vmatprep.subr.mxu0 0.0
  %v334 = vand.u32 %v18, 4294901760
  %v335 = vsub.f32 %v18, %v334
  %v336 = vand.u32 %v335, 4294901760
  %337 = vmatpush1.msra.mxu0 %v336
  %338 = vmatprep.subr.mxu0 0.0
  %v339 = vand.u32 %v19, 4294901760
  %v340 = vsub.f32 %v19, %v339
  %v341 = vand.u32 %v340, 4294901760
  %342 = vmatpush1.msra.mxu0 %v341
  %343 = vmatprep.subr.mxu0 0.0
  %344 = vmatpush1.msra.mxu0 0.0
  %345 = vmatprep.subr.mxu0 0.0
  %346 = vmatpush1.msra.mxu0 0.0
  %347 = vmatprep.subr.mxu0 0.0
  %348 = vmatpush1.msra.mxu0 0.0
  %349 = vmatprep.subr.mxu0 0.0
  %350 = vmatpush1.msra.mxu0 0.0
  %351 = vmatprep.subr.mxu0 0.0
  %352 = vmatpush1.msra.mxu0 0.0
  %353 = vmatprep.subr.mxu0 0.0
  %354 = vmatpush1.msra.mxu0 0.0
  %355 = vmatprep.subr.mxu0 0.0
  %356 = vmatpush1.msra.mxu0 0.0
  %357 = vmatprep.subr.mxu0 0.0
  %358 = vmatpush1.msra.mxu0 0.0
  %359 = vmatprep.subr.mxu0 0.0
  %360 = vmatpush1.msra.mxu0 0.0
  %361 = vmatprep.subr.mxu0 0.0
  %362 = vmatpush1.msra.mxu0 0.0
  %363 = vmatprep.subr.mxu0 0.0
  %364 = vmatpush1.msra.mxu0 0.0
  %365 = vmatprep.subr.mxu0 0.0
  %366 = vmatpush1.msra.mxu0 0.0
  %367 = vmatprep.subr.mxu0 0.0
  %368 = vmatpush1.msra.mxu0 0.0
  %369 = vmatprep.subr.mxu0 0.0
  %370 = vmatpush1.msra.mxu0 0.0
  %371 = vmatprep.subr.mxu0 0.0
  %372 = vmatpush1.msra.mxu0 0.0
  %373 = vmatprep.subr.mxu0 0.0
  %374 = vmatpush1.msra.mxu0 0.0
  %375 = vmatprep.subr.mxu0 0.0
  %376 = vmatpush1.msra.mxu0 0.0
  %377 = vmatprep.subr.mxu0 0.0
  %378 = vmatpush1.msra.mxu0 0.0
  %379 = vmatprep.subr.mxu0 0.0
  %380 = vmatpush1.msra.mxu0 0.0
  %381 = vmatprep.subr.mxu0 0.0
  %382 = vmatpush1.msra.mxu0 0.0
  %383 = vmatprep.subr.mxu0 0.0
  %384 = vmatpush1.msra.mxu0 0.0
  %385 = vmatprep.subr.mxu0 0.0
  %386 = vmatpush1.msra.mxu0 0.0
  %387 = vmatprep.subr.mxu0 0.0
  %388 = vmatpush1.msra.mxu0 0.0
  %389 = vmatprep.subr.mxu0 0.0
  %390 = vmatpush1.msra.mxu0 0.0
  %391 = vmatprep.subr.mxu0 0.0
  %392 = vmatpush1.msra.mxu0 0.0
  %393 = vmatprep.subr.mxu0 0.0
  %394 = vmatpush1.msra.mxu0 0.0
  %395 = vmatprep.subr.mxu0 0.0
  %396 = vmatpush1.msra.mxu0 0.0
  %397 = vmatprep.subr.mxu0 0.0
  %398 = vmatpush1.msra.mxu0 0.0
  %399 = vmatprep.subr.mxu0 0.0
  %400 = vmatpush1.msra.mxu0 0.0
  %401 = vmatprep.subr.mxu0 0.0
  %402 = vmatpush1.msra.mxu0 0.0
  %403 = vmatprep.mubr.f32.mxu0 0.0
  %v404 = vand.u32 %v22, 4294901760
  %405 = vmatmul.mubr.f32.gmra.mrb[0].mxu0 %v404
  %v406 = vpop.f32.mrb[0].mxu0
  %v407 = vadd.f32 %v330, %v406
  %v408 = vpop.f32.mrb[0].mxu0
  %409 = vdwg.mxu0
  %410 = vmatprep.subr.mxu0 0.0
  %v411 = vand.u32 %v18, 4294901760
  %412 = vmatpush1.msra.mxu0 %v411
  %413 = vmatprep.subr.mxu0 0.0
  %v414 = vand.u32 %v19, 4294901760
  %415 = vmatpush1.msra.mxu0 %v414
  %416 = vmatprep.subr.mxu0 0.0
  %417 = vmatpush1.msra.mxu0 0.0
  %418 = vmatprep.subr.mxu0 0.0
  %419 = vmatpush1.msra.mxu0 0.0
  %420 = vmatprep.subr.mxu0 0.0
  %421 = vmatpush1.msra.mxu0 0.0
  %422 = vmatprep.subr.mxu0 0.0
  %423 = vmatpush1.msra.mxu0 0.0
  %424 = vmatprep.subr.mxu0 0.0
  %425 = vmatpush1.msra.mxu0 0.0
  %426 = vmatprep.subr.mxu0 0.0
  %427 = vmatpush1.msra.mxu0 0.0
  %428 = vmatprep.subr.mxu0 0.0
  %429 = vmatpush1.msra.mxu0 0.0
  %430 = vmatprep.subr.mxu0 0.0
  %431 = vmatpush1.msra.mxu0 0.0
  %432 = vmatprep.subr.mxu0 0.0
  %433 = vmatpush1.msra.mxu0 0.0
  %434 = vmatprep.subr.mxu0 0.0
  %435 = vmatpush1.msra.mxu0 0.0
  %436 = vmatprep.subr.mxu0 0.0
  %437 = vmatpush1.msra.mxu0 0.0
  %438 = vmatprep.subr.mxu0 0.0
  %439 = vmatpush1.msra.mxu0 0.0
  %440 = vmatprep.subr.mxu0 0.0
  %441 = vmatpush1.msra.mxu0 0.0
  %442 = vmatprep.subr.mxu0 0.0
  %443 = vmatpush1.msra.mxu0 0.0
  %444 = vmatprep.subr.mxu0 0.0
  %445 = vmatpush1.msra.mxu0 0.0
  %446 = vmatprep.subr.mxu0 0.0
  %447 = vmatpush1.msra.mxu0 0.0
  %448 = vmatprep.subr.mxu0 0.0
  %449 = vmatpush1.msra.mxu0 0.0
  %450 = vmatprep.subr.mxu0 0.0
  %451 = vmatpush1.msra.mxu0 0.0
  %452 = vmatprep.subr.mxu0 0.0
  %453 = vmatpush1.msra.mxu0 0.0
  %454 = vmatprep.subr.mxu0 0.0
  %455 = vmatpush1.msra.mxu0 0.0
  %456 = vmatprep.subr.mxu0 0.0
  %457 = vmatpush1.msra.mxu0 0.0
  %458 = vmatprep.subr.mxu0 0.0
  %459 = vmatpush1.msra.mxu0 0.0
  %460 = vmatprep.subr.mxu0 0.0
  %461 = vmatpush1.msra.mxu0 0.0
  %462 = vmatprep.subr.mxu0 0.0
  %463 = vmatpush1.msra.mxu0 0.0
  %464 = vmatprep.subr.mxu0 0.0
  %465 = vmatpush1.msra.mxu0 0.0
  %466 = vmatprep.subr.mxu0 0.0
  %467 = vmatpush1.msra.mxu0 0.0
  %468 = vmatprep.subr.mxu0 0.0
  %469 = vmatpush1.msra.mxu0 0.0
  %470 = vmatprep.subr.mxu0 0.0
  %471 = vmatpush1.msra.mxu0 0.0
  %472 = vmatprep.subr.mxu0 0.0
  %473 = vmatpush1.msra.mxu0 0.0
  %474 = vmatprep.subr.mxu0 0.0
  %475 = vmatpush1.msra.mxu0 0.0
  %476 = vmatprep.mubr.f32.mxu0 0.0
  %v477 = vand.u32 %v22, 4294901760
  %478 = vmatmul.mubr.f32.gmra.mrb[0].mxu0 %v477
  %v479 = vpop.f32.mrb[0].mxu0
  %v480 = vadd.f32 %v407, %v479
  %v481 = vpop.f32.mrb[0].mxu0
  %482 = vdwg.mxu0
  %v483 = vadd.f32 %v17, %v480
  %v484 = vld [vmem:[%s3 + $0x10] sm:$0x1]
  %v485 = vlaneseq
  %v486 = vshrl.u32 %v485, 7
  %v487 = vsub.s32 0, %v486
  %v488 = vrot.slane %v484, %v487
  %v489 = vadd.f32 %v483, %v488
  %v490 = vsel %vm20, %v489, 0.0
  %491 = vadd.xlane.f32.xlu0 %v490
  %v492 = vpop.xlane.xlu0 %491
  %v493 = vrcp.pop 16.0
  %v494 = vmul.f32 %v492, %v493
  %v495 = vsub.f32 %v489, %v494
  %v496 = vmul.f32 %v495, %v495
  %v497 = vsel %vm20, %v496, 0.0
  %498 = vadd.xlane.f32.xlu0 %v497
  %v499 = vpop.xlane.xlu0 %498
  %v500 = vmul.f32 %v499, %v493
  %v501 = vadd.f32 %v500, 1e-05
  %v502 = vrsqrt.pop %v501
  %v503 = vmul.f32 %v495, %v502
  %v504 = vld [vmem:[%s3 + $0x18] sm:$0xff]
  %v505 = vld [vmem:[%s3 + $0x20] sm:$0xff]
  %v506 = vld [vmem:[%s3 + $0x28] sm:$0x1]
  %v507 = vlaneseq
  %v508 = vshrl.u32 %v507, 7
  %v509 = vsub.s32 0, %v508
  %v510 = vrot.slane %v506, %v509
  %v512 = vsel %vm20, %v503, 0
  %514 = vmatprep.subr.mxu0 0.0
  %v515 = vand.u32 %v504, 4294901760
  %516 = vmatpush1.msra.mxu0 %v515
  %517 = vmatprep.subr.mxu0 0.0
  %v518 = vand.u32 %v505, 4294901760
  %519 = vmatpush1.msra.mxu0 %v518
  %520 = vmatprep.subr.mxu0 0.0
  %521 = vmatpush1.msra.mxu0 0.0
  %522 = vmatprep.subr.mxu0 0.0
  %523 = vmatpush1.msra.mxu0 0.0
  %524 = vmatprep.subr.mxu0 0.0
  %525 = vmatpush1.msra.mxu0 0.0
  %526 = vmatprep.subr.mxu0 0.0
  %527 = vmatpush1.msra.mxu0 0.0
  %528 = vmatprep.subr.mxu0 0.0
  %529 = vmatpush1.msra.mxu0 0.0
  %530 = vmatprep.subr.mxu0 0.0
  %531 = vmatpush1.msra.mxu0 0.0
  %532 = vmatprep.subr.mxu0 0.0
  %533 = vmatpush1.msra.mxu0 0.0
  %534 = vmatprep.subr.mxu0 0.0
  %535 = vmatpush1.msra.mxu0 0.0
  %536 = vmatprep.subr.mxu0 0.0
  %537 = vmatpush1.msra.mxu0 0.0
  %538 = vmatprep.subr.mxu0 0.0
  %539 = vmatpush1.msra.mxu0 0.0
  %540 = vmatprep.subr.mxu0 0.0
  %541 = vmatpush1.msra.mxu0 0.0
  %542 = vmatprep.subr.mxu0 0.0
  %543 = vmatpush1.msra.mxu0 0.0
  %544 = vmatprep.subr.mxu0 0.0
  %545 = vmatpush1.msra.mxu0 0.0
  %546 = vmatprep.subr.mxu0 0.0
  %547 = vmatpush1.msra.mxu0 0.0
  %548 = vmatprep.subr.mxu0 0.0
  %549 = vmatpush1.msra.mxu0 0.0
  %550 = vmatprep.subr.mxu0 0.0
  %551 = vmatpush1.msra.mxu0 0.0
  %552 = vmatprep.subr.mxu0 0.0
  %553 = vmatpush1.msra.mxu0 0.0
  %554 = vmatprep.subr.mxu0 0.0
  %555 = vmatpush1.msra.mxu0 0.0
  %556 = vmatprep.subr.mxu0 0.0
  %557 = vmatpush1.msra.mxu0 0.0
  %558 = vmatprep.subr.mxu0 0.0
  %559 = vmatpush1.msra.mxu0 0.0
  %560 = vmatprep.subr.mxu0 0.0
  %561 = vmatpush1.msra.mxu0 0.0
  %562 = vmatprep.subr.mxu0 0.0
  %563 = vmatpush1.msra.mxu0 0.0
  %564 = vmatprep.subr.mxu0 0.0
  %565 = vmatpush1.msra.mxu0 0.0
  %566 = vmatprep.subr.mxu0 0.0
  %567 = vmatpush1.msra.mxu0 0.0
  %568 = vmatprep.subr.mxu0 0.0
  %569 = vmatpush1.msra.mxu0 0.0
  %570 = vmatprep.subr.mxu0 0.0
  %571 = vmatpush1.msra.mxu0 0.0
  %572 = vmatprep.subr.mxu0 0.0
  %573 = vmatpush1.msra.mxu0 0.0
  %574 = vmatprep.subr.mxu0 0.0
  %575 = vmatpush1.msra.mxu0 0.0
  %576 = vmatprep.subr.mxu0 0.0
  %577 = vmatpush1.msra.mxu0 0.0
  %578 = vmatprep.subr.mxu0 0.0
  %579 = vmatpush1.msra.mxu0 0.0
  %580 = vmatprep.mubr.f32.mxu0 0.0
  %v581 = vand.u32 %v512, 4294901760
  %v582 = vsub.f32 %v512, %v581
  %v583 = vand.u32 %v582, 4294901760
  %v584 = vsub.f32 %v582, %v583
  %v585 = vand.u32 %v584, 4294901760
  %586 = vmatmul.mubr.f32.gmra.mrb[0].mxu0 %v585
  %v587 = vpop.f32.mrb[0].mxu0
  %v588 = vadd.f32 %v510, %v587
  %v589 = vpop.f32.mrb[0].mxu0
  %590 = vdwg.mxu0
  %591 = vmatprep.subr.mxu0 0.0
  %v592 = vand.u32 %v504, 4294901760
  %v593 = vsub.f32 %v504, %v592
  %v594 = vand.u32 %v593, 4294901760
  %v595 = vsub.f32 %v593, %v594
  %v596 = vand.u32 %v595, 4294901760
  %597 = vmatpush1.msra.mxu0 %v596
  %598 = vmatprep.subr.mxu0 0.0
  %v599 = vand.u32 %v505, 4294901760
  %v600 = vsub.f32 %v505, %v599
  %v601 = vand.u32 %v600, 4294901760
  %v602 = vsub.f32 %v600, %v601
  %v603 = vand.u32 %v602, 4294901760
  %604 = vmatpush1.msra.mxu0 %v603
  %605 = vmatprep.subr.mxu0 0.0
  %606 = vmatpush1.msra.mxu0 0.0
  %607 = vmatprep.subr.mxu0 0.0
  %608 = vmatpush1.msra.mxu0 0.0
  %609 = vmatprep.subr.mxu0 0.0
  %610 = vmatpush1.msra.mxu0 0.0
  %611 = vmatprep.subr.mxu0 0.0
  %612 = vmatpush1.msra.mxu0 0.0
  %613 = vmatprep.subr.mxu0 0.0
  %614 = vmatpush1.msra.mxu0 0.0
  %615 = vmatprep.subr.mxu0 0.0
  %616 = vmatpush1.msra.mxu0 0.0
  %617 = vmatprep.subr.mxu0 0.0
  %618 = vmatpush1.msra.mxu0 0.0
  %619 = vmatprep.subr.mxu0 0.0
  %620 = vmatpush1.msra.mxu0 0.0
  %621 = vmatprep.subr.mxu0 0.0
  %622 = vmatpush1.msra.mxu0 0.0
  %623 = vmatprep.subr.mxu0 0.0
  %624 = vmatpush1.msra.mxu0 0.0
  %625 = vmatprep.subr.mxu0 0.0
  %626 = vmatpush1.msra.mxu0 0.0
  %627 = vmatprep.subr.mxu0 0.0
  %628 = vmatpush1.msra.mxu0 0.0
  %629 = vmatprep.subr.mxu0 0.0
  %630 = vmatpush1.msra.mxu0 0.0
  %631 = vmatprep.subr.mxu0 0.0
  %632 = vmatpush1.msra.mxu0 0.0
  %633 = vmatprep.subr.mxu0 0.0
  %634 = vmatpush1.msra.mxu0 0.0
  %635 = vmatprep.subr.mxu0 0.0
  %636 = vmatpush1.msra.mxu0 0.0
  %637 = vmatprep.subr.mxu0 0.0
  %638 = vmatpush1.msra.mxu0 0.0
  %639 = vmatprep.subr.mxu0 0.0
  %640 = vmatpush1.msra.mxu0 0.0
  %641 = vmatprep.subr.mxu0 0.0
  %642 = vmatpush1.msra.mxu0 0.0
  %643 = vmatprep.subr.mxu0 0.0
  %644 = vmatpush1.msra.mxu0 0.0
  %645 = vmatprep.subr.mxu0 0.0
  %646 = vmatpush1.msra.mxu0 0.0
  %647 = vmatprep.subr.mxu0 0.0
  %648 = vmatpush1.msra.mxu0 0.0
  %649 = vmatprep.subr.mxu0 0.0
  %650 = vmatpush1.msra.mxu0 0.0
  %651 = vmatprep.subr.mxu0 0.0
  %652 = vmatpush1.msra.mxu0 0.0
  %653 = vmatprep.subr.mxu0 0.0
  %654 = vmatpush1.msra.mxu0 0.0
  %655 = vmatprep.subr.mxu0 0.0
  %656 = vmatpush1.msra.mxu0 0.0
  %657 = vmatprep.subr.mxu0 0.0
  %658 = vmatpush1.msra.mxu0 0.0
  %659 = vmatprep.subr.mxu0 0.0
  %660 = vmatpush1.msra.mxu0 0.0
  %661 = vmatprep.subr.mxu0 0.0
  %662 = vmatpush1.msra.mxu0 0.0
  %663 = vmatprep.subr.mxu0 0.0
  %664 = vmatpush1.msra.mxu0 0.0
  %665 = vmatprep.mubr.f32.mxu0 0.0
  %v666 = vand.u32 %v512, 4294901760
  %667 = vmatmul.mubr.f32.gmra.mrb[0].mxu0 %v666
  %v668 = vpop.f32.mrb[0].mxu0
  %v669 = vadd.f32 %v588, %v668
  %v670 = vpop.f32.mrb[0].mxu0
  %671 = vdwg.mxu0
  %672 = vmatprep.subr.mxu0 0.0
  %v673 = vand.u32 %v504, 4294901760
  %v674 = vsub.f32 %v504, %v673
  %675 = vmatpush1.msra.mxu0 %v674
  %676 = vmatprep.subr.mxu0 0.0
  %v677 = vand.u32 %v505, 4294901760
  %v678 = vsub.f32 %v505, %v677
  %679 = vmatpush1.msra.mxu0 %v678
  %680 = vmatprep.subr.mxu0 0.0
  %681 = vmatpush1.msra.mxu0 0.0
  %682 = vmatprep.subr.mxu0 0.0
  %683 = vmatpush1.msra.mxu0 0.0
  %684 = vmatprep.subr.mxu0 0.0
  %685 = vmatpush1.msra.mxu0 0.0
  %686 = vmatprep.subr.mxu0 0.0
  %687 = vmatpush1.msra.mxu0 0.0
  %688 = vmatprep.subr.mxu0 0.0
  %689 = vmatpush1.msra.mxu0 0.0
  %690 = vmatprep.subr.mxu0 0.0
  %691 = vmatpush1.msra.mxu0 0.0
  %692 = vmatprep.subr.mxu0 0.0
  %693 = vmatpush1.msra.mxu0 0.0
  %694 = vmatprep.subr.mxu0 0.0
  %695 = vmatpush1.msra.mxu0 0.0
  %696 = vmatprep.subr.mxu0 0.0
  %697 = vmatpush1.msra.mxu0 0.0
  %698 = vmatprep.subr.mxu0 0.0
  %699 = vmatpush1.msra.mxu0 0.0
  %700 = vmatprep.subr.mxu0 0.0
  %701 = vmatpush1.msra.mxu0 0.0
  %702 = vmatprep.subr.mxu0 0.0
  %703 = vmatpush1.msra.mxu0 0.0
  %704 = vmatprep.subr.mxu0 0.0
  %705 = vmatpush1.msra.mxu0 0.0
  %706 = vmatprep.subr.mxu0 0.0
  %707 = vmatpush1.msra.mxu0 0.0
  %708 = vmatprep.subr.mxu0 0.0
  %709 = vmatpush1.msra.mxu0 0.0
  %710 = vmatprep.subr.mxu0 0.0
  %711 = vmatpush1.msra.mxu0 0.0
  %712 = vmatprep.subr.mxu0 0.0
  %713 = vmatpush1.msra.mxu0 0.0
  %714 = vmatprep.subr.mxu0 0.0
  %715 = vmatpush1.msra.mxu0 0.0
  %716 = vmatprep.subr.mxu0 0.0
  %717 = vmatpush1.msra.mxu0 0.0
  %718 = vmatprep.subr.mxu0 0.0
  %719 = vmatpush1.msra.mxu0 0.0
  %720 = vmatprep.subr.mxu0 0.0
  %721 = vmatpush1.msra.mxu0 0.0
  %722 = vmatprep.subr.mxu0 0.0
  %723 = vmatpush1.msra.mxu0 0.0
  %724 = vmatprep.subr.mxu0 0.0
  %725 = vmatpush1.msra.mxu0 0.0
  %726 = vmatprep.subr.mxu0 0.0
  %727 = vmatpush1.msra.mxu0 0.0
  %728 = vmatprep.subr.mxu0 0.0
  %729 = vmatpush1.msra.mxu0 0.0
  %730 = vmatprep.subr.mxu0 0.0
  %731 = vmatpush1.msra.mxu0 0.0
  %732 = vmatprep.subr.mxu0 0.0
  %733 = vmatpush1.msra.mxu0 0.0
  %734 = vmatprep.subr.mxu0 0.0
  %735 = vmatpush1.msra.mxu0 0.0
  %736 = vmatprep.subr.mxu0 0.0
  %737 = vmatpush1.msra.mxu0 0.0
  %738 = vmatprep.subr.mxu0 0.0
  %739 = vmatpush1.msra.mxu0 0.0
  %740 = vmatprep.mubr.f32.mxu0 0.0
  %v741 = vand.u32 %v512, 4294901760
  %v742 = vsub.f32 %v512, %v741
  %743 = vmatmul.mubr.f32.gmra.mrb[0].mxu0 %v742
  %v744 = vpop.f32.mrb[0].mxu0
  %v745 = vadd.f32 %v669, %v744
  %v746 = vpop.f32.mrb[0].mxu0
  %747 = vdwg.mxu0
  %748 = vmatprep.subr.mxu0 0.0
  %v749 = vand.u32 %v504, 4294901760
  %750 = vmatpush1.msra.mxu0 %v749
  %751 = vmatprep.subr.mxu0 0.0
  %v752 = vand.u32 %v505, 4294901760
  %753 = vmatpush1.msra.mxu0 %v752
  %754 = vmatprep.subr.mxu0 0.0
  %755 = vmatpush1.msra.mxu0 0.0
  %756 = vmatprep.subr.mxu0 0.0
  %757 = vmatpush1.msra.mxu0 0.0
  %758 = vmatprep.subr.mxu0 0.0
  %759 = vmatpush1.msra.mxu0 0.0
  %760 = vmatprep.subr.mxu0 0.0
  %761 = vmatpush1.msra.mxu0 0.0
  %762 = vmatprep.subr.mxu0 0.0
  %763 = vmatpush1.msra.mxu0 0.0
  %764 = vmatprep.subr.mxu0 0.0
  %765 = vmatpush1.msra.mxu0 0.0
  %766 = vmatprep.subr.mxu0 0.0
  %767 = vmatpush1.msra.mxu0 0.0
  %768 = vmatprep.subr.mxu0 0.0
  %769 = vmatpush1.msra.mxu0 0.0
  %770 = vmatprep.subr.mxu0 0.0
  %771 = vmatpush1.msra.mxu0 0.0
  %772 = vmatprep.subr.mxu0 0.0
  %773 = vmatpush1.msra.mxu0 0.0
  %774 = vmatprep.subr.mxu0 0.0
  %775 = vmatpush1.msra.mxu0 0.0
  %776 = vmatprep.subr.mxu0 0.0
  %777 = vmatpush1.msra.mxu0 0.0
  %778 = vmatprep.subr.mxu0 0.0
  %779 = vmatpush1.msra.mxu0 0.0
  %780 = vmatprep.subr.mxu0 0.0
  %781 = vmatpush1.msra.mxu0 0.0
  %782 = vmatprep.subr.mxu0 0.0
  %783 = vmatpush1.msra.mxu0 0.0
  %784 = vmatprep.subr.mxu0 0.0
  %785 = vmatpush1.msra.mxu0 0.0
  %786 = vmatprep.subr.mxu0 0.0
  %787 = vmatpush1.msra.mxu0 0.0
  %788 = vmatprep.subr.mxu0 0.0
  %789 = vmatpush1.msra.mxu0 0.0
  %790 = vmatprep.subr.mxu0 0.0
  %791 = vmatpush1.msra.mxu0 0.0
  %792 = vmatprep.subr.mxu0 0.0
  %793 = vmatpush1.msra.mxu0 0.0
  %794 = vmatprep.subr.mxu0 0.0
  %795 = vmatpush1.msra.mxu0 0.0
  %796 = vmatprep.subr.mxu0 0.0
  %797 = vmatpush1.msra.mxu0 0.0
  %798 = vmatprep.subr.mxu0 0.0
  %799 = vmatpush1.msra.mxu0 0.0
  %800 = vmatprep.subr.mxu0 0.0
  %801 = vmatpush1.msra.mxu0 0.0
  %802 = vmatprep.subr.mxu0 0.0
  %803 = vmatpush1.msra.mxu0 0.0
  %804 = vmatprep.subr.mxu0 0.0
  %805 = vmatpush1.msra.mxu0 0.0
  %806 = vmatprep.subr.mxu0 0.0
  %807 = vmatpush1.msra.mxu0 0.0
  %808 = vmatprep.subr.mxu0 0.0
  %809 = vmatpush1.msra.mxu0 0.0
  %810 = vmatprep.subr.mxu0 0.0
  %811 = vmatpush1.msra.mxu0 0.0
  %812 = vmatprep.subr.mxu0 0.0
  %813 = vmatpush1.msra.mxu0 0.0
  %814 = vmatprep.mubr.f32.mxu0 0.0
  %v815 = vand.u32 %v512, 4294901760
  %v816 = vsub.f32 %v512, %v815
  %v817 = vand.u32 %v816, 4294901760
  %818 = vmatmul.mubr.f32.gmra.mrb[0].mxu0 %v817
  %v819 = vpop.f32.mrb[0].mxu0
  %v820 = vadd.f32 %v745, %v819
  %v821 = vpop.f32.mrb[0].mxu0
  %822 = vdwg.mxu0
  %823 = vmatprep.subr.mxu0 0.0
  %v824 = vand.u32 %v504, 4294901760
  %v825 = vsub.f32 %v504, %v824
  %v826 = vand.u32 %v825, 4294901760
  %827 = vmatpush1.msra.mxu0 %v826
  %828 = vmatprep.subr.mxu0 0.0
  %v829 = vand.u32 %v505, 4294901760
  %v830 = vsub.f32 %v505, %v829
  %v831 = vand.u32 %v830, 4294901760
  %832 = vmatpush1.msra.mxu0 %v831
  %833 = vmatprep.subr.mxu0 0.0
  %834 = vmatpush1.msra.mxu0 0.0
  %835 = vmatprep.subr.mxu0 0.0
  %836 = vmatpush1.msra.mxu0 0.0
  %837 = vmatprep.subr.mxu0 0.0
  %838 = vmatpush1.msra.mxu0 0.0
  %839 = vmatprep.subr.mxu0 0.0
  %840 = vmatpush1.msra.mxu0 0.0
  %841 = vmatprep.subr.mxu0 0.0
  %842 = vmatpush1.msra.mxu0 0.0
  %843 = vmatprep.subr.mxu0 0.0
  %844 = vmatpush1.msra.mxu0 0.0
  %845 = vmatprep.subr.mxu0 0.0
  %846 = vmatpush1.msra.mxu0 0.0
  %847 = vmatprep.subr.mxu0 0.0
  %848 = vmatpush1.msra.mxu0 0.0
  %849 = vmatprep.subr.mxu0 0.0
  %850 = vmatpush1.msra.mxu0 0.0
  %851 = vmatprep.subr.mxu0 0.0
  %852 = vmatpush1.msra.mxu0 0.0
  %853 = vmatprep.subr.mxu0 0.0
  %854 = vmatpush1.msra.mxu0 0.0
  %855 = vmatprep.subr.mxu0 0.0
  %856 = vmatpush1.msra.mxu0 0.0
  %857 = vmatprep.subr.mxu0 0.0
  %858 = vmatpush1.msra.mxu0 0.0
  %859 = vmatprep.subr.mxu0 0.0
  %860 = vmatpush1.msra.mxu0 0.0
  %861 = vmatprep.subr.mxu0 0.0
  %862 = vmatpush1.msra.mxu0 0.0
  %863 = vmatprep.subr.mxu0 0.0
  %864 = vmatpush1.msra.mxu0 0.0
  %865 = vmatprep.subr.mxu0 0.0
  %866 = vmatpush1.msra.mxu0 0.0
  %867 = vmatprep.subr.mxu0 0.0
  %868 = vmatpush1.msra.mxu0 0.0
  %869 = vmatprep.subr.mxu0 0.0
  %870 = vmatpush1.msra.mxu0 0.0
  %871 = vmatprep.subr.mxu0 0.0
  %872 = vmatpush1.msra.mxu0 0.0
  %873 = vmatprep.subr.mxu0 0.0
  %874 = vmatpush1.msra.mxu0 0.0
  %875 = vmatprep.subr.mxu0 0.0
  %876 = vmatpush1.msra.mxu0 0.0
  %877 = vmatprep.subr.mxu0 0.0
  %878 = vmatpush1.msra.mxu0 0.0
  %879 = vmatprep.subr.mxu0 0.0
  %880 = vmatpush1.msra.mxu0 0.0
  %881 = vmatprep.subr.mxu0 0.0
  %882 = vmatpush1.msra.mxu0 0.0
  %883 = vmatprep.subr.mxu0 0.0
  %884 = vmatpush1.msra.mxu0 0.0
  %885 = vmatprep.subr.mxu0 0.0
  %886 = vmatpush1.msra.mxu0 0.0
  %887 = vmatprep.subr.mxu0 0.0
  %888 = vmatpush1.msra.mxu0 0.0
  %889 = vmatprep.subr.mxu0 0.0
  %890 = vmatpush1.msra.mxu0 0.0
  %891 = vmatprep.subr.mxu0 0.0
  %892 = vmatpush1.msra.mxu0 0.0
  %893 = vmatprep.mubr.f32.mxu0 0.0
  %v894 = vand.u32 %v512, 4294901760
  %895 = vmatmul.mubr.f32.gmra.mrb[0].mxu0 %v894
  %v896 = vpop.f32.mrb[0].mxu0
  %v897 = vadd.f32 %v820, %v896
  %v898 = vpop.f32.mrb[0].mxu0
  %899 = vdwg.mxu0
  %900 = vmatprep.subr.mxu0 0.0
  %v901 = vand.u32 %v504, 4294901760
  %902 = vmatpush1.msra.mxu0 %v901
  %903 = vmatprep.subr.mxu0 0.0
  %v904 = vand.u32 %v505, 4294901760
  %905 = vmatpush1.msra.mxu0 %v904
  %906 = vmatprep.subr.mxu0 0.0
  %907 = vmatpush1.msra.mxu0 0.0
  %908 = vmatprep.subr.mxu0 0.0
  %909 = vmatpush1.msra.mxu0 0.0
  %910 = vmatprep.subr.mxu0 0.0
  %911 = vmatpush1.msra.mxu0 0.0
  %912 = vmatprep.subr.mxu0 0.0
  %913 = vmatpush1.msra.mxu0 0.0
  %914 = vmatprep.subr.mxu0 0.0
  %915 = vmatpush1.msra.mxu0 0.0
  %916 = vmatprep.subr.mxu0 0.0
  %917 = vmatpush1.msra.mxu0 0.0
  %918 = vmatprep.subr.mxu0 0.0
  %919 = vmatpush1.msra.mxu0 0.0
  %920 = vmatprep.subr.mxu0 0.0
  %921 = vmatpush1.msra.mxu0 0.0
  %922 = vmatprep.subr.mxu0 0.0
  %923 = vmatpush1.msra.mxu0 0.0
  %924 = vmatprep.subr.mxu0 0.0
  %925 = vmatpush1.msra.mxu0 0.0
  %926 = vmatprep.subr.mxu0 0.0
  %927 = vmatpush1.msra.mxu0 0.0
  %928 = vmatprep.subr.mxu0 0.0
  %929 = vmatpush1.msra.mxu0 0.0
  %930 = vmatprep.subr.mxu0 0.0
  %931 = vmatpush1.msra.mxu0 0.0
  %932 = vmatprep.subr.mxu0 0.0
  %933 = vmatpush1.msra.mxu0 0.0
  %934 = vmatprep.subr.mxu0 0.0
  %935 = vmatpush1.msra.mxu0 0.0
  %936 = vmatprep.subr.mxu0 0.0
  %937 = vmatpush1.msra.mxu0 0.0
  %938 = vmatprep.subr.mxu0 0.0
  %939 = vmatpush1.msra.mxu0 0.0
  %940 = vmatprep.subr.mxu0 0.0
  %941 = vmatpush1.msra.mxu0 0.0
  %942 = vmatprep.subr.mxu0 0.0
  %943 = vmatpush1.msra.mxu0 0.0
  %944 = vmatprep.subr.mxu0 0.0
  %945 = vmatpush1.msra.mxu0 0.0
  %946 = vmatprep.subr.mxu0 0.0
  %947 = vmatpush1.msra.mxu0 0.0
  %948 = vmatprep.subr.mxu0 0.0
  %949 = vmatpush1.msra.mxu0 0.0
  %950 = vmatprep.subr.mxu0 0.0
  %951 = vmatpush1.msra.mxu0 0.0
  %952 = vmatprep.subr.mxu0 0.0
  %953 = vmatpush1.msra.mxu0 0.0
  %954 = vmatprep.subr.mxu0 0.0
  %955 = vmatpush1.msra.mxu0 0.0
  %956 = vmatprep.subr.mxu0 0.0
  %957 = vmatpush1.msra.mxu0 0.0
  %958 = vmatprep.subr.mxu0 0.0
  %959 = vmatpush1.msra.mxu0 0.0
  %960 = vmatprep.subr.mxu0 0.0
  %961 = vmatpush1.msra.mxu0 0.0
  %962 = vmatprep.subr.mxu0 0.0
  %963 = vmatpush1.msra.mxu0 0.0
  %964 = vmatprep.subr.mxu0 0.0
  %965 = vmatpush1.msra.mxu0 0.0
  %966 = vmatprep.mubr.f32.mxu0 0.0
  %v967 = vand.u32 %v512, 4294901760
  %968 = vmatmul.mubr.f32.gmra.mrb[0].mxu0 %v967
  %v969 = vpop.f32.mrb[0].mxu0
  %v970 = vadd.f32 %v897, %v969
  %v971 = vpop.f32.mrb[0].mxu0
  %972 = vdwg.mxu0
  %v973 = vmax.f32 %v970, 0.0
  %v974 = vld [vmem:[%s1] sm:$0xff]
  %v975 = vld [vmem:[%s1 + $0x8] sm:$0xff]
  %v976 = vld [vmem:[%s1 + $0x10] sm:$0xff]
  %v977 = vld [vmem:[%s1 + $0x18] sm:$0xff]
  %v978 = vld [vmem:[%s2] sm:$0xff]
  %v979 = vld [vmem:[%s2 + $0x8] sm:$0xff]
  %v980 = vld [vmem:[%s2 + $0x10] sm:$0xff]
  %v981 = vld [vmem:[%s2 + $0x18] sm:$0xff]
  %v982 = vld [vmem:[%s2 + $0x20] sm:$0xff]
  %v983 = vld [vmem:[%s2 + $0x28] sm:$0xff]
  %v984 = vld [vmem:[%s2 + $0x30] sm:$0xff]
  %v985 = vld [vmem:[%s2 + $0x38] sm:$0xff]
  %v986 = vld [vmem:[%s2 + $0x40] sm:$0xff]
  %v987 = vld [vmem:[%s2 + $0x48] sm:$0xff]
  %v988 = vld [vmem:[%s2 + $0x50] sm:$0xff]
  %v989 = vld [vmem:[%s2 + $0x58] sm:$0xff]
  %v990 = vld [vmem:[%s2 + $0x60] sm:$0xff]
  %v991 = vld [vmem:[%s2 + $0x68] sm:$0xff]
  %v992 = vld [vmem:[%s2 + $0x70] sm:$0xff]
  %v993 = vld [vmem:[%s2 + $0x78] sm:$0xff]
  %v994 = vld [vmem:[%s2 + $0x80] sm:$0xff]
  %v995 = vld [vmem:[%s2 + $0x88] sm:$0xff]
  %v996 = vld [vmem:[%s2 + $0x90] sm:$0xff]
  %v997 = vld [vmem:[%s2 + $0x98] sm:$0xff]
  %v998 = vld [vmem:[%s2 + $0xa0] sm:$0xff]
  %v999 = vld [vmem:[%s2 + $0xa8] sm:$0xff]
  %v1000 = vld [vmem:[%s2 + $0xb0] sm:$0xff]
  %v1001 = vld [vmem:[%s2 + $0xb8] sm:$0xff]
  %v1002 = vld [vmem:[%s2 + $0xc0] sm:$0xff]
  %v1003 = vld [vmem:[%s2 + $0xc8] sm:$0xff]
  %v1004 = vld [vmem:[%s2 + $0xd0] sm:$0xff]
  %v1005 = vld [vmem:[%s2 + $0xd8] sm:$0xff]
  %v1006 = vld [vmem:[%s2 + $0xe0] sm:$0xff]
  %v1007 = vld [vmem:[%s2 + $0xe8] sm:$0xff]
  %v1008 = vld [vmem:[%s2 + $0xf0] sm:$0xff]
  %v1009 = vld [vmem:[%s2 + $0xf8] sm:$0xff]
  %v1010 = vld [vmem:[%s2 + $0x100] sm:$0xff]
  %v1011 = vld [vmem:[%s2 + $0x108] sm:$0xff]
  %v1012 = vld [vmem:[%s2 + $0x110] sm:$0xff]
  %v1013 = vld [vmem:[%s2 + $0x118] sm:$0xff]
  %v1014 = vld [vmem:[%s2 + $0x120] sm:$0xff]
  %v1015 = vld [vmem:[%s2 + $0x128] sm:$0xff]
  %v1016 = vld [vmem:[%s2 + $0x130] sm:$0xff]
  %v1017 = vld [vmem:[%s2 + $0x138] sm:$0xff]
  %v1018 = vld [vmem:[%s2 + $0x140] sm:$0xff]
  %v1019 = vld [vmem:[%s2 + $0x148] sm:$0xff]
  %v1020 = vld [vmem:[%s2 + $0x150] sm:$0xff]
  %v1021 = vld [vmem:[%s2 + $0x158] sm:$0xff]
  %v1022 = vld [vmem:[%s2 + $0x160] sm:$0xff]
  %v1023 = vld [vmem:[%s2 + $0x168] sm:$0xff]
  %v1024 = vld [vmem:[%s2 + $0x170] sm:$0xff]
  %v1025 = vld [vmem:[%s2 + $0x178] sm:$0xff]
  %v1026 = vld [vmem:[%s2 + $0x180] sm:$0xff]
  %v1027 = vld [vmem:[%s2 + $0x188] sm:$0xff]
  %v1028 = vld [vmem:[%s2 + $0x190] sm:$0xff]
  %v1029 = vld [vmem:[%s2 + $0x198] sm:$0xff]
  %v1030 = vld [vmem:[%s2 + $0x1a0] sm:$0xff]
  %v1031 = vld [vmem:[%s2 + $0x1a8] sm:$0xff]
  %v1032 = vld [vmem:[%s2 + $0x1b0] sm:$0xff]
  %v1033 = vld [vmem:[%s2 + $0x1b8] sm:$0xff]
  %v1034 = vld [vmem:[%s2 + $0x1c0] sm:$0xff]
  %v1035 = vld [vmem:[%s2 + $0x1c8] sm:$0xff]
  %v1036 = vld [vmem:[%s2 + $0x1d0] sm:$0xff]
  %v1037 = vld [vmem:[%s2 + $0x1d8] sm:$0xff]
  %v1038 = vld [vmem:[%s2 + $0x1e0] sm:$0xff]
  %v1039 = vld [vmem:[%s2 + $0x1e8] sm:$0xff]
  %v1040 = vld [vmem:[%s2 + $0x1f0] sm:$0xff]
  %v1041 = vld [vmem:[%s2 + $0x1f8] sm:$0xff]
  %v1042 = vld [vmem:[%s3 + $0x30] sm:$0x1]
  %v1043 = vlaneseq
  %v1044 = vshrl.u32 %v1043, 7
  %v1045 = vsub.s32 0, %v1044
  %v1046 = vrot.slane %v1042, %v1045
  %1047 = vmatprep.subr.mxu0 0.0
  %v1048 = vand.u32 %v978, 4294901760
  %1049 = vmatpush1.msra.mxu0 %v1048
  %1050 = vmatprep.subr.mxu0 0.0
  %v1051 = vand.u32 %v979, 4294901760
  %1052 = vmatpush1.msra.mxu0 %v1051
  %1053 = vmatprep.subr.mxu0 0.0
  %v1054 = vand.u32 %v980, 4294901760
  %1055 = vmatpush1.msra.mxu0 %v1054
  %1056 = vmatprep.subr.mxu0 0.0
  %v1057 = vand.u32 %v981, 4294901760
  %1058 = vmatpush1.msra.mxu0 %v1057
  %1059 = vmatprep.subr.mxu0 0.0
  %v1060 = vand.u32 %v982, 4294901760
  %1061 = vmatpush1.msra.mxu0 %v1060
  %1062 = vmatprep.subr.mxu0 0.0
  %v1063 = vand.u32 %v983, 4294901760
  %1064 = vmatpush1.msra.mxu0 %v1063
  %1065 = vmatprep.subr.mxu0 0.0
  %v1066 = vand.u32 %v984, 4294901760
  %1067 = vmatpush1.msra.mxu0 %v1066
  %1068 = vmatprep.subr.mxu0 0.0
  %v1069 = vand.u32 %v985, 4294901760
  %1070 = vmatpush1.msra.mxu0 %v1069
  %1071 = vmatprep.subr.mxu0 0.0
  %v1072 = vand.u32 %v986, 4294901760
  %1073 = vmatpush1.msra.mxu0 %v1072
  %1074 = vmatprep.subr.mxu0 0.0
  %v1075 = vand.u32 %v987, 4294901760
  %1076 = vmatpush1.msra.mxu0 %v1075
  %1077 = vmatprep.subr.mxu0 0.0
  %v1078 = vand.u32 %v988, 4294901760
  %1079 = vmatpush1.msra.mxu0 %v1078
  %1080 = vmatprep.subr.mxu0 0.0
  %v1081 = vand.u32 %v989, 4294901760
  %1082 = vmatpush1.msra.mxu0 %v1081
  %1083 = vmatprep.subr.mxu0 0.0
  %v1084 = vand.u32 %v990, 4294901760
  %1085 = vmatpush1.msra.mxu0 %v1084
  %1086 = vmatprep.subr.mxu0 0.0
  %v1087 = vand.u32 %v991, 4294901760
  %1088 = vmatpush1.msra.mxu0 %v1087
  %1089 = vmatprep.subr.mxu0 0.0
  %v1090 = vand.u32 %v992, 4294901760
  %1091 = vmatpush1.msra.mxu0 %v1090
  %1092 = vmatprep.subr.mxu0 0.0
  %v1093 = vand.u32 %v993, 4294901760
  %1094 = vmatpush1.msra.mxu0 %v1093
  %1095 = vmatprep.subr.mxu0 0.0
  %v1096 = vand.u32 %v994, 4294901760
  %1097 = vmatpush1.msra.mxu0 %v1096
  %1098 = vmatprep.subr.mxu0 0.0
  %v1099 = vand.u32 %v995, 4294901760
  %1100 = vmatpush1.msra.mxu0 %v1099
  %1101 = vmatprep.subr.mxu0 0.0
  %v1102 = vand.u32 %v996, 4294901760
  %1103 = vmatpush1.msra.mxu0 %v1102
  %1104 = vmatprep.subr.mxu0 0.0
  %v1105 = vand.u32 %v997, 4294901760
  %1106 = vmatpush1.msra.mxu0 %v1105
  %1107 = vmatprep.subr.mxu0 0.0
  %v1108 = vand.u32 %v998, 4294901760
  %1109 = vmatpush1.msra.mxu0 %v1108
  %1110 = vmatprep.subr.mxu0 0.0
  %v1111 = vand.u32 %v999, 4294901760
  %1112 = vmatpush1.msra.mxu0 %v1111
  %1113 = vmatprep.subr.mxu0 0.0
  %v1114 = vand.u32 %v1000, 4294901760
  %1115 = vmatpush1.msra.mxu0 %v1114
  %1116 = vmatprep.subr.mxu0 0.0
  %v1117 = vand.u32 %v1001, 4294901760
  %1118 = vmatpush1.msra.mxu0 %v1117
  %1119 = vmatprep.subr.mxu0 0.0
  %v1120 = vand.u32 %v1002, 4294901760
  %1121 = vmatpush1.msra.mxu0 %v1120
  %1122 = vmatprep.subr.mxu0 0.0
  %v1123 = vand.u32 %v1003, 4294901760
  %1124 = vmatpush1.msra.mxu0 %v1123
  %1125 = vmatprep.subr.mxu0 0.0
  %v1126 = vand.u32 %v1004, 4294901760
  %1127 = vmatpush1.msra.mxu0 %v1126
  %1128 = vmatprep.subr.mxu0 0.0
  %v1129 = vand.u32 %v1005, 4294901760
  %1130 = vmatpush1.msra.mxu0 %v1129
  %1131 = vmatprep.subr.mxu0 0.0
  %v1132 = vand.u32 %v1006, 4294901760
  %1133 = vmatpush1.msra.mxu0 %v1132
  %1134 = vmatprep.subr.mxu0 0.0
  %v1135 = vand.u32 %v1007, 4294901760
  %1136 = vmatpush1.msra.mxu0 %v1135
  %1137 = vmatprep.subr.mxu0 0.0
  %v1138 = vand.u32 %v1008, 4294901760
  %1139 = vmatpush1.msra.mxu0 %v1138
  %1140 = vmatprep.subr.mxu0 0.0
  %v1141 = vand.u32 %v1009, 4294901760
  %1142 = vmatpush1.msra.mxu0 %v1141
  %v1143 = vand.u32 %v975, 4294901760
  %v1144 = vsub.f32 %v975, %v1143
  %v1145 = vand.u32 %v1144, 4294901760
  %v1146 = vsub.f32 %v1144, %v1145
  %v1147 = vand.u32 %v1146, 4294901760
  %1148 = vmatprep.mubr.f32.mxu0 %v1147
  %v1149 = vand.u32 %v974, 4294901760
  %v1150 = vsub.f32 %v974, %v1149
  %v1151 = vand.u32 %v1150, 4294901760
  %v1152 = vsub.f32 %v1150, %v1151
  %v1153 = vand.u32 %v1152, 4294901760
  %1154 = vmatmul.mubr.f32.gmra.mrb[0].mxu0 %v1153
  %v1155 = vpop.f32.mrb[0].mxu0
  %v1156 = vadd.f32 %v1046, %v1155
  %v1157 = vpop.f32.mrb[0].mxu0
  %1158 = vdwg.mxu0
  %1159 = vmatprep.subr.mxu0 0.0
  %v1160 = vand.u32 %v978, 4294901760
  %v1161 = vsub.f32 %v978, %v1160
  %v1162 = vand.u32 %v1161, 4294901760
  %v1163 = vsub.f32 %v1161, %v1162
  %v1164 = vand.u32 %v1163, 4294901760
  %1165 = vmatpush1.msra.mxu0 %v1164
  %1166 = vmatprep.subr.mxu0 0.0
  %v1167 = vand.u32 %v979, 4294901760
  %v1168 = vsub.f32 %v979, %v1167
  %v1169 = vand.u32 %v1168, 4294901760
  %v1170 = vsub.f32 %v1168, %v1169
  %v1171 = vand.u32 %v1170, 4294901760
  %1172 = vmatpush1.msra.mxu0 %v1171
  %1173 = vmatprep.subr.mxu0 0.0
  %v1174 = vand.u32 %v980, 4294901760
  %v1175 = vsub.f32 %v980, %v1174
  %v1176 = vand.u32 %v1175, 4294901760
  %v1177 = vsub.f32 %v1175, %v1176
  %v1178 = vand.u32 %v1177, 4294901760
  %1179 = vmatpush1.msra.mxu0 %v1178
  %1180 = vmatprep.subr.mxu0 0.0
  %v1181 = vand.u32 %v981, 4294901760
  %v1182 = vsub.f32 %v981, %v1181
  %v1183 = vand.u32 %v1182, 4294901760
  %v1184 = vsub.f32 %v1182, %v1183
  %v1185 = vand.u32 %v1184, 4294901760
  %1186 = vmatpush1.msra.mxu0 %v1185
  %1187 = vmatprep.subr.mxu0 0.0
  %v1188 = vand.u32 %v982, 4294901760
  %v1189 = vsub.f32 %v982, %v1188
  %v1190 = vand.u32 %v1189, 4294901760
  %v1191 = vsub.f32 %v1189, %v1190
  %v1192 = vand.u32 %v1191, 4294901760
  %1193 = vmatpush1.msra.mxu0 %v1192
  %1194 = vmatprep.subr.mxu0 0.0
  %v1195 = vand.u32 %v983, 4294901760
  %v1196 = vsub.f32 %v983, %v1195
  %v1197 = vand.u32 %v1196, 4294901760
  %v1198 = vsub.f32 %v1196, %v1197
  %v1199 = vand.u32 %v1198, 4294901760
  %1200 = vmatpush1.msra.mxu0 %v1199
  %1201 = vmatprep.subr.mxu0 0.0
  %v1202 = vand.u32 %v984, 4294901760
  %v1203 = vsub.f32 %v984, %v1202
  %v1204 = vand.u32 %v1203, 4294901760
  %v1205 = vsub.f32 %v1203, %v1204
  %v1206 = vand.u32 %v1205, 4294901760
  %1207 = vmatpush1.msra.mxu0 %v1206
  %1208 = vmatprep.subr.mxu0 0.0
  %v1209 = vand.u32 %v985, 4294901760
  %v1210 = vsub.f32 %v985, %v1209
  %v1211 = vand.u32 %v1210, 4294901760
  %v1212 = vsub.f32 %v1210, %v1211
  %v1213 = vand.u32 %v1212, 4294901760
  %1214 = vmatpush1.msra.mxu0 %v1213
  %1215 = vmatprep.subr.mxu0 0.0
  %v1216 = vand.u32 %v986, 4294901760
  %v1217 = vsub.f32 %v986, %v1216
  %v1218 = vand.u32 %v1217, 4294901760
  %v1219 = vsub.f32 %v1217, %v1218
  %v1220 = vand.u32 %v1219, 4294901760
  %1221 = vmatpush1.msra.mxu0 %v1220
  %1222 = vmatprep.subr.mxu0 0.0
  %v1223 = vand.u32 %v987, 4294901760
  %v1224 = vsub.f32 %v987, %v1223
  %v1225 = vand.u32 %v1224, 4294901760
  %v1226 = vsub.f32 %v1224, %v1225
  %v1227 = vand.u32 %v1226, 4294901760
  %1228 = vmatpush1.msra.mxu0 %v1227
  %1229 = vmatprep.subr.mxu0 0.0
  %v1230 = vand.u32 %v988, 4294901760
  %v1231 = vsub.f32 %v988, %v1230
  %v1232 = vand.u32 %v1231, 4294901760
  %v1233 = vsub.f32 %v1231, %v1232
  %v1234 = vand.u32 %v1233, 4294901760
  %1235 = vmatpush1.msra.mxu0 %v1234
  %1236 = vmatprep.subr.mxu0 0.0
  %v1237 = vand.u32 %v989, 4294901760
  %v1238 = vsub.f32 %v989, %v1237
  %v1239 = vand.u32 %v1238, 4294901760
  %v1240 = vsub.f32 %v1238, %v1239
  %v1241 = vand.u32 %v1240, 4294901760
  %1242 = vmatpush1.msra.mxu0 %v1241
  %1243 = vmatprep.subr.mxu0 0.0
  %v1244 = vand.u32 %v990, 4294901760
  %v1245 = vsub.f32 %v990, %v1244
  %v1246 = vand.u32 %v1245, 4294901760
  %v1247 = vsub.f32 %v1245, %v1246
  %v1248 = vand.u32 %v1247, 4294901760
  %1249 = vmatpush1.msra.mxu0 %v1248
  %1250 = vmatprep.subr.mxu0 0.0
  %v1251 = vand.u32 %v991, 4294901760
  %v1252 = vsub.f32 %v991, %v1251
  %v1253 = vand.u32 %v1252, 4294901760
  %v1254 = vsub.f32 %v1252, %v1253
  %v1255 = vand.u32 %v1254, 4294901760
  %1256 = vmatpush1.msra.mxu0 %v1255
  %1257 = vmatprep.subr.mxu0 0.0
  %v1258 = vand.u32 %v992, 4294901760
  %v1259 = vsub.f32 %v992, %v1258
  %v1260 = vand.u32 %v1259, 4294901760
  %v1261 = vsub.f32 %v1259, %v1260
  %v1262 = vand.u32 %v1261, 4294901760
  %1263 = vmatpush1.msra.mxu0 %v1262
  %1264 = vmatprep.subr.mxu0 0.0
  %v1265 = vand.u32 %v993, 4294901760
  %v1266 = vsub.f32 %v993, %v1265
  %v1267 = vand.u32 %v1266, 4294901760
  %v1268 = vsub.f32 %v1266, %v1267
  %v1269 = vand.u32 %v1268, 4294901760
  %1270 = vmatpush1.msra.mxu0 %v1269
  %1271 = vmatprep.subr.mxu0 0.0
  %v1272 = vand.u32 %v994, 4294901760
  %v1273 = vsub.f32 %v994, %v1272
  %v1274 = vand.u32 %v1273, 4294901760
  %v1275 = vsub.f32 %v1273, %v1274
  %v1276 = vand.u32 %v1275, 4294901760
  %1277 = vmatpush1.msra.mxu0 %v1276
  %1278 = vmatprep.subr.mxu0 0.0
  %v1279 = vand.u32 %v995, 4294901760
  %v1280 = vsub.f32 %v995, %v1279
  %v1281 = vand.u32 %v1280, 4294901760
  %v1282 = vsub.f32 %v1280, %v1281
  %v1283 = vand.u32 %v1282, 4294901760
  %1284 = vmatpush1.msra.mxu0 %v1283
  %1285 = vmatprep.subr.mxu0 0.0
  %v1286 = vand.u32 %v996, 4294901760
  %v1287 = vsub.f32 %v996, %v1286
  %v1288 = vand.u32 %v1287, 4294901760
  %v1289 = vsub.f32 %v1287, %v1288
  %v1290 = vand.u32 %v1289, 4294901760
  %1291 = vmatpush1.msra.mxu0 %v1290
  %1292 = vmatprep.subr.mxu0 0.0
  %v1293 = vand.u32 %v997, 4294901760
  %v1294 = vsub.f32 %v997, %v1293
  %v1295 = vand.u32 %v1294, 4294901760
  %v1296 = vsub.f32 %v1294, %v1295
  %v1297 = vand.u32 %v1296, 4294901760
  %1298 = vmatpush1.msra.mxu0 %v1297
  %1299 = vmatprep.subr.mxu0 0.0
  %v1300 = vand.u32 %v998, 4294901760
  %v1301 = vsub.f32 %v998, %v1300
  %v1302 = vand.u32 %v1301, 4294901760
  %v1303 = vsub.f32 %v1301, %v1302
  %v1304 = vand.u32 %v1303, 4294901760
  %1305 = vmatpush1.msra.mxu0 %v1304
  %1306 = vmatprep.subr.mxu0 0.0
  %v1307 = vand.u32 %v999, 4294901760
  %v1308 = vsub.f32 %v999, %v1307
  %v1309 = vand.u32 %v1308, 4294901760
  %v1310 = vsub.f32 %v1308, %v1309
  %v1311 = vand.u32 %v1310, 4294901760
  %1312 = vmatpush1.msra.mxu0 %v1311
  %1313 = vmatprep.subr.mxu0 0.0
  %v1314 = vand.u32 %v1000, 4294901760
  %v1315 = vsub.f32 %v1000, %v1314
  %v1316 = vand.u32 %v1315, 4294901760
  %v1317 = vsub.f32 %v1315, %v1316
  %v1318 = vand.u32 %v1317, 4294901760
  %1319 = vmatpush1.msra.mxu0 %v1318
  %1320 = vmatprep.subr.mxu0 0.0
  %v1321 = vand.u32 %v1001, 4294901760
  %v1322 = vsub.f32 %v1001, %v1321
  %v1323 = vand.u32 %v1322, 4294901760
  %v1324 = vsub.f32 %v1322, %v1323
  %v1325 = vand.u32 %v1324, 4294901760
  %1326 = vmatpush1.msra.mxu0 %v1325
  %1327 = vmatprep.subr.mxu0 0.0
  %v1328 = vand.u32 %v1002, 4294901760
  %v1329 = vsub.f32 %v1002, %v1328
  %v1330 = vand.u32 %v1329, 4294901760
  %v1331 = vsub.f32 %v1329, %v1330
  %v1332 = vand.u32 %v1331, 4294901760
  %1333 = vmatpush1.msra.mxu0 %v1332
  %1334 = vmatprep.subr.mxu0 0.0
  %v1335 = vand.u32 %v1003, 4294901760
  %v1336 = vsub.f32 %v1003, %v1335
  %v1337 = vand.u32 %v1336, 4294901760
  %v1338 = vsub.f32 %v1336, %v1337
  %v1339 = vand.u32 %v1338, 4294901760
  %1340 = vmatpush1.msra.mxu0 %v1339
  %1341 = vmatprep.subr.mxu0 0.0
  %v1342 = vand.u32 %v1004, 4294901760
  %v1343 = vsub.f32 %v1004, %v1342
  %v1344 = vand.u32 %v1343, 4294901760
  %v1345 = vsub.f32 %v1343, %v1344
  %v1346 = vand.u32 %v1345, 4294901760
  %1347 = vmatpush1.msra.mxu0 %v1346
  %1348 = vmatprep.subr.mxu0 0.0
  %v1349 = vand.u32 %v1005, 4294901760
  %v1350 = vsub.f32 %v1005, %v1349
  %v1351 = vand.u32 %v1350, 4294901760
  %v1352 = vsub.f32 %v1350, %v1351
  %v1353 = vand.u32 %v1352, 4294901760
  %1354 = vmatpush1.msra.mxu0 %v1353
  %1355 = vmatprep.subr.mxu0 0.0
  %v1356 = vand.u32 %v1006, 4294901760
  %v1357 = vsub.f32 %v1006, %v1356
  %v1358 = vand.u32 %v1357, 4294901760
  %v1359 = vsub.f32 %v1357, %v1358
  %v1360 = vand.u32 %v1359, 4294901760
  %1361 = vmatpush1.msra.mxu0 %v1360
  %1362 = vmatprep.subr.mxu0 0.0
  %v1363 = vand.u32 %v1007, 4294901760
  %v1364 = vsub.f32 %v1007, %v1363
  %v1365 = vand.u32 %v1364, 4294901760
  %v1366 = vsub.f32 %v1364, %v1365
  %v1367 = vand.u32 %v1366, 4294901760
  %1368 = vmatpush1.msra.mxu0 %v1367
  %1369 = vmatprep.subr.mxu0 0.0
  %v1370 = vand.u32 %v1008, 4294901760
  %v1371 = vsub.f32 %v1008, %v1370
  %v1372 = vand.u32 %v1371, 4294901760
  %v1373 = vsub.f32 %v1371, %v1372
  %v1374 = vand.u32 %v1373, 4294901760
  %1375 = vmatpush1.msra.mxu0 %v1374
  %1376 = vmatprep.subr.mxu0 0.0
  %v1377 = vand.u32 %v1009, 4294901760
  %v1378 = vsub.f32 %v1009, %v1377
  %v1379 = vand.u32 %v1378, 4294901760
  %v1380 = vsub.f32 %v1378, %v1379
  %v1381 = vand.u32 %v1380, 4294901760
  %1382 = vmatpush1.msra.mxu0 %v1381
  %v1383 = vand.u32 %v975, 4294901760
  %1384 = vmatprep.mubr.f32.mxu0 %v1383
  %v1385 = vand.u32 %v974, 4294901760
  %1386 = vmatmul.mubr.f32.gmra.mrb[0].mxu0 %v1385
  %v1387 = vpop.f32.mrb[0].mxu0
  %v1388 = vadd.f32 %v1156, %v1387
  %v1389 = vpop.f32.mrb[0].mxu0
  %1390 = vdwg.mxu0
  %1391 = vmatprep.subr.mxu0 0.0
  %v1392 = vand.u32 %v978, 4294901760
  %v1393 = vsub.f32 %v978, %v1392
  %1394 = vmatpush1.msra.mxu0 %v1393
  %1395 = vmatprep.subr.mxu0 0.0
  %v1396 = vand.u32 %v979, 4294901760
  %v1397 = vsub.f32 %v979, %v1396
  %1398 = vmatpush1.msra.mxu0 %v1397
  %1399 = vmatprep.subr.mxu0 0.0
  %v1400 = vand.u32 %v980, 4294901760
  %v1401 = vsub.f32 %v980, %v1400
  %1402 = vmatpush1.msra.mxu0 %v1401
  %1403 = vmatprep.subr.mxu0 0.0
  %v1404 = vand.u32 %v981, 4294901760
  %v1405 = vsub.f32 %v981, %v1404
  %1406 = vmatpush1.msra.mxu0 %v1405
  %1407 = vmatprep.subr.mxu0 0.0
  %v1408 = vand.u32 %v982, 4294901760
  %v1409 = vsub.f32 %v982, %v1408
  %1410 = vmatpush1.msra.mxu0 %v1409
  %1411 = vmatprep.subr.mxu0 0.0
  %v1412 = vand.u32 %v983, 4294901760
  %v1413 = vsub.f32 %v983, %v1412
  %1414 = vmatpush1.msra.mxu0 %v1413
  %1415 = vmatprep.subr.mxu0 0.0
  %v1416 = vand.u32 %v984, 4294901760
  %v1417 = vsub.f32 %v984, %v1416
  %1418 = vmatpush1.msra.mxu0 %v1417
  %1419 = vmatprep.subr.mxu0 0.0
  %v1420 = vand.u32 %v985, 4294901760
  %v1421 = vsub.f32 %v985, %v1420
  %1422 = vmatpush1.msra.mxu0 %v1421
  %1423 = vmatprep.subr.mxu0 0.0
  %v1424 = vand.u32 %v986, 4294901760
  %v1425 = vsub.f32 %v986, %v1424
  %1426 = vmatpush1.msra.mxu0 %v1425
  %1427 = vmatprep.subr.mxu0 0.0
  %v1428 = vand.u32 %v987, 4294901760
  %v1429 = vsub.f32 %v987, %v1428
  %1430 = vmatpush1.msra.mxu0 %v1429
  %1431 = vmatprep.subr.mxu0 0.0
  %v1432 = vand.u32 %v988, 4294901760
  %v1433 = vsub.f32 %v988, %v1432
  %1434 = vmatpush1.msra.mxu0 %v1433
  %1435 = vmatprep.subr.mxu0 0.0
  %v1436 = vand.u32 %v989, 4294901760
  %v1437 = vsub.f32 %v989, %v1436
  %1438 = vmatpush1.msra.mxu0 %v1437
  %1439 = vmatprep.subr.mxu0 0.0
  %v1440 = vand.u32 %v990, 4294901760
  %v1441 = vsub.f32 %v990, %v1440
  %1442 = vmatpush1.msra.mxu0 %v1441
  %1443 = vmatprep.subr.mxu0 0.0
  %v1444 = vand.u32 %v991, 4294901760
  %v1445 = vsub.f32 %v991, %v1444
  %1446 = vmatpush1.msra.mxu0 %v1445
  %1447 = vmatprep.subr.mxu0 0.0
  %v1448 = vand.u32 %v992, 4294901760
  %v1449 = vsub.f32 %v992, %v1448
  %1450 = vmatpush1.msra.mxu0 %v1449
  %1451 = vmatprep.subr.mxu0 0.0
  %v1452 = vand.u32 %v993, 4294901760
  %v1453 = vsub.f32 %v993, %v1452
  %1454 = vmatpush1.msra.mxu0 %v1453
  %1455 = vmatprep.subr.mxu0 0.0
  %v1456 = vand.u32 %v994, 4294901760
  %v1457 = vsub.f32 %v994, %v1456
  %1458 = vmatpush1.msra.mxu0 %v1457
  %1459 = vmatprep.subr.mxu0 0.0
  %v1460 = vand.u32 %v995, 4294901760
  %v1461 = vsub.f32 %v995, %v1460
  %1462 = vmatpush1.msra.mxu0 %v1461
  %1463 = vmatprep.subr.mxu0 0.0
  %v1464 = vand.u32 %v996, 4294901760
  %v1465 = vsub.f32 %v996, %v1464
  %1466 = vmatpush1.msra.mxu0 %v1465
  %1467 = vmatprep.subr.mxu0 0.0
  %v1468 = vand.u32 %v997, 4294901760
  %v1469 = vsub.f32 %v997, %v1468
  %1470 = vmatpush1.msra.mxu0 %v1469
  %1471 = vmatprep.subr.mxu0 0.0
  %v1472 = vand.u32 %v998, 4294901760
  %v1473 = vsub.f32 %v998, %v1472
  %1474 = vmatpush1.msra.mxu0 %v1473
  %1475 = vmatprep.subr.mxu0 0.0
  %v1476 = vand.u32 %v999, 4294901760
  %v1477 = vsub.f32 %v999, %v1476
  %1478 = vmatpush1.msra.mxu0 %v1477
  %1479 = vmatprep.subr.mxu0 0.0
  %v1480 = vand.u32 %v1000, 4294901760
  %v1481 = vsub.f32 %v1000, %v1480
  %1482 = vmatpush1.msra.mxu0 %v1481
  %1483 = vmatprep.subr.mxu0 0.0
  %v1484 = vand.u32 %v1001, 4294901760
  %v1485 = vsub.f32 %v1001, %v1484
  %1486 = vmatpush1.msra.mxu0 %v1485
  %1487 = vmatprep.subr.mxu0 0.0
  %v1488 = vand.u32 %v1002, 4294901760
  %v1489 = vsub.f32 %v1002, %v1488
  %1490 = vmatpush1.msra.mxu0 %v1489
  %1491 = vmatprep.subr.mxu0 0.0
  %v1492 = vand.u32 %v1003, 4294901760
  %v1493 = vsub.f32 %v1003, %v1492
  %1494 = vmatpush1.msra.mxu0 %v1493
  %1495 = vmatprep.subr.mxu0 0.0
  %v1496 = vand.u32 %v1004, 4294901760
  %v1497 = vsub.f32 %v1004, %v1496
  %1498 = vmatpush1.msra.mxu0 %v1497
  %1499 = vmatprep.subr.mxu0 0.0
  %v1500 = vand.u32 %v1005, 4294901760
  %v1501 = vsub.f32 %v1005, %v1500
  %1502 = vmatpush1.msra.mxu0 %v1501
  %1503 = vmatprep.subr.mxu0 0.0
  %v1504 = vand.u32 %v1006, 4294901760
  %v1505 = vsub.f32 %v1006, %v1504
  %1506 = vmatpush1.msra.mxu0 %v1505
  %1507 = vmatprep.subr.mxu0 0.0
  %v1508 = vand.u32 %v1007, 4294901760
  %v1509 = vsub.f32 %v1007, %v1508
  %1510 = vmatpush1.msra.mxu0 %v1509
  %1511 = vmatprep.subr.mxu0 0.0
  %v1512 = vand.u32 %v1008, 4294901760
  %v1513 = vsub.f32 %v1008, %v1512
  %1514 = vmatpush1.msra.mxu0 %v1513
  %1515 = vmatprep.subr.mxu0 0.0
  %v1516 = vand.u32 %v1009, 4294901760
  %v1517 = vsub.f32 %v1009, %v1516
  %1518 = vmatpush1.msra.mxu0 %v1517
  %v1519 = vand.u32 %v975, 4294901760
  %v1520 = vsub.f32 %v975, %v1519
  %1521 = vmatprep.mubr.f32.mxu0 %v1520
  %v1522 = vand.u32 %v974, 4294901760
  %v1523 = vsub.f32 %v974, %v1522
  %1524 = vmatmul.mubr.f32.gmra.mrb[0].mxu0 %v1523
  %v1525 = vpop.f32.mrb[0].mxu0
  %v1526 = vadd.f32 %v1388, %v1525
  %v1527 = vpop.f32.mrb[0].mxu0
  %1528 = vdwg.mxu0
  %1529 = vmatprep.subr.mxu0 0.0
  %v1530 = vand.u32 %v978, 4294901760
  %1531 = vmatpush1.msra.mxu0 %v1530
  %1532 = vmatprep.subr.mxu0 0.0
  %v1533 = vand.u32 %v979, 4294901760
  %1534 = vmatpush1.msra.mxu0 %v1533
  %1535 = vmatprep.subr.mxu0 0.0
  %v1536 = vand.u32 %v980, 4294901760
  %1537 = vmatpush1.msra.mxu0 %v1536
  %1538 = vmatprep.subr.mxu0 0.0
  %v1539 = vand.u32 %v981, 4294901760
  %1540 = vmatpush1.msra.mxu0 %v1539
  %1541 = vmatprep.subr.mxu0 0.0
  %v1542 = vand.u32 %v982, 4294901760
  %1543 = vmatpush1.msra.mxu0 %v1542
  %1544 = vmatprep.subr.mxu0 0.0
  %v1545 = vand.u32 %v983, 4294901760
  %1546 = vmatpush1.msra.mxu0 %v1545
  %1547 = vmatprep.subr.mxu0 0.0
  %v1548 = vand.u32 %v984, 4294901760
  %1549 = vmatpush1.msra.mxu0 %v1548
  %1550 = vmatprep.subr.mxu0 0.0
  %v1551 = vand.u32 %v985, 4294901760
  %1552 = vmatpush1.msra.mxu0 %v1551
  %1553 = vmatprep.subr.mxu0 0.0
  %v1554 = vand.u32 %v986, 4294901760
  %1555 = vmatpush1.msra.mxu0 %v1554
  %1556 = vmatprep.subr.mxu0 0.0
  %v1557 = vand.u32 %v987, 4294901760
  %1558 = vmatpush1.msra.mxu0 %v1557
  %1559 = vmatprep.subr.mxu0 0.0
  %v1560 = vand.u32 %v988, 4294901760
  %1561 = vmatpush1.msra.mxu0 %v1560
  %1562 = vmatprep.subr.mxu0 0.0
  %v1563 = vand.u32 %v989, 4294901760
  %1564 = vmatpush1.msra.mxu0 %v1563
  %1565 = vmatprep.subr.mxu0 0.0
  %v1566 = vand.u32 %v990, 4294901760
  %1567 = vmatpush1.msra.mxu0 %v1566
  %1568 = vmatprep.subr.mxu0 0.0
  %v1569 = vand.u32 %v991, 4294901760
  %1570 = vmatpush1.msra.mxu0 %v1569
  %1571 = vmatprep.subr.mxu0 0.0
  %v1572 = vand.u32 %v992, 4294901760
  %1573 = vmatpush1.msra.mxu0 %v1572
  %1574 = vmatprep.subr.mxu0 0.0
  %v1575 = vand.u32 %v993, 4294901760
  %1576 = vmatpush1.msra.mxu0 %v1575
  %1577 = vmatprep.subr.mxu0 0.0
  %v1578 = vand.u32 %v994, 4294901760
  %1579 = vmatpush1.msra.mxu0 %v1578
  %1580 = vmatprep.subr.mxu0 0.0
  %v1581 = vand.u32 %v995, 4294901760
  %1582 = vmatpush1.msra.mxu0 %v1581
  %1583 = vmatprep.subr.mxu0 0.0
  %v1584 = vand.u32 %v996, 4294901760
  %1585 = vmatpush1.msra.mxu0 %v1584
  %1586 = vmatprep.subr.mxu0 0.0
  %v1587 = vand.u32 %v997, 4294901760
  %1588 = vmatpush1.msra.mxu0 %v1587
  %1589 = vmatprep.subr.mxu0 0.0
  %v1590 = vand.u32 %v998, 4294901760
  %1591 = vmatpush1.msra.mxu0 %v1590
  %1592 = vmatprep.subr.mxu0 0.0
  %v1593 = vand.u32 %v999, 4294901760
  %1594 = vmatpush1.msra.mxu0 %v1593
  %1595 = vmatprep.subr.mxu0 0.0
  %v1596 = vand.u32 %v1000, 4294901760
  %1597 = vmatpush1.msra.mxu0 %v1596
  %1598 = vmatprep.subr.mxu0 0.0
  %v1599 = vand.u32 %v1001, 4294901760
  %1600 = vmatpush1.msra.mxu0 %v1599
  %1601 = vmatprep.subr.mxu0 0.0
  %v1602 = vand.u32 %v1002, 4294901760
  %1603 = vmatpush1.msra.mxu0 %v1602
  %1604 = vmatprep.subr.mxu0 0.0
  %v1605 = vand.u32 %v1003, 4294901760
  %1606 = vmatpush1.msra.mxu0 %v1605
  %1607 = vmatprep.subr.mxu0 0.0
  %v1608 = vand.u32 %v1004, 4294901760
  %1609 = vmatpush1.msra.mxu0 %v1608
  %1610 = vmatprep.subr.mxu0 0.0
  %v1611 = vand.u32 %v1005, 4294901760
  %1612 = vmatpush1.msra.mxu0 %v1611
  %1613 = vmatprep.subr.mxu0 0.0
  %v1614 = vand.u32 %v1006, 4294901760
  %1615 = vmatpush1.msra.mxu0 %v1614
  %1616 = vmatprep.subr.mxu0 0.0
  %v1617 = vand.u32 %v1007, 4294901760
  %1618 = vmatpush1.msra.mxu0 %v1617
  %1619 = vmatprep.subr.mxu0 0.0
  %v1620 = vand.u32 %v1008, 4294901760
  %1621 = vmatpush1.msra.mxu0 %v1620
  %1622 = vmatprep.subr.mxu0 0.0
  %v1623 = vand.u32 %v1009, 4294901760
  %1624 = vmatpush1.msra.mxu0 %v1623
  %v1625 = vand.u32 %v975, 4294901760
  %v1626 = vsub.f32 %v975, %v1625
  %v1627 = vand.u32 %v1626, 4294901760
  %1628 = vmatprep.mubr.f32.mxu0 %v1627
  %v1629 = vand.u32 %v974, 4294901760
  %v1630 = vsub.f32 %v974, %v1629
  %v1631 = vand.u32 %v1630, 4294901760
  %1632 = vmatmul.mubr.f32.gmra.mrb[0].mxu0 %v1631
  %v1633 = vpop.f32.mrb[0].mxu0
  %v1634 = vadd.f32 %v1526, %v1633
  %v1635 = vpop.f32.mrb[0].mxu0
  %1636 = vdwg.mxu0
  %1637 = vmatprep.subr.mxu0 0.0
  %v1638 = vand.u32 %v978, 4294901760
  %v1639 = vsub.f32 %v978, %v1638
  %v1640 = vand.u32 %v1639, 4294901760
  %1641 = vmatpush1.msra.mxu0 %v1640
  %1642 = vmatprep.subr.mxu0 0.0
  %v1643 = vand.u32 %v979, 4294901760
  %v1644 = vsub.f32 %v979, %v1643
  %v1645 = vand.u32 %v1644, 4294901760
  %1646 = vmatpush1.msra.mxu0 %v1645
  %1647 = vmatprep.subr.mxu0 0.0
  %v1648 = vand.u32 %v980, 4294901760
  %v1649 = vsub.f32 %v980, %v1648
  %v1650 = vand.u32 %v1649, 4294901760
  %1651 = vmatpush1.msra.mxu0 %v1650
  %1652 = vmatprep.subr.mxu0 0.0
  %v1653 = vand.u32 %v981, 4294901760
  %v1654 = vsub.f32 %v981, %v1653
  %v1655 = vand.u32 %v1654, 4294901760
  %1656 = vmatpush1.msra.mxu0 %v1655
  %1657 = vmatprep.subr.mxu0 0.0
  %v1658 = vand.u32 %v982, 4294901760
  %v1659 = vsub.f32 %v982, %v1658
  %v1660 = vand.u32 %v1659, 4294901760
  %1661 = vmatpush1.msra.mxu0 %v1660
  %1662 = vmatprep.subr.mxu0 0.0
  %v1663 = vand.u32 %v983, 4294901760
  %v1664 = vsub.f32 %v983, %v1663
  %v1665 = vand.u32 %v1664, 4294901760
  %1666 = vmatpush1.msra.mxu0 %v1665
  %1667 = vmatprep.subr.mxu0 0.0
  %v1668 = vand.u32 %v984, 4294901760
  %v1669 = vsub.f32 %v984, %v1668
  %v1670 = vand.u32 %v1669, 4294901760
  %1671 = vmatpush1.msra.mxu0 %v1670
  %1672 = vmatprep.subr.mxu0 0.0
  %v1673 = vand.u32 %v985, 4294901760
  %v1674 = vsub.f32 %v985, %v1673
  %v1675 = vand.u32 %v1674, 4294901760
  %1676 = vmatpush1.msra.mxu0 %v1675
  %1677 = vmatprep.subr.mxu0 0.0
  %v1678 = vand.u32 %v986, 4294901760
  %v1679 = vsub.f32 %v986, %v1678
  %v1680 = vand.u32 %v1679, 4294901760
  %1681 = vmatpush1.msra.mxu0 %v1680
  %1682 = vmatprep.subr.mxu0 0.0
  %v1683 = vand.u32 %v987, 4294901760
  %v1684 = vsub.f32 %v987, %v1683
  %v1685 = vand.u32 %v1684, 4294901760
  %1686 = vmatpush1.msra.mxu0 %v1685
  %1687 = vmatprep.subr.mxu0 0.0
  %v1688 = vand.u32 %v988, 4294901760
  %v1689 = vsub.f32 %v988, %v1688
  %v1690 = vand.u32 %v1689, 4294901760
  %1691 = vmatpush1.msra.mxu0 %v1690
  %1692 = vmatprep.subr.mxu0 0.0
  %v1693 = vand.u32 %v989, 4294901760
  %v1694 = vsub.f32 %v989, %v1693
  %v1695 = vand.u32 %v1694, 4294901760
  %1696 = vmatpush1.msra.mxu0 %v1695
  %1697 = vmatprep.subr.mxu0 0.0
  %v1698 = vand.u32 %v990, 4294901760
  %v1699 = vsub.f32 %v990, %v1698
  %v1700 = vand.u32 %v1699, 4294901760
  %1701 = vmatpush1.msra.mxu0 %v1700
  %1702 = vmatprep.subr.mxu0 0.0
  %v1703 = vand.u32 %v991, 4294901760
  %v1704 = vsub.f32 %v991, %v1703
  %v1705 = vand.u32 %v1704, 4294901760
  %1706 = vmatpush1.msra.mxu0 %v1705
  %1707 = vmatprep.subr.mxu0 0.0
  %v1708 = vand.u32 %v992, 4294901760
  %v1709 = vsub.f32 %v992, %v1708
  %v1710 = vand.u32 %v1709, 4294901760
  %1711 = vmatpush1.msra.mxu0 %v1710
  %1712 = vmatprep.subr.mxu0 0.0
  %v1713 = vand.u32 %v993, 4294901760
  %v1714 = vsub.f32 %v993, %v1713
  %v1715 = vand.u32 %v1714, 4294901760
  %1716 = vmatpush1.msra.mxu0 %v1715
  %1717 = vmatprep.subr.mxu0 0.0
  %v1718 = vand.u32 %v994, 4294901760
  %v1719 = vsub.f32 %v994, %v1718
  %v1720 = vand.u32 %v1719, 4294901760
  %1721 = vmatpush1.msra.mxu0 %v1720
  %1722 = vmatprep.subr.mxu0 0.0
  %v1723 = vand.u32 %v995, 4294901760
  %v1724 = vsub.f32 %v995, %v1723
  %v1725 = vand.u32 %v1724, 4294901760
  %1726 = vmatpush1.msra.mxu0 %v1725
  %1727 = vmatprep.subr.mxu0 0.0
  %v1728 = vand.u32 %v996, 4294901760
  %v1729 = vsub.f32 %v996, %v1728
  %v1730 = vand.u32 %v1729, 4294901760
  %1731 = vmatpush1.msra.mxu0 %v1730
  %1732 = vmatprep.subr.mxu0 0.0
  %v1733 = vand.u32 %v997, 4294901760
  %v1734 = vsub.f32 %v997, %v1733
  %v1735 = vand.u32 %v1734, 4294901760
  %1736 = vmatpush1.msra.mxu0 %v1735
  %1737 = vmatprep.subr.mxu0 0.0
  %v1738 = vand.u32 %v998, 4294901760
  %v1739 = vsub.f32 %v998, %v1738
  %v1740 = vand.u32 %v1739, 4294901760
  %1741 = vmatpush1.msra.mxu0 %v1740
  %1742 = vmatprep.subr.mxu0 0.0
  %v1743 = vand.u32 %v999, 4294901760
  %v1744 = vsub.f32 %v999, %v1743
  %v1745 = vand.u32 %v1744, 4294901760
  %1746 = vmatpush1.msra.mxu0 %v1745
  %1747 = vmatprep.subr.mxu0 0.0
  %v1748 = vand.u32 %v1000, 4294901760
  %v1749 = vsub.f32 %v1000, %v1748
  %v1750 = vand.u32 %v1749, 4294901760
  %1751 = vmatpush1.msra.mxu0 %v1750
  %1752 = vmatprep.subr.mxu0 0.0
  %v1753 = vand.u32 %v1001, 4294901760
  %v1754 = vsub.f32 %v1001, %v1753
  %v1755 = vand.u32 %v1754, 4294901760
  %1756 = vmatpush1.msra.mxu0 %v1755
  %1757 = vmatprep.subr.mxu0 0.0
  %v1758 = vand.u32 %v1002, 4294901760
  %v1759 = vsub.f32 %v1002, %v1758
  %v1760 = vand.u32 %v1759, 4294901760
  %1761 = vmatpush1.msra.mxu0 %v1760
  %1762 = vmatprep.subr.mxu0 0.0
  %v1763 = vand.u32 %v1003, 4294901760
  %v1764 = vsub.f32 %v1003, %v1763
  %v1765 = vand.u32 %v1764, 4294901760
  %1766 = vmatpush1.msra.mxu0 %v1765
  %1767 = vmatprep.subr.mxu0 0.0
  %v1768 = vand.u32 %v1004, 4294901760
  %v1769 = vsub.f32 %v1004, %v1768
  %v1770 = vand.u32 %v1769, 4294901760
  %1771 = vmatpush1.msra.mxu0 %v1770
  %1772 = vmatprep.subr.mxu0 0.0
  %v1773 = vand.u32 %v1005, 4294901760
  %v1774 = vsub.f32 %v1005, %v1773
  %v1775 = vand.u32 %v1774, 4294901760
  %1776 = vmatpush1.msra.mxu0 %v1775
  %1777 = vmatprep.subr.mxu0 0.0
  %v1778 = vand.u32 %v1006, 4294901760
  %v1779 = vsub.f32 %v1006, %v1778
  %v1780 = vand.u32 %v1779, 4294901760
  %1781 = vmatpush1.msra.mxu0 %v1780
  %1782 = vmatprep.subr.mxu0 0.0
  %v1783 = vand.u32 %v1007, 4294901760
  %v1784 = vsub.f32 %v1007, %v1783
  %v1785 = vand.u32 %v1784, 4294901760
  %1786 = vmatpush1.msra.mxu0 %v1785
  %1787 = vmatprep.subr.mxu0 0.0
  %v1788 = vand.u32 %v1008, 4294901760
  %v1789 = vsub.f32 %v1008, %v1788
  %v1790 = vand.u32 %v1789, 4294901760
  %1791 = vmatpush1.msra.mxu0 %v1790
  %1792 = vmatprep.subr.mxu0 0.0
  %v1793 = vand.u32 %v1009, 4294901760
  %v1794 = vsub.f32 %v1009, %v1793
  %v1795 = vand.u32 %v1794, 4294901760
  %1796 = vmatpush1.msra.mxu0 %v1795
  %v1797 = vand.u32 %v975, 4294901760
  %1798 = vmatprep.mubr.f32.mxu0 %v1797
  %v1799 = vand.u32 %v974, 4294901760
  %1800 = vmatmul.mubr.f32.gmra.mrb[0].mxu0 %v1799
  %v1801 = vpop.f32.mrb[0].mxu0
  %v1802 = vadd.f32 %v1634, %v1801
  %v1803 = vpop.f32.mrb[0].mxu0
  %1804 = vdwg.mxu0
  %1805 = vmatprep.subr.mxu0 0.0
  %v1806 = vand.u32 %v978, 4294901760
  %1807 = vmatpush1.msra.mxu0 %v1806
  %1808 = vmatprep.subr.mxu0 0.0
  %v1809 = vand.u32 %v979, 4294901760
  %1810 = vmatpush1.msra.mxu0 %v1809
  %1811 = vmatprep.subr.mxu0 0.0
  %v1812 = vand.u32 %v980, 4294901760
  %1813 = vmatpush1.msra.mxu0 %v1812
  %1814 = vmatprep.subr.mxu0 0.0
  %v1815 = vand.u32 %v981, 4294901760
  %1816 = vmatpush1.msra.mxu0 %v1815
  %1817 = vmatprep.subr.mxu0 0.0
  %v1818 = vand.u32 %v982, 4294901760
  %1819 = vmatpush1.msra.mxu0 %v1818
  %1820 = vmatprep.subr.mxu0 0.0
  %v1821 = vand.u32 %v983, 4294901760
  %1822 = vmatpush1.msra.mxu0 %v1821
  %1823 = vmatprep.subr.mxu0 0.0
  %v1824 = vand.u32 %v984, 4294901760
  %1825 = vmatpush1.msra.mxu0 %v1824
  %1826 = vmatprep.subr.mxu0 0.0
  %v1827 = vand.u32 %v985, 4294901760
  %1828 = vmatpush1.msra.mxu0 %v1827
  %1829 = vmatprep.subr.mxu0 0.0
  %v1830 = vand.u32 %v986, 4294901760
  %1831 = vmatpush1.msra.mxu0 %v1830
  %1832 = vmatprep.subr.mxu0 0.0
  %v1833 = vand.u32 %v987, 4294901760
  %1834 = vmatpush1.msra.mxu0 %v1833
  %1835 = vmatprep.subr.mxu0 0.0
  %v1836 = vand.u32 %v988, 4294901760
  %1837 = vmatpush1.msra.mxu0 %v1836
  %1838 = vmatprep.subr.mxu0 0.0
  %v1839 = vand.u32 %v989, 4294901760
  %1840 = vmatpush1.msra.mxu0 %v1839
  %1841 = vmatprep.subr.mxu0 0.0
  %v1842 = vand.u32 %v990, 4294901760
  %1843 = vmatpush1.msra.mxu0 %v1842
  %1844 = vmatprep.subr.mxu0 0.0
  %v1845 = vand.u32 %v991, 4294901760
  %1846 = vmatpush1.msra.mxu0 %v1845
  %1847 = vmatprep.subr.mxu0 0.0
  %v1848 = vand.u32 %v992, 4294901760
  %1849 = vmatpush1.msra.mxu0 %v1848
  %1850 = vmatprep.subr.mxu0 0.0
  %v1851 = vand.u32 %v993, 4294901760
  %1852 = vmatpush1.msra.mxu0 %v1851
  %1853 = vmatprep.subr.mxu0 0.0
  %v1854 = vand.u32 %v994, 4294901760
  %1855 = vmatpush1.msra.mxu0 %v1854
  %1856 = vmatprep.subr.mxu0 0.0
  %v1857 = vand.u32 %v995, 4294901760
  %1858 = vmatpush1.msra.mxu0 %v1857
  %1859 = vmatprep.subr.mxu0 0.0
  %v1860 = vand.u32 %v996, 4294901760
  %1861 = vmatpush1.msra.mxu0 %v1860
  %1862 = vmatprep.subr.mxu0 0.0
  %v1863 = vand.u32 %v997, 4294901760
  %1864 = vmatpush1.msra.mxu0 %v1863
  %1865 = vmatprep.subr.mxu0 0.0
  %v1866 = vand.u32 %v998, 4294901760
  %1867 = vmatpush1.msra.mxu0 %v1866
  %1868 = vmatprep.subr.mxu0 0.0
  %v1869 = vand.u32 %v999, 4294901760
  %1870 = vmatpush1.msra.mxu0 %v1869
  %1871 = vmatprep.subr.mxu0 0.0
  %v1872 = vand.u32 %v1000, 4294901760
  %1873 = vmatpush1.msra.mxu0 %v1872
  %1874 = vmatprep.subr.mxu0 0.0
  %v1875 = vand.u32 %v1001, 4294901760
  %1876 = vmatpush1.msra.mxu0 %v1875
  %1877 = vmatprep.subr.mxu0 0.0
  %v1878 = vand.u32 %v1002, 4294901760
  %1879 = vmatpush1.msra.mxu0 %v1878
  %1880 = vmatprep.subr.mxu0 0.0
  %v1881 = vand.u32 %v1003, 4294901760
  %1882 = vmatpush1.msra.mxu0 %v1881
  %1883 = vmatprep.subr.mxu0 0.0
  %v1884 = vand.u32 %v1004, 4294901760
  %1885 = vmatpush1.msra.mxu0 %v1884
  %1886 = vmatprep.subr.mxu0 0.0
  %v1887 = vand.u32 %v1005, 4294901760
  %1888 = vmatpush1.msra.mxu0 %v1887
  %1889 = vmatprep.subr.mxu0 0.0
  %v1890 = vand.u32 %v1006, 4294901760
  %1891 = vmatpush1.msra.mxu0 %v1890
  %1892 = vmatprep.subr.mxu0 0.0
  %v1893 = vand.u32 %v1007, 4294901760
  %1894 = vmatpush1.msra.mxu0 %v1893
  %1895 = vmatprep.subr.mxu0 0.0
  %v1896 = vand.u32 %v1008, 4294901760
  %1897 = vmatpush1.msra.mxu0 %v1896
  %1898 = vmatprep.subr.mxu0 0.0
  %v1899 = vand.u32 %v1009, 4294901760
  %1900 = vmatpush1.msra.mxu0 %v1899
  %v1901 = vand.u32 %v975, 4294901760
  %1902 = vmatprep.mubr.f32.mxu0 %v1901
  %v1903 = vand.u32 %v974, 4294901760
  %1904 = vmatmul.mubr.f32.gmra.mrb[0].mxu0 %v1903
  %v1905 = vpop.f32.mrb[0].mxu0
  %v1906 = vadd.f32 %v1802, %v1905
  %v1907 = vpop.f32.mrb[0].mxu0
  %1908 = vdwg.mxu0
  %1909 = vmatprep.subr.mxu0 0.0
  %v1910 = vand.u32 %v1010, 4294901760
  %1911 = vmatpush1.msra.mxu0 %v1910
  %1912 = vmatprep.subr.mxu0 0.0
  %v1913 = vand.u32 %v1011, 4294901760
  %1914 = vmatpush1.msra.mxu0 %v1913
  %1915 = vmatprep.subr.mxu0 0.0
  %v1916 = vand.u32 %v1012, 4294901760
  %1917 = vmatpush1.msra.mxu0 %v1916
  %1918 = vmatprep.subr.mxu0 0.0
  %v1919 = vand.u32 %v1013, 4294901760
  %1920 = vmatpush1.msra.mxu0 %v1919
  %1921 = vmatprep.subr.mxu0 0.0
  %v1922 = vand.u32 %v1014, 4294901760
  %1923 = vmatpush1.msra.mxu0 %v1922
  %1924 = vmatprep.subr.mxu0 0.0
  %v1925 = vand.u32 %v1015, 4294901760
  %1926 = vmatpush1.msra.mxu0 %v1925
  %1927 = vmatprep.subr.mxu0 0.0
  %v1928 = vand.u32 %v1016, 4294901760
  %1929 = vmatpush1.msra.mxu0 %v1928
  %1930 = vmatprep.subr.mxu0 0.0
  %v1931 = vand.u32 %v1017, 4294901760
  %1932 = vmatpush1.msra.mxu0 %v1931
  %1933 = vmatprep.subr.mxu0 0.0
  %v1934 = vand.u32 %v1018, 4294901760
  %1935 = vmatpush1.msra.mxu0 %v1934
  %1936 = vmatprep.subr.mxu0 0.0
  %v1937 = vand.u32 %v1019, 4294901760
  %1938 = vmatpush1.msra.mxu0 %v1937
  %1939 = vmatprep.subr.mxu0 0.0
  %v1940 = vand.u32 %v1020, 4294901760
  %1941 = vmatpush1.msra.mxu0 %v1940
  %1942 = vmatprep.subr.mxu0 0.0
  %v1943 = vand.u32 %v1021, 4294901760
  %1944 = vmatpush1.msra.mxu0 %v1943
  %1945 = vmatprep.subr.mxu0 0.0
  %v1946 = vand.u32 %v1022, 4294901760
  %1947 = vmatpush1.msra.mxu0 %v1946
  %1948 = vmatprep.subr.mxu0 0.0
  %v1949 = vand.u32 %v1023, 4294901760
  %1950 = vmatpush1.msra.mxu0 %v1949
  %1951 = vmatprep.subr.mxu0 0.0
  %v1952 = vand.u32 %v1024, 4294901760
  %1953 = vmatpush1.msra.mxu0 %v1952
  %1954 = vmatprep.subr.mxu0 0.0
  %v1955 = vand.u32 %v1025, 4294901760
  %1956 = vmatpush1.msra.mxu0 %v1955
  %1957 = vmatprep.subr.mxu0 0.0
  %v1958 = vand.u32 %v1026, 4294901760
  %1959 = vmatpush1.msra.mxu0 %v1958
  %1960 = vmatprep.subr.mxu0 0.0
  %v1961 = vand.u32 %v1027, 4294901760
  %1962 = vmatpush1.msra.mxu0 %v1961
  %1963 = vmatprep.subr.mxu0 0.0
  %v1964 = vand.u32 %v1028, 4294901760
  %1965 = vmatpush1.msra.mxu0 %v1964
  %1966 = vmatprep.subr.mxu0 0.0
  %v1967 = vand.u32 %v1029, 4294901760
  %1968 = vmatpush1.msra.mxu0 %v1967
  %1969 = vmatprep.subr.mxu0 0.0
  %v1970 = vand.u32 %v1030, 4294901760
  %1971 = vmatpush1.msra.mxu0 %v1970
  %1972 = vmatprep.subr.mxu0 0.0
  %v1973 = vand.u32 %v1031, 4294901760
  %1974 = vmatpush1.msra.mxu0 %v1973
  %1975 = vmatprep.subr.mxu0 0.0
  %v1976 = vand.u32 %v1032, 4294901760
  %1977 = vmatpush1.msra.mxu0 %v1976
  %1978 = vmatprep.subr.mxu0 0.0
  %v1979 = vand.u32 %v1033, 4294901760
  %1980 = vmatpush1.msra.mxu0 %v1979
  %1981 = vmatprep.subr.mxu0 0.0
  %v1982 = vand.u32 %v1034, 4294901760
  %1983 = vmatpush1.msra.mxu0 %v1982
  %1984 = vmatprep.subr.mxu0 0.0
  %v1985 = vand.u32 %v1035, 4294901760
  %1986 = vmatpush1.msra.mxu0 %v1985
  %1987 = vmatprep.subr.mxu0 0.0
  %v1988 = vand.u32 %v1036, 4294901760
  %1989 = vmatpush1.msra.mxu0 %v1988
  %1990 = vmatprep.subr.mxu0 0.0
  %v1991 = vand.u32 %v1037, 4294901760
  %1992 = vmatpush1.msra.mxu0 %v1991
  %1993 = vmatprep.subr.mxu0 0.0
  %v1994 = vand.u32 %v1038, 4294901760
  %1995 = vmatpush1.msra.mxu0 %v1994
  %1996 = vmatprep.subr.mxu0 0.0
  %v1997 = vand.u32 %v1039, 4294901760
  %1998 = vmatpush1.msra.mxu0 %v1997
  %1999 = vmatprep.subr.mxu0 0.0
  %v2000 = vand.u32 %v1040, 4294901760
  %2001 = vmatpush1.msra.mxu0 %v2000
  %2002 = vmatprep.subr.mxu0 0.0
  %v2003 = vand.u32 %v1041, 4294901760
  %2004 = vmatpush1.msra.mxu0 %v2003
  %v2005 = vand.u32 %v977, 4294901760
  %v2006 = vsub.f32 %v977, %v2005
  %v2007 = vand.u32 %v2006, 4294901760
  %v2008 = vsub.f32 %v2006, %v2007
  %v2009 = vand.u32 %v2008, 4294901760
  %2010 = vmatprep.mubr.f32.mxu0 %v2009
  %v2011 = vand.u32 %v976, 4294901760
  %v2012 = vsub.f32 %v976, %v2011
  %v2013 = vand.u32 %v2012, 4294901760
  %v2014 = vsub.f32 %v2012, %v2013
  %v2015 = vand.u32 %v2014, 4294901760
  %2016 = vmatmul.mubr.f32.gmra.mrb[0].mxu0 %v2015
  %v2017 = vpop.f32.mrb[0].mxu0
  %v2018 = vadd.f32 %v1906, %v2017
  %v2019 = vpop.f32.mrb[0].mxu0
  %2020 = vdwg.mxu0
  %2021 = vmatprep.subr.mxu0 0.0
  %v2022 = vand.u32 %v1010, 4294901760
  %v2023 = vsub.f32 %v1010, %v2022
  %v2024 = vand.u32 %v2023, 4294901760
  %v2025 = vsub.f32 %v2023, %v2024
  %v2026 = vand.u32 %v2025, 4294901760
  %2027 = vmatpush1.msra.mxu0 %v2026
  %2028 = vmatprep.subr.mxu0 0.0
  %v2029 = vand.u32 %v1011, 4294901760
  %v2030 = vsub.f32 %v1011, %v2029
  %v2031 = vand.u32 %v2030, 4294901760
  %v2032 = vsub.f32 %v2030, %v2031
  %v2033 = vand.u32 %v2032, 4294901760
  %2034 = vmatpush1.msra.mxu0 %v2033
  %2035 = vmatprep.subr.mxu0 0.0
  %v2036 = vand.u32 %v1012, 4294901760
  %v2037 = vsub.f32 %v1012, %v2036
  %v2038 = vand.u32 %v2037, 4294901760
  %v2039 = vsub.f32 %v2037, %v2038
  %v2040 = vand.u32 %v2039, 4294901760
  %2041 = vmatpush1.msra.mxu0 %v2040
  %2042 = vmatprep.subr.mxu0 0.0
  %v2043 = vand.u32 %v1013, 4294901760
  %v2044 = vsub.f32 %v1013, %v2043
  %v2045 = vand.u32 %v2044, 4294901760
  %v2046 = vsub.f32 %v2044, %v2045
  %v2047 = vand.u32 %v2046, 4294901760
  %2048 = vmatpush1.msra.mxu0 %v2047
  %2049 = vmatprep.subr.mxu0 0.0
  %v2050 = vand.u32 %v1014, 4294901760
  %v2051 = vsub.f32 %v1014, %v2050
  %v2052 = vand.u32 %v2051, 4294901760
  %v2053 = vsub.f32 %v2051, %v2052
  %v2054 = vand.u32 %v2053, 4294901760
  %2055 = vmatpush1.msra.mxu0 %v2054
  %2056 = vmatprep.subr.mxu0 0.0
  %v2057 = vand.u32 %v1015, 4294901760
  %v2058 = vsub.f32 %v1015, %v2057
  %v2059 = vand.u32 %v2058, 4294901760
  %v2060 = vsub.f32 %v2058, %v2059
  %v2061 = vand.u32 %v2060, 4294901760
  %2062 = vmatpush1.msra.mxu0 %v2061
  %2063 = vmatprep.subr.mxu0 0.0
  %v2064 = vand.u32 %v1016, 4294901760
  %v2065 = vsub.f32 %v1016, %v2064
  %v2066 = vand.u32 %v2065, 4294901760
  %v2067 = vsub.f32 %v2065, %v2066
  %v2068 = vand.u32 %v2067, 4294901760
  %2069 = vmatpush1.msra.mxu0 %v2068
  %2070 = vmatprep.subr.mxu0 0.0
  %v2071 = vand.u32 %v1017, 4294901760
  %v2072 = vsub.f32 %v1017, %v2071
  %v2073 = vand.u32 %v2072, 4294901760
  %v2074 = vsub.f32 %v2072, %v2073
  %v2075 = vand.u32 %v2074, 4294901760
  %2076 = vmatpush1.msra.mxu0 %v2075
  %2077 = vmatprep.subr.mxu0 0.0
  %v2078 = vand.u32 %v1018, 4294901760
  %v2079 = vsub.f32 %v1018, %v2078
  %v2080 = vand.u32 %v2079, 4294901760
  %v2081 = vsub.f32 %v2079, %v2080
  %v2082 = vand.u32 %v2081, 4294901760
  %2083 = vmatpush1.msra.mxu0 %v2082
  %2084 = vmatprep.subr.mxu0 0.0
  %v2085 = vand.u32 %v1019, 4294901760
  %v2086 = vsub.f32 %v1019, %v2085
  %v2087 = vand.u32 %v2086, 4294901760
  %v2088 = vsub.f32 %v2086, %v2087
  %v2089 = vand.u32 %v2088, 4294901760
  %2090 = vmatpush1.msra.mxu0 %v2089
  %2091 = vmatprep.subr.mxu0 0.0
  %v2092 = vand.u32 %v1020, 4294901760
  %v2093 = vsub.f32 %v1020, %v2092
  %v2094 = vand.u32 %v2093, 4294901760
  %v2095 = vsub.f32 %v2093, %v2094
  %v2096 = vand.u32 %v2095, 4294901760
  %2097 = vmatpush1.msra.mxu0 %v2096
  %2098 = vmatprep.subr.mxu0 0.0
  %v2099 = vand.u32 %v1021, 4294901760
  %v2100 = vsub.f32 %v1021, %v2099
  %v2101 = vand.u32 %v2100, 4294901760
  %v2102 = vsub.f32 %v2100, %v2101
  %v2103 = vand.u32 %v2102, 4294901760
  %2104 = vmatpush1.msra.mxu0 %v2103
  %2105 = vmatprep.subr.mxu0 0.0
  %v2106 = vand.u32 %v1022, 4294901760
  %v2107 = vsub.f32 %v1022, %v2106
  %v2108 = vand.u32 %v2107, 4294901760
  %v2109 = vsub.f32 %v2107, %v2108
  %v2110 = vand.u32 %v2109, 4294901760
  %2111 = vmatpush1.msra.mxu0 %v2110
  %2112 = vmatprep.subr.mxu0 0.0
  %v2113 = vand.u32 %v1023, 4294901760
  %v2114 = vsub.f32 %v1023, %v2113
  %v2115 = vand.u32 %v2114, 4294901760
  %v2116 = vsub.f32 %v2114, %v2115
  %v2117 = vand.u32 %v2116, 4294901760
  %2118 = vmatpush1.msra.mxu0 %v2117
  %2119 = vmatprep.subr.mxu0 0.0
  %v2120 = vand.u32 %v1024, 4294901760
  %v2121 = vsub.f32 %v1024, %v2120
  %v2122 = vand.u32 %v2121, 4294901760
  %v2123 = vsub.f32 %v2121, %v2122
  %v2124 = vand.u32 %v2123, 4294901760
  %2125 = vmatpush1.msra.mxu0 %v2124
  %2126 = vmatprep.subr.mxu0 0.0
  %v2127 = vand.u32 %v1025, 4294901760
  %v2128 = vsub.f32 %v1025, %v2127
  %v2129 = vand.u32 %v2128, 4294901760
  %v2130 = vsub.f32 %v2128, %v2129
  %v2131 = vand.u32 %v2130, 4294901760
  %2132 = vmatpush1.msra.mxu0 %v2131
  %2133 = vmatprep.subr.mxu0 0.0
  %v2134 = vand.u32 %v1026, 4294901760
  %v2135 = vsub.f32 %v1026, %v2134
  %v2136 = vand.u32 %v2135, 4294901760
  %v2137 = vsub.f32 %v2135, %v2136
  %v2138 = vand.u32 %v2137, 4294901760
  %2139 = vmatpush1.msra.mxu0 %v2138
  %2140 = vmatprep.subr.mxu0 0.0
  %v2141 = vand.u32 %v1027, 4294901760
  %v2142 = vsub.f32 %v1027, %v2141
  %v2143 = vand.u32 %v2142, 4294901760
  %v2144 = vsub.f32 %v2142, %v2143
  %v2145 = vand.u32 %v2144, 4294901760
  %2146 = vmatpush1.msra.mxu0 %v2145
  %2147 = vmatprep.subr.mxu0 0.0
  %v2148 = vand.u32 %v1028, 4294901760
  %v2149 = vsub.f32 %v1028, %v2148
  %v2150 = vand.u32 %v2149, 4294901760
  %v2151 = vsub.f32 %v2149, %v2150
  %v2152 = vand.u32 %v2151, 4294901760
  %2153 = vmatpush1.msra.mxu0 %v2152
  %2154 = vmatprep.subr.mxu0 0.0
  %v2155 = vand.u32 %v1029, 4294901760
  %v2156 = vsub.f32 %v1029, %v2155
  %v2157 = vand.u32 %v2156, 4294901760
  %v2158 = vsub.f32 %v2156, %v2157
  %v2159 = vand.u32 %v2158, 4294901760
  %2160 = vmatpush1.msra.mxu0 %v2159
  %2161 = vmatprep.subr.mxu0 0.0
  %v2162 = vand.u32 %v1030, 4294901760
  %v2163 = vsub.f32 %v1030, %v2162
  %v2164 = vand.u32 %v2163, 4294901760
  %v2165 = vsub.f32 %v2163, %v2164
  %v2166 = vand.u32 %v2165, 4294901760
  %2167 = vmatpush1.msra.mxu0 %v2166
  %2168 = vmatprep.subr.mxu0 0.0
  %v2169 = vand.u32 %v1031, 4294901760
  %v2170 = vsub.f32 %v1031, %v2169
  %v2171 = vand.u32 %v2170, 4294901760
  %v2172 = vsub.f32 %v2170, %v2171
  %v2173 = vand.u32 %v2172, 4294901760
  %2174 = vmatpush1.msra.mxu0 %v2173
  %2175 = vmatprep.subr.mxu0 0.0
  %v2176 = vand.u32 %v1032, 4294901760
  %v2177 = vsub.f32 %v1032, %v2176
  %v2178 = vand.u32 %v2177, 4294901760
  %v2179 = vsub.f32 %v2177, %v2178
  %v2180 = vand.u32 %v2179, 4294901760
  %2181 = vmatpush1.msra.mxu0 %v2180
  %2182 = vmatprep.subr.mxu0 0.0
  %v2183 = vand.u32 %v1033, 4294901760
  %v2184 = vsub.f32 %v1033, %v2183
  %v2185 = vand.u32 %v2184, 4294901760
  %v2186 = vsub.f32 %v2184, %v2185
  %v2187 = vand.u32 %v2186, 4294901760
  %2188 = vmatpush1.msra.mxu0 %v2187
  %2189 = vmatprep.subr.mxu0 0.0
  %v2190 = vand.u32 %v1034, 4294901760
  %v2191 = vsub.f32 %v1034, %v2190
  %v2192 = vand.u32 %v2191, 4294901760
  %v2193 = vsub.f32 %v2191, %v2192
  %v2194 = vand.u32 %v2193, 4294901760
  %2195 = vmatpush1.msra.mxu0 %v2194
  %2196 = vmatprep.subr.mxu0 0.0
  %v2197 = vand.u32 %v1035, 4294901760
  %v2198 = vsub.f32 %v1035, %v2197
  %v2199 = vand.u32 %v2198, 4294901760
  %v2200 = vsub.f32 %v2198, %v2199
  %v2201 = vand.u32 %v2200, 4294901760
  %2202 = vmatpush1.msra.mxu0 %v2201
  %2203 = vmatprep.subr.mxu0 0.0
  %v2204 = vand.u32 %v1036, 4294901760
  %v2205 = vsub.f32 %v1036, %v2204
  %v2206 = vand.u32 %v2205, 4294901760
  %v2207 = vsub.f32 %v2205, %v2206
  %v2208 = vand.u32 %v2207, 4294901760
  %2209 = vmatpush1.msra.mxu0 %v2208
  %2210 = vmatprep.subr.mxu0 0.0
  %v2211 = vand.u32 %v1037, 4294901760
  %v2212 = vsub.f32 %v1037, %v2211
  %v2213 = vand.u32 %v2212, 4294901760
  %v2214 = vsub.f32 %v2212, %v2213
  %v2215 = vand.u32 %v2214, 4294901760
  %2216 = vmatpush1.msra.mxu0 %v2215
  %2217 = vmatprep.subr.mxu0 0.0
  %v2218 = vand.u32 %v1038, 4294901760
  %v2219 = vsub.f32 %v1038, %v2218
  %v2220 = vand.u32 %v2219, 4294901760
  %v2221 = vsub.f32 %v2219, %v2220
  %v2222 = vand.u32 %v2221, 4294901760
  %2223 = vmatpush1.msra.mxu0 %v2222
  %2224 = vmatprep.subr.mxu0 0.0
  %v2225 = vand.u32 %v1039, 4294901760
  %v2226 = vsub.f32 %v1039, %v2225
  %v2227 = vand.u32 %v2226, 4294901760
  %v2228 = vsub.f32 %v2226, %v2227
  %v2229 = vand.u32 %v2228, 4294901760
  %2230 = vmatpush1.msra.mxu0 %v2229
  %2231 = vmatprep.subr.mxu0 0.0
  %v2232 = vand.u32 %v1040, 4294901760
  %v2233 = vsub.f32 %v1040, %v2232
  %v2234 = vand.u32 %v2233, 4294901760
  %v2235 = vsub.f32 %v2233, %v2234
  %v2236 = vand.u32 %v2235, 4294901760
  %2237 = vmatpush1.msra.mxu0 %v2236
  %2238 = vmatprep.subr.mxu0 0.0
  %v2239 = vand.u32 %v1041, 4294901760
  %v2240 = vsub.f32 %v1041, %v2239
  %v2241 = vand.u32 %v2240, 4294901760
  %v2242 = vsub.f32 %v2240, %v2241
  %v2243 = vand.u32 %v2242, 4294901760
  %2244 = vmatpush1.msra.mxu0 %v2243
  %v2245 = vand.u32 %v977, 4294901760
  %2246 = vmatprep.mubr.f32.mxu0 %v2245
  %v2247 = vand.u32 %v976, 4294901760
  %2248 = vmatmul.mubr.f32.gmra.mrb[0].mxu0 %v2247
  %v2249 = vpop.f32.mrb[0].mxu0
  %v2250 = vadd.f32 %v2018, %v2249
  %v2251 = vpop.f32.mrb[0].mxu0
  %2252 = vdwg.mxu0
  %2253 = vmatprep.subr.mxu0 0.0
  %v2254 = vand.u32 %v1010, 4294901760
  %v2255 = vsub.f32 %v1010, %v2254
  %2256 = vmatpush1.msra.mxu0 %v2255
  %2257 = vmatprep.subr.mxu0 0.0
  %v2258 = vand.u32 %v1011, 4294901760
  %v2259 = vsub.f32 %v1011, %v2258
  %2260 = vmatpush1.msra.mxu0 %v2259
  %2261 = vmatprep.subr.mxu0 0.0
  %v2262 = vand.u32 %v1012, 4294901760
  %v2263 = vsub.f32 %v1012, %v2262
  %2264 = vmatpush1.msra.mxu0 %v2263
  %2265 = vmatprep.subr.mxu0 0.0
  %v2266 = vand.u32 %v1013, 4294901760
  %v2267 = vsub.f32 %v1013, %v2266
  %2268 = vmatpush1.msra.mxu0 %v2267
  %2269 = vmatprep.subr.mxu0 0.0
  %v2270 = vand.u32 %v1014, 4294901760
  %v2271 = vsub.f32 %v1014, %v2270
  %2272 = vmatpush1.msra.mxu0 %v2271
  %2273 = vmatprep.subr.mxu0 0.0
  %v2274 = vand.u32 %v1015, 4294901760
  %v2275 = vsub.f32 %v1015, %v2274
  %2276 = vmatpush1.msra.mxu0 %v2275
  %2277 = vmatprep.subr.mxu0 0.0
  %v2278 = vand.u32 %v1016, 4294901760
  %v2279 = vsub.f32 %v1016, %v2278
  %2280 = vmatpush1.msra.mxu0 %v2279
  %2281 = vmatprep.subr.mxu0 0.0
  %v2282 = vand.u32 %v1017, 4294901760
  %v2283 = vsub.f32 %v1017, %v2282
  %2284 = vmatpush1.msra.mxu0 %v2283
  %2285 = vmatprep.subr.mxu0 0.0
  %v2286 = vand.u32 %v1018, 4294901760
  %v2287 = vsub.f32 %v1018, %v2286
  %2288 = vmatpush1.msra.mxu0 %v2287
  %2289 = vmatprep.subr.mxu0 0.0
  %v2290 = vand.u32 %v1019, 4294901760
  %v2291 = vsub.f32 %v1019, %v2290
  %2292 = vmatpush1.msra.mxu0 %v2291
  %2293 = vmatprep.subr.mxu0 0.0
  %v2294 = vand.u32 %v1020, 4294901760
  %v2295 = vsub.f32 %v1020, %v2294
  %2296 = vmatpush1.msra.mxu0 %v2295
  %2297 = vmatprep.subr.mxu0 0.0
  %v2298 = vand.u32 %v1021, 4294901760
  %v2299 = vsub.f32 %v1021, %v2298
  %2300 = vmatpush1.msra.mxu0 %v2299
  %2301 = vmatprep.subr.mxu0 0.0
  %v2302 = vand.u32 %v1022, 4294901760
  %v2303 = vsub.f32 %v1022, %v2302
  %2304 = vmatpush1.msra.mxu0 %v2303
  %2305 = vmatprep.subr.mxu0 0.0
  %v2306 = vand.u32 %v1023, 4294901760
  %v2307 = vsub.f32 %v1023, %v2306
  %2308 = vmatpush1.msra.mxu0 %v2307
  %2309 = vmatprep.subr.mxu0 0.0
  %v2310 = vand.u32 %v1024, 4294901760
  %v2311 = vsub.f32 %v1024, %v2310
  %2312 = vmatpush1.msra.mxu0 %v2311
  %2313 = vmatprep.subr.mxu0 0.0
  %v2314 = vand.u32 %v1025, 4294901760
  %v2315 = vsub.f32 %v1025, %v2314
  %2316 = vmatpush1.msra.mxu0 %v2315
  %2317 = vmatprep.subr.mxu0 0.0
  %v2318 = vand.u32 %v1026, 4294901760
  %v2319 = vsub.f32 %v1026, %v2318
  %2320 = vmatpush1.msra.mxu0 %v2319
  %2321 = vmatprep.subr.mxu0 0.0
  %v2322 = vand.u32 %v1027, 4294901760
  %v2323 = vsub.f32 %v1027, %v2322
  %2324 = vmatpush1.msra.mxu0 %v2323
  %2325 = vmatprep.subr.mxu0 0.0
  %v2326 = vand.u32 %v1028, 4294901760
  %v2327 = vsub.f32 %v1028, %v2326
  %2328 = vmatpush1.msra.mxu0 %v2327
  %2329 = vmatprep.subr.mxu0 0.0
  %v2330 = vand.u32 %v1029, 4294901760
  %v2331 = vsub.f32 %v1029, %v2330
  %2332 = vmatpush1.msra.mxu0 %v2331
  %2333 = vmatprep.subr.mxu0 0.0
  %v2334 = vand.u32 %v1030, 4294901760
  %v2335 = vsub.f32 %v1030, %v2334
  %2336 = vmatpush1.msra.mxu0 %v2335
  %2337 = vmatprep.subr.mxu0 0.0
  %v2338 = vand.u32 %v1031, 4294901760
  %v2339 = vsub.f32 %v1031, %v2338
  %2340 = vmatpush1.msra.mxu0 %v2339
  %2341 = vmatprep.subr.mxu0 0.0
  %v2342 = vand.u32 %v1032, 4294901760
  %v2343 = vsub.f32 %v1032, %v2342
  %2344 = vmatpush1.msra.mxu0 %v2343
  %2345 = vmatprep.subr.mxu0 0.0
  %v2346 = vand.u32 %v1033, 4294901760
  %v2347 = vsub.f32 %v1033, %v2346
  %2348 = vmatpush1.msra.mxu0 %v2347
  %2349 = vmatprep.subr.mxu0 0.0
  %v2350 = vand.u32 %v1034, 4294901760
  %v2351 = vsub.f32 %v1034, %v2350
  %2352 = vmatpush1.msra.mxu0 %v2351
  %2353 = vmatprep.subr.mxu0 0.0
  %v2354 = vand.u32 %v1035, 4294901760
  %v2355 = vsub.f32 %v1035, %v2354
  %2356 = vmatpush1.msra.mxu0 %v2355
  %2357 = vmatprep.subr.mxu0 0.0
  %v2358 = vand.u32 %v1036, 4294901760
  %v2359 = vsub.f32 %v1036, %v2358
  %2360 = vmatpush1.msra.mxu0 %v2359
  %2361 = vmatprep.subr.mxu0 0.0
  %v2362 = vand.u32 %v1037, 4294901760
  %v2363 = vsub.f32 %v1037, %v2362
  %2364 = vmatpush1.msra.mxu0 %v2363
  %2365 = vmatprep.subr.mxu0 0.0
  %v2366 = vand.u32 %v1038, 4294901760
  %v2367 = vsub.f32 %v1038, %v2366
  %2368 = vmatpush1.msra.mxu0 %v2367
  %2369 = vmatprep.subr.mxu0 0.0
  %v2370 = vand.u32 %v1039, 4294901760
  %v2371 = vsub.f32 %v1039, %v2370
  %2372 = vmatpush1.msra.mxu0 %v2371
  %2373 = vmatprep.subr.mxu0 0.0
  %v2374 = vand.u32 %v1040, 4294901760
  %v2375 = vsub.f32 %v1040, %v2374
  %2376 = vmatpush1.msra.mxu0 %v2375
  %2377 = vmatprep.subr.mxu0 0.0
  %v2378 = vand.u32 %v1041, 4294901760
  %v2379 = vsub.f32 %v1041, %v2378
  %2380 = vmatpush1.msra.mxu0 %v2379
  %v2381 = vand.u32 %v977, 4294901760
  %v2382 = vsub.f32 %v977, %v2381
  %2383 = vmatprep.mubr.f32.mxu0 %v2382
  %v2384 = vand.u32 %v976, 4294901760
  %v2385 = vsub.f32 %v976, %v2384
  %2386 = vmatmul.mubr.f32.gmra.mrb[0].mxu0 %v2385
  %v2387 = vpop.f32.mrb[0].mxu0
  %v2388 = vadd.f32 %v2250, %v2387
  %v2389 = vpop.f32.mrb[0].mxu0
  %2390 = vdwg.mxu0
  %2391 = vmatprep.subr.mxu0 0.0
  %v2392 = vand.u32 %v1010, 4294901760
  %2393 = vmatpush1.msra.mxu0 %v2392
  %2394 = vmatprep.subr.mxu0 0.0
  %v2395 = vand.u32 %v1011, 4294901760
  %2396 = vmatpush1.msra.mxu0 %v2395
  %2397 = vmatprep.subr.mxu0 0.0
  %v2398 = vand.u32 %v1012, 4294901760
  %2399 = vmatpush1.msra.mxu0 %v2398
  %2400 = vmatprep.subr.mxu0 0.0
  %v2401 = vand.u32 %v1013, 4294901760
  %2402 = vmatpush1.msra.mxu0 %v2401
  %2403 = vmatprep.subr.mxu0 0.0
  %v2404 = vand.u32 %v1014, 4294901760
  %2405 = vmatpush1.msra.mxu0 %v2404
  %2406 = vmatprep.subr.mxu0 0.0
  %v2407 = vand.u32 %v1015, 4294901760
  %2408 = vmatpush1.msra.mxu0 %v2407
  %2409 = vmatprep.subr.mxu0 0.0
  %v2410 = vand.u32 %v1016, 4294901760
  %2411 = vmatpush1.msra.mxu0 %v2410
  %2412 = vmatprep.subr.mxu0 0.0
  %v2413 = vand.u32 %v1017, 4294901760
  %2414 = vmatpush1.msra.mxu0 %v2413
  %2415 = vmatprep.subr.mxu0 0.0
  %v2416 = vand.u32 %v1018, 4294901760
  %2417 = vmatpush1.msra.mxu0 %v2416
  %2418 = vmatprep.subr.mxu0 0.0
  %v2419 = vand.u32 %v1019, 4294901760
  %2420 = vmatpush1.msra.mxu0 %v2419
  %2421 = vmatprep.subr.mxu0 0.0
  %v2422 = vand.u32 %v1020, 4294901760
  %2423 = vmatpush1.msra.mxu0 %v2422
  %2424 = vmatprep.subr.mxu0 0.0
  %v2425 = vand.u32 %v1021, 4294901760
  %2426 = vmatpush1.msra.mxu0 %v2425
  %2427 = vmatprep.subr.mxu0 0.0
  %v2428 = vand.u32 %v1022, 4294901760
  %2429 = vmatpush1.msra.mxu0 %v2428
  %2430 = vmatprep.subr.mxu0 0.0
  %v2431 = vand.u32 %v1023, 4294901760
  %2432 = vmatpush1.msra.mxu0 %v2431
  %2433 = vmatprep.subr.mxu0 0.0
  %v2434 = vand.u32 %v1024, 4294901760
  %2435 = vmatpush1.msra.mxu0 %v2434
  %2436 = vmatprep.subr.mxu0 0.0
  %v2437 = vand.u32 %v1025, 4294901760
  %2438 = vmatpush1.msra.mxu0 %v2437
  %2439 = vmatprep.subr.mxu0 0.0
  %v2440 = vand.u32 %v1026, 4294901760
  %2441 = vmatpush1.msra.mxu0 %v2440
  %2442 = vmatprep.subr.mxu0 0.0
  %v2443 = vand.u32 %v1027, 4294901760
  %2444 = vmatpush1.msra.mxu0 %v2443
  %2445 = vmatprep.subr.mxu0 0.0
  %v2446 = vand.u32 %v1028, 4294901760
  %2447 = vmatpush1.msra.mxu0 %v2446
  %2448 = vmatprep.subr.mxu0 0.0
  %v2449 = vand.u32 %v1029, 4294901760
  %2450 = vmatpush1.msra.mxu0 %v2449
  %2451 = vmatprep.subr.mxu0 0.0
  %v2452 = vand.u32 %v1030, 4294901760
  %2453 = vmatpush1.msra.mxu0 %v2452
  %2454 = vmatprep.subr.mxu0 0.0
  %v2455 = vand.u32 %v1031, 4294901760
  %2456 = vmatpush1.msra.mxu0 %v2455
  %2457 = vmatprep.subr.mxu0 0.0
  %v2458 = vand.u32 %v1032, 4294901760
  %2459 = vmatpush1.msra.mxu0 %v2458
  %2460 = vmatprep.subr.mxu0 0.0
  %v2461 = vand.u32 %v1033, 4294901760
  %2462 = vmatpush1.msra.mxu0 %v2461
  %2463 = vmatprep.subr.mxu0 0.0
  %v2464 = vand.u32 %v1034, 4294901760
  %2465 = vmatpush1.msra.mxu0 %v2464
  %2466 = vmatprep.subr.mxu0 0.0
  %v2467 = vand.u32 %v1035, 4294901760
  %2468 = vmatpush1.msra.mxu0 %v2467
  %2469 = vmatprep.subr.mxu0 0.0
  %v2470 = vand.u32 %v1036, 4294901760
  %2471 = vmatpush1.msra.mxu0 %v2470
  %2472 = vmatprep.subr.mxu0 0.0
  %v2473 = vand.u32 %v1037, 4294901760
  %2474 = vmatpush1.msra.mxu0 %v2473
  %2475 = vmatprep.subr.mxu0 0.0
  %v2476 = vand.u32 %v1038, 4294901760
  %2477 = vmatpush1.msra.mxu0 %v2476
  %2478 = vmatprep.subr.mxu0 0.0
  %v2479 = vand.u32 %v1039, 4294901760
  %2480 = vmatpush1.msra.mxu0 %v2479
  %2481 = vmatprep.subr.mxu0 0.0
  %v2482 = vand.u32 %v1040, 4294901760
  %2483 = vmatpush1.msra.mxu0 %v2482
  %2484 = vmatprep.subr.mxu0 0.0
  %v2485 = vand.u32 %v1041, 4294901760
  %2486 = vmatpush1.msra.mxu0 %v2485
  %v2487 = vand.u32 %v977, 4294901760
  %v2488 = vsub.f32 %v977, %v2487
  %v2489 = vand.u32 %v2488, 4294901760
  %2490 = vmatprep.mubr.f32.mxu0 %v2489
  %v2491 = vand.u32 %v976, 4294901760
  %v2492 = vsub.f32 %v976, %v2491
  %v2493 = vand.u32 %v2492, 4294901760
  %2494 = vmatmul.mubr.f32.gmra.mrb[0].mxu0 %v2493
  %v2495 = vpop.f32.mrb[0].mxu0
  %v2496 = vadd.f32 %v2388, %v2495
  %v2497 = vpop.f32.mrb[0].mxu0
  %2498 = vdwg.mxu0
  %2499 = vmatprep.subr.mxu0 0.0
  %v2500 = vand.u32 %v1010, 4294901760
  %v2501 = vsub.f32 %v1010, %v2500
  %v2502 = vand.u32 %v2501, 4294901760
  %2503 = vmatpush1.msra.mxu0 %v2502
  %2504 = vmatprep.subr.mxu0 0.0
  %v2505 = vand.u32 %v1011, 4294901760
  %v2506 = vsub.f32 %v1011, %v2505
  %v2507 = vand.u32 %v2506, 4294901760
  %2508 = vmatpush1.msra.mxu0 %v2507
  %2509 = vmatprep.subr.mxu0 0.0
  %v2510 = vand.u32 %v1012, 4294901760
  %v2511 = vsub.f32 %v1012, %v2510
  %v2512 = vand.u32 %v2511, 4294901760
  %2513 = vmatpush1.msra.mxu0 %v2512
  %2514 = vmatprep.subr.mxu0 0.0
  %v2515 = vand.u32 %v1013, 4294901760
  %v2516 = vsub.f32 %v1013, %v2515
  %v2517 = vand.u32 %v2516, 4294901760
  %2518 = vmatpush1.msra.mxu0 %v2517
  %2519 = vmatprep.subr.mxu0 0.0
  %v2520 = vand.u32 %v1014, 4294901760
  %v2521 = vsub.f32 %v1014, %v2520
  %v2522 = vand.u32 %v2521, 4294901760
  %2523 = vmatpush1.msra.mxu0 %v2522
  %2524 = vmatprep.subr.mxu0 0.0
  %v2525 = vand.u32 %v1015, 4294901760
  %v2526 = vsub.f32 %v1015, %v2525
  %v2527 = vand.u32 %v2526, 4294901760
  %2528 = vmatpush1.msra.mxu0 %v2527
  %2529 = vmatprep.subr.mxu0 0.0
  %v2530 = vand.u32 %v1016, 4294901760
  %v2531 = vsub.f32 %v1016, %v2530
  %v2532 = vand.u32 %v2531, 4294901760
  %2533 = vmatpush1.msra.mxu0 %v2532
  %2534 = vmatprep.subr.mxu0 0.0
  %v2535 = vand.u32 %v1017, 4294901760
  %v2536 = vsub.f32 %v1017, %v2535
  %v2537 = vand.u32 %v2536, 4294901760
  %2538 = vmatpush1.msra.mxu0 %v2537
  %2539 = vmatprep.subr.mxu0 0.0
  %v2540 = vand.u32 %v1018, 4294901760
  %v2541 = vsub.f32 %v1018, %v2540
  %v2542 = vand.u32 %v2541, 4294901760
  %2543 = vmatpush1.msra.mxu0 %v2542
  %2544 = vmatprep.subr.mxu0 0.0
  %v2545 = vand.u32 %v1019, 4294901760
  %v2546 = vsub.f32 %v1019, %v2545
  %v2547 = vand.u32 %v2546, 4294901760
  %2548 = vmatpush1.msra.mxu0 %v2547
  %2549 = vmatprep.subr.mxu0 0.0
  %v2550 = vand.u32 %v1020, 4294901760
  %v2551 = vsub.f32 %v1020, %v2550
  %v2552 = vand.u32 %v2551, 4294901760
  %2553 = vmatpush1.msra.mxu0 %v2552
  %2554 = vmatprep.subr.mxu0 0.0
  %v2555 = vand.u32 %v1021, 4294901760
  %v2556 = vsub.f32 %v1021, %v2555
  %v2557 = vand.u32 %v2556, 4294901760
  %2558 = vmatpush1.msra.mxu0 %v2557
  %2559 = vmatprep.subr.mxu0 0.0
  %v2560 = vand.u32 %v1022, 4294901760
  %v2561 = vsub.f32 %v1022, %v2560
  %v2562 = vand.u32 %v2561, 4294901760
  %2563 = vmatpush1.msra.mxu0 %v2562
  %2564 = vmatprep.subr.mxu0 0.0
  %v2565 = vand.u32 %v1023, 4294901760
  %v2566 = vsub.f32 %v1023, %v2565
  %v2567 = vand.u32 %v2566, 4294901760
  %2568 = vmatpush1.msra.mxu0 %v2567
  %2569 = vmatprep.subr.mxu0 0.0
  %v2570 = vand.u32 %v1024, 4294901760
  %v2571 = vsub.f32 %v1024, %v2570
  %v2572 = vand.u32 %v2571, 4294901760
  %2573 = vmatpush1.msra.mxu0 %v2572
  %2574 = vmatprep.subr.mxu0 0.0
  %v2575 = vand.u32 %v1025, 4294901760
  %v2576 = vsub.f32 %v1025, %v2575
  %v2577 = vand.u32 %v2576, 4294901760
  %2578 = vmatpush1.msra.mxu0 %v2577
  %2579 = vmatprep.subr.mxu0 0.0
  %v2580 = vand.u32 %v1026, 4294901760
  %v2581 = vsub.f32 %v1026, %v2580
  %v2582 = vand.u32 %v2581, 4294901760
  %2583 = vmatpush1.msra.mxu0 %v2582
  %2584 = vmatprep.subr.mxu0 0.0
  %v2585 = vand.u32 %v1027, 4294901760
  %v2586 = vsub.f32 %v1027, %v2585
  %v2587 = vand.u32 %v2586, 4294901760
  %2588 = vmatpush1.msra.mxu0 %v2587
  %2589 = vmatprep.subr.mxu0 0.0
  %v2590 = vand.u32 %v1028, 4294901760
  %v2591 = vsub.f32 %v1028, %v2590
  %v2592 = vand.u32 %v2591, 4294901760
  %2593 = vmatpush1.msra.mxu0 %v2592
  %2594 = vmatprep.subr.mxu0 0.0
  %v2595 = vand.u32 %v1029, 4294901760
  %v2596 = vsub.f32 %v1029, %v2595
  %v2597 = vand.u32 %v2596, 4294901760
  %2598 = vmatpush1.msra.mxu0 %v2597
  %2599 = vmatprep.subr.mxu0 0.0
  %v2600 = vand.u32 %v1030, 4294901760
  %v2601 = vsub.f32 %v1030, %v2600
  %v2602 = vand.u32 %v2601, 4294901760
  %2603 = vmatpush1.msra.mxu0 %v2602
  %2604 = vmatprep.subr.mxu0 0.0
  %v2605 = vand.u32 %v1031, 4294901760
  %v2606 = vsub.f32 %v1031, %v2605
  %v2607 = vand.u32 %v2606, 4294901760
  %2608 = vmatpush1.msra.mxu0 %v2607
  %2609 = vmatprep.subr.mxu0 0.0
  %v2610 = vand.u32 %v1032, 4294901760
  %v2611 = vsub.f32 %v1032, %v2610
  %v2612 = vand.u32 %v2611, 4294901760
  %2613 = vmatpush1.msra.mxu0 %v2612
  %2614 = vmatprep.subr.mxu0 0.0
  %v2615 = vand.u32 %v1033, 4294901760
  %v2616 = vsub.f32 %v1033, %v2615
  %v2617 = vand.u32 %v2616, 4294901760
  %2618 = vmatpush1.msra.mxu0 %v2617
  %2619 = vmatprep.subr.mxu0 0.0
  %v2620 = vand.u32 %v1034, 4294901760
  %v2621 = vsub.f32 %v1034, %v2620
  %v2622 = vand.u32 %v2621, 4294901760
  %2623 = vmatpush1.msra.mxu0 %v2622
  %2624 = vmatprep.subr.mxu0 0.0
  %v2625 = vand.u32 %v1035, 4294901760
  %v2626 = vsub.f32 %v1035, %v2625
  %v2627 = vand.u32 %v2626, 4294901760
  %2628 = vmatpush1.msra.mxu0 %v2627
  %2629 = vmatprep.subr.mxu0 0.0
  %v2630 = vand.u32 %v1036, 4294901760
  %v2631 = vsub.f32 %v1036, %v2630
  %v2632 = vand.u32 %v2631, 4294901760
  %2633 = vmatpush1.msra.mxu0 %v2632
  %2634 = vmatprep.subr.mxu0 0.0
  %v2635 = vand.u32 %v1037, 4294901760
  %v2636 = vsub.f32 %v1037, %v2635
  %v2637 = vand.u32 %v2636, 4294901760
  %2638 = vmatpush1.msra.mxu0 %v2637
  %2639 = vmatprep.subr.mxu0 0.0
  %v2640 = vand.u32 %v1038, 4294901760
  %v2641 = vsub.f32 %v1038, %v2640
  %v2642 = vand.u32 %v2641, 4294901760
  %2643 = vmatpush1.msra.mxu0 %v2642
  %2644 = vmatprep.subr.mxu0 0.0
  %v2645 = vand.u32 %v1039, 4294901760
  %v2646 = vsub.f32 %v1039, %v2645
  %v2647 = vand.u32 %v2646, 4294901760
  %2648 = vmatpush1.msra.mxu0 %v2647
  %2649 = vmatprep.subr.mxu0 0.0
  %v2650 = vand.u32 %v1040, 4294901760
  %v2651 = vsub.f32 %v1040, %v2650
  %v2652 = vand.u32 %v2651, 4294901760
  %2653 = vmatpush1.msra.mxu0 %v2652
  %2654 = vmatprep.subr.mxu0 0.0
  %v2655 = vand.u32 %v1041, 4294901760
  %v2656 = vsub.f32 %v1041, %v2655
  %v2657 = vand.u32 %v2656, 4294901760
  %2658 = vmatpush1.msra.mxu0 %v2657
  %v2659 = vand.u32 %v977, 4294901760
  %2660 = vmatprep.mubr.f32.mxu0 %v2659
  %v2661 = vand.u32 %v976, 4294901760
  %2662 = vmatmul.mubr.f32.gmra.mrb[0].mxu0 %v2661
  %v2663 = vpop.f32.mrb[0].mxu0
  %v2664 = vadd.f32 %v2496, %v2663
  %v2665 = vpop.f32.mrb[0].mxu0
  %2666 = vdwg.mxu0
  %2667 = vmatprep.subr.mxu0 0.0
  %v2668 = vand.u32 %v1010, 4294901760
  %2669 = vmatpush1.msra.mxu0 %v2668
  %2670 = vmatprep.subr.mxu0 0.0
  %v2671 = vand.u32 %v1011, 4294901760
  %2672 = vmatpush1.msra.mxu0 %v2671
  %2673 = vmatprep.subr.mxu0 0.0
  %v2674 = vand.u32 %v1012, 4294901760
  %2675 = vmatpush1.msra.mxu0 %v2674
  %2676 = vmatprep.subr.mxu0 0.0
  %v2677 = vand.u32 %v1013, 4294901760
  %2678 = vmatpush1.msra.mxu0 %v2677
  %2679 = vmatprep.subr.mxu0 0.0
  %v2680 = vand.u32 %v1014, 4294901760
  %2681 = vmatpush1.msra.mxu0 %v2680
  %2682 = vmatprep.subr.mxu0 0.0
  %v2683 = vand.u32 %v1015, 4294901760
  %2684 = vmatpush1.msra.mxu0 %v2683
  %2685 = vmatprep.subr.mxu0 0.0
  %v2686 = vand.u32 %v1016, 4294901760
  %2687 = vmatpush1.msra.mxu0 %v2686
  %2688 = vmatprep.subr.mxu0 0.0
  %v2689 = vand.u32 %v1017, 4294901760
  %2690 = vmatpush1.msra.mxu0 %v2689
  %2691 = vmatprep.subr.mxu0 0.0
  %v2692 = vand.u32 %v1018, 4294901760
  %2693 = vmatpush1.msra.mxu0 %v2692
  %2694 = vmatprep.subr.mxu0 0.0
  %v2695 = vand.u32 %v1019, 4294901760
  %2696 = vmatpush1.msra.mxu0 %v2695
  %2697 = vmatprep.subr.mxu0 0.0
  %v2698 = vand.u32 %v1020, 4294901760
  %2699 = vmatpush1.msra.mxu0 %v2698
  %2700 = vmatprep.subr.mxu0 0.0
  %v2701 = vand.u32 %v1021, 4294901760
  %2702 = vmatpush1.msra.mxu0 %v2701
  %2703 = vmatprep.subr.mxu0 0.0
  %v2704 = vand.u32 %v1022, 4294901760
  %2705 = vmatpush1.msra.mxu0 %v2704
  %2706 = vmatprep.subr.mxu0 0.0
  %v2707 = vand.u32 %v1023, 4294901760
  %2708 = vmatpush1.msra.mxu0 %v2707
  %2709 = vmatprep.subr.mxu0 0.0
  %v2710 = vand.u32 %v1024, 4294901760
  %2711 = vmatpush1.msra.mxu0 %v2710
  %2712 = vmatprep.subr.mxu0 0.0
  %v2713 = vand.u32 %v1025, 4294901760
  %2714 = vmatpush1.msra.mxu0 %v2713
  %2715 = vmatprep.subr.mxu0 0.0
  %v2716 = vand.u32 %v1026, 4294901760
  %2717 = vmatpush1.msra.mxu0 %v2716
  %2718 = vmatprep.subr.mxu0 0.0
  %v2719 = vand.u32 %v1027, 4294901760
  %2720 = vmatpush1.msra.mxu0 %v2719
  %2721 = vmatprep.subr.mxu0 0.0
  %v2722 = vand.u32 %v1028, 4294901760
  %2723 = vmatpush1.msra.mxu0 %v2722
  %2724 = vmatprep.subr.mxu0 0.0
  %v2725 = vand.u32 %v1029, 4294901760
  %2726 = vmatpush1.msra.mxu0 %v2725
  %2727 = vmatprep.subr.mxu0 0.0
  %v2728 = vand.u32 %v1030, 4294901760
  %2729 = vmatpush1.msra.mxu0 %v2728
  %2730 = vmatprep.subr.mxu0 0.0
  %v2731 = vand.u32 %v1031, 4294901760
  %2732 = vmatpush1.msra.mxu0 %v2731
  %2733 = vmatprep.subr.mxu0 0.0
  %v2734 = vand.u32 %v1032, 4294901760
  %2735 = vmatpush1.msra.mxu0 %v2734
  %2736 = vmatprep.subr.mxu0 0.0
  %v2737 = vand.u32 %v1033, 4294901760
  %2738 = vmatpush1.msra.mxu0 %v2737
  %2739 = vmatprep.subr.mxu0 0.0
  %v2740 = vand.u32 %v1034, 4294901760
  %2741 = vmatpush1.msra.mxu0 %v2740
  %2742 = vmatprep.subr.mxu0 0.0
  %v2743 = vand.u32 %v1035, 4294901760
  %2744 = vmatpush1.msra.mxu0 %v2743
  %2745 = vmatprep.subr.mxu0 0.0
  %v2746 = vand.u32 %v1036, 4294901760
  %2747 = vmatpush1.msra.mxu0 %v2746
  %2748 = vmatprep.subr.mxu0 0.0
  %v2749 = vand.u32 %v1037, 4294901760
  %2750 = vmatpush1.msra.mxu0 %v2749
  %2751 = vmatprep.subr.mxu0 0.0
  %v2752 = vand.u32 %v1038, 4294901760
  %2753 = vmatpush1.msra.mxu0 %v2752
  %2754 = vmatprep.subr.mxu0 0.0
  %v2755 = vand.u32 %v1039, 4294901760
  %2756 = vmatpush1.msra.mxu0 %v2755
  %2757 = vmatprep.subr.mxu0 0.0
  %v2758 = vand.u32 %v1040, 4294901760
  %2759 = vmatpush1.msra.mxu0 %v2758
  %2760 = vmatprep.subr.mxu0 0.0
  %v2761 = vand.u32 %v1041, 4294901760
  %2762 = vmatpush1.msra.mxu0 %v2761
  %v2763 = vand.u32 %v977, 4294901760
  %2764 = vmatprep.mubr.f32.mxu0 %v2763
  %v2765 = vand.u32 %v976, 4294901760
  %2766 = vmatmul.mubr.f32.gmra.mrb[0].mxu0 %v2765
  %v2767 = vpop.f32.mrb[0].mxu0
  %v2768 = vadd.f32 %v2664, %v2767
  %v2769 = vpop.f32.mrb[0].mxu0
  %2770 = vdwg.mxu0
  %v2771 = vmax.f32 %v2768, 0.0
  %v2772 = vld [vmem:[%s3 + $0x38] sm:$0xff]
  %v2773 = vld [vmem:[%s3 + $0x40] sm:$0xf]
  %vm2774 = vcmask 31744
  %v2776 = vsel %vm2774, %v2771, 0
  %vm2778 = vcmask 1043456
  %v2780 = vsel %vm2778, %v2773, 0
  %2782 = vmatprep.subr.mxu0 0.0
  %v2783 = vand.u32 %v2780, 4294901760
  %2784 = vmatpush1.msra.mxu0 %v2783
  %2785 = vmatprep.subr.mxu0 0.0
  %2786 = vmatpush1.msra.mxu0 0.0
  %2787 = vmatprep.subr.mxu0 0.0
  %2788 = vmatpush1.msra.mxu0 0.0
  %2789 = vmatprep.subr.mxu0 0.0
  %2790 = vmatpush1.msra.mxu0 0.0
  %2791 = vmatprep.subr.mxu0 0.0
  %2792 = vmatpush1.msra.mxu0 0.0
  %2793 = vmatprep.subr.mxu0 0.0
  %2794 = vmatpush1.msra.mxu0 0.0
  %2795 = vmatprep.subr.mxu0 0.0
  %2796 = vmatpush1.msra.mxu0 0.0
  %2797 = vmatprep.subr.mxu0 0.0
  %2798 = vmatpush1.msra.mxu0 0.0
  %2799 = vmatprep.subr.mxu0 0.0
  %2800 = vmatpush1.msra.mxu0 0.0
  %2801 = vmatprep.subr.mxu0 0.0
  %2802 = vmatpush1.msra.mxu0 0.0
  %2803 = vmatprep.subr.mxu0 0.0
  %2804 = vmatpush1.msra.mxu0 0.0
  %2805 = vmatprep.subr.mxu0 0.0
  %2806 = vmatpush1.msra.mxu0 0.0
  %2807 = vmatprep.subr.mxu0 0.0
  %2808 = vmatpush1.msra.mxu0 0.0
  %2809 = vmatprep.subr.mxu0 0.0
  %2810 = vmatpush1.msra.mxu0 0.0
  %2811 = vmatprep.subr.mxu0 0.0
  %2812 = vmatpush1.msra.mxu0 0.0
  %2813 = vmatprep.subr.mxu0 0.0
  %2814 = vmatpush1.msra.mxu0 0.0
  %2815 = vmatprep.subr.mxu0 0.0
  %2816 = vmatpush1.msra.mxu0 0.0
  %2817 = vmatprep.subr.mxu0 0.0
  %2818 = vmatpush1.msra.mxu0 0.0
  %2819 = vmatprep.subr.mxu0 0.0
  %2820 = vmatpush1.msra.mxu0 0.0
  %2821 = vmatprep.subr.mxu0 0.0
  %2822 = vmatpush1.msra.mxu0 0.0
  %2823 = vmatprep.subr.mxu0 0.0
  %2824 = vmatpush1.msra.mxu0 0.0
  %2825 = vmatprep.subr.mxu0 0.0
  %2826 = vmatpush1.msra.mxu0 0.0
  %2827 = vmatprep.subr.mxu0 0.0
  %2828 = vmatpush1.msra.mxu0 0.0
  %2829 = vmatprep.subr.mxu0 0.0
  %2830 = vmatpush1.msra.mxu0 0.0
  %2831 = vmatprep.subr.mxu0 0.0
  %2832 = vmatpush1.msra.mxu0 0.0
  %2833 = vmatprep.subr.mxu0 0.0
  %2834 = vmatpush1.msra.mxu0 0.0
  %2835 = vmatprep.subr.mxu0 0.0
  %2836 = vmatpush1.msra.mxu0 0.0
  %2837 = vmatprep.subr.mxu0 0.0
  %2838 = vmatpush1.msra.mxu0 0.0
  %2839 = vmatprep.subr.mxu0 0.0
  %2840 = vmatpush1.msra.mxu0 0.0
  %2841 = vmatprep.subr.mxu0 0.0
  %2842 = vmatpush1.msra.mxu0 0.0
  %2843 = vmatprep.subr.mxu0 0.0
  %2844 = vmatpush1.msra.mxu0 0.0
  %2845 = vmatprep.subr.mxu0 0.0
  %2846 = vmatpush1.msra.mxu0 0.0
  %2847 = vmatprep.mubr.f32.mxu0 0.0
  %v2848 = vand.u32 %v2776, 4294901760
  %v2849 = vsub.f32 %v2776, %v2848
  %v2850 = vand.u32 %v2849, 4294901760
  %v2851 = vsub.f32 %v2849, %v2850
  %v2852 = vand.u32 %v2851, 4294901760
  %2853 = vmatmul.mubr.f32.gmra.mrb[0].mxu0 %v2852
  %v2854 = vpop.f32.mrb[0].mxu0
  %v2855 = vadd.f32 0.0, %v2854
  %v2856 = vpop.f32.mrb[0].mxu0
  %2857 = vdwg.mxu0
  %2858 = vmatprep.subr.mxu0 0.0
  %v2859 = vand.u32 %v2780, 4294901760
  %v2860 = vsub.f32 %v2780, %v2859
  %v2861 = vand.u32 %v2860, 4294901760
  %v2862 = vsub.f32 %v2860, %v2861
  %v2863 = vand.u32 %v2862, 4294901760
  %2864 = vmatpush1.msra.mxu0 %v2863
  %2865 = vmatprep.subr.mxu0 0.0
  %2866 = vmatpush1.msra.mxu0 0.0
  %2867 = vmatprep.subr.mxu0 0.0
  %2868 = vmatpush1.msra.mxu0 0.0
  %2869 = vmatprep.subr.mxu0 0.0
  %2870 = vmatpush1.msra.mxu0 0.0
  %2871 = vmatprep.subr.mxu0 0.0
  %2872 = vmatpush1.msra.mxu0 0.0
  %2873 = vmatprep.subr.mxu0 0.0
  %2874 = vmatpush1.msra.mxu0 0.0
  %2875 = vmatprep.subr.mxu0 0.0
  %2876 = vmatpush1.msra.mxu0 0.0
  %2877 = vmatprep.subr.mxu0 0.0
  %2878 = vmatpush1.msra.mxu0 0.0
  %2879 = vmatprep.subr.mxu0 0.0
  %2880 = vmatpush1.msra.mxu0 0.0
  %2881 = vmatprep.subr.mxu0 0.0
  %2882 = vmatpush1.msra.mxu0 0.0
  %2883 = vmatprep.subr.mxu0 0.0
  %2884 = vmatpush1.msra.mxu0 0.0
  %2885 = vmatprep.subr.mxu0 0.0
  %2886 = vmatpush1.msra.mxu0 0.0
  %2887 = vmatprep.subr.mxu0 0.0
  %2888 = vmatpush1.msra.mxu0 0.0
  %2889 = vmatprep.subr.mxu0 0.0
  %2890 = vmatpush1.msra.mxu0 0.0
  %2891 = vmatprep.subr.mxu0 0.0
  %2892 = vmatpush1.msra.mxu0 0.0
  %2893 = vmatprep.subr.mxu0 0.0
  %2894 = vmatpush1.msra.mxu0 0.0
  %2895 = vmatprep.subr.mxu0 0.0
  %2896 = vmatpush1.msra.mxu0 0.0
  %2897 = vmatprep.subr.mxu0 0.0
  %2898 = vmatpush1.msra.mxu0 0.0
  %2899 = vmatprep.subr.mxu0 0.0
  %2900 = vmatpush1.msra.mxu0 0.0
  %2901 = vmatprep.subr.mxu0 0.0
  %2902 = vmatpush1.msra.mxu0 0.0
  %2903 = vmatprep.subr.mxu0 0.0
  %2904 = vmatpush1.msra.mxu0 0.0
  %2905 = vmatprep.subr.mxu0 0.0
  %2906 = vmatpush1.msra.mxu0 0.0
  %2907 = vmatprep.subr.mxu0 0.0
  %2908 = vmatpush1.msra.mxu0 0.0
  %2909 = vmatprep.subr.mxu0 0.0
  %2910 = vmatpush1.msra.mxu0 0.0
  %2911 = vmatprep.subr.mxu0 0.0
  %2912 = vmatpush1.msra.mxu0 0.0
  %2913 = vmatprep.subr.mxu0 0.0
  %2914 = vmatpush1.msra.mxu0 0.0
  %2915 = vmatprep.subr.mxu0 0.0
  %2916 = vmatpush1.msra.mxu0 0.0
  %2917 = vmatprep.subr.mxu0 0.0
  %2918 = vmatpush1.msra.mxu0 0.0
  %2919 = vmatprep.subr.mxu0 0.0
  %2920 = vmatpush1.msra.mxu0 0.0
  %2921 = vmatprep.subr.mxu0 0.0
  %2922 = vmatpush1.msra.mxu0 0.0
  %2923 = vmatprep.subr.mxu0 0.0
  %2924 = vmatpush1.msra.mxu0 0.0
  %2925 = vmatprep.subr.mxu0 0.0
  %2926 = vmatpush1.msra.mxu0 0.0
  %2927 = vmatprep.mubr.f32.mxu0 0.0
  %v2928 = vand.u32 %v2776, 4294901760
  %2929 = vmatmul.mubr.f32.gmra.mrb[0].mxu0 %v2928
  %v2930 = vpop.f32.mrb[0].mxu0
  %v2931 = vadd.f32 %v2855, %v2930
  %v2932 = vpop.f32.mrb[0].mxu0
  %2933 = vdwg.mxu0
  %2934 = vmatprep.subr.mxu0 0.0
  %v2935 = vand.u32 %v2780, 4294901760
  %v2936 = vsub.f32 %v2780, %v2935
  %2937 = vmatpush1.msra.mxu0 %v2936
  %2938 = vmatprep.subr.mxu0 0.0
  %2939 = vmatpush1.msra.mxu0 0.0
  %2940 = vmatprep.subr.mxu0 0.0
  %2941 = vmatpush1.msra.mxu0 0.0
  %2942 = vmatprep.subr.mxu0 0.0
  %2943 = vmatpush1.msra.mxu0 0.0
  %2944 = vmatprep.subr.mxu0 0.0
  %2945 = vmatpush1.msra.mxu0 0.0
  %2946 = vmatprep.subr.mxu0 0.0
  %2947 = vmatpush1.msra.mxu0 0.0
  %2948 = vmatprep.subr.mxu0 0.0
  %2949 = vmatpush1.msra.mxu0 0.0
  %2950 = vmatprep.subr.mxu0 0.0
  %2951 = vmatpush1.msra.mxu0 0.0
  %2952 = vmatprep.subr.mxu0 0.0
  %2953 = vmatpush1.msra.mxu0 0.0
  %2954 = vmatprep.subr.mxu0 0.0
  %2955 = vmatpush1.msra.mxu0 0.0
  %2956 = vmatprep.subr.mxu0 0.0
  %2957 = vmatpush1.msra.mxu0 0.0
  %2958 = vmatprep.subr.mxu0 0.0
  %2959 = vmatpush1.msra.mxu0 0.0
  %2960 = vmatprep.subr.mxu0 0.0
  %2961 = vmatpush1.msra.mxu0 0.0
  %2962 = vmatprep.subr.mxu0 0.0
  %2963 = vmatpush1.msra.mxu0 0.0
  %2964 = vmatprep.subr.mxu0 0.0
  %2965 = vmatpush1.msra.mxu0 0.0
  %2966 = vmatprep.subr.mxu0 0.0
  %2967 = vmatpush1.msra.mxu0 0.0
  %2968 = vmatprep.subr.mxu0 0.0
  %2969 = vmatpush1.msra.mxu0 0.0
  %2970 = vmatprep.subr.mxu0 0.0
  %2971 = vmatpush1.msra.mxu0 0.0
  %2972 = vmatprep.subr.mxu0 0.0
  %2973 = vmatpush1.msra.mxu0 0.0
  %2974 = vmatprep.subr.mxu0 0.0
  %2975 = vmatpush1.msra.mxu0 0.0
  %2976 = vmatprep.subr.mxu0 0.0
  %2977 = vmatpush1.msra.mxu0 0.0
  %2978 = vmatprep.subr.mxu0 0.0
  %2979 = vmatpush1.msra.mxu0 0.0
  %2980 = vmatprep.subr.mxu0 0.0
  %2981 = vmatpush1.msra.mxu0 0.0
  %2982 = vmatprep.subr.mxu0 0.0
  %2983 = vmatpush1.msra.mxu0 0.0
  %2984 = vmatprep.subr.mxu0 0.0
  %2985 = vmatpush1.msra.mxu0 0.0
  %2986 = vmatprep.subr.mxu0 0.0
  %2987 = vmatpush1.msra.mxu0 0.0
  %2988 = vmatprep.subr.mxu0 0.0
  %2989 = vmatpush1.msra.mxu0 0.0
  %2990 = vmatprep.subr.mxu0 0.0
  %2991 = vmatpush1.msra.mxu0 0.0
  %2992 = vmatprep.subr.mxu0 0.0
  %2993 = vmatpush1.msra.mxu0 0.0
  %2994 = vmatprep.subr.mxu0 0.0
  %2995 = vmatpush1.msra.mxu0 0.0
  %2996 = vmatprep.subr.mxu0 0.0
  %2997 = vmatpush1.msra.mxu0 0.0
  %2998 = vmatprep.subr.mxu0 0.0
  %2999 = vmatpush1.msra.mxu0 0.0
  %3000 = vmatprep.mubr.f32.mxu0 0.0
  %v3001 = vand.u32 %v2776, 4294901760
  %v3002 = vsub.f32 %v2776, %v3001
  %3003 = vmatmul.mubr.f32.gmra.mrb[0].mxu0 %v3002
  %v3004 = vpop.f32.mrb[0].mxu0
  %v3005 = vadd.f32 %v2931, %v3004
  %v3006 = vpop.f32.mrb[0].mxu0
  %3007 = vdwg.mxu0
  %3008 = vmatprep.subr.mxu0 0.0
  %v3009 = vand.u32 %v2780, 4294901760
  %3010 = vmatpush1.msra.mxu0 %v3009
  %3011 = vmatprep.subr.mxu0 0.0
  %3012 = vmatpush1.msra.mxu0 0.0
  %3013 = vmatprep.subr.mxu0 0.0
  %3014 = vmatpush1.msra.mxu0 0.0
  %3015 = vmatprep.subr.mxu0 0.0
  %3016 = vmatpush1.msra.mxu0 0.0
  %3017 = vmatprep.subr.mxu0 0.0
  %3018 = vmatpush1.msra.mxu0 0.0
  %3019 = vmatprep.subr.mxu0 0.0
  %3020 = vmatpush1.msra.mxu0 0.0
  %3021 = vmatprep.subr.mxu0 0.0
  %3022 = vmatpush1.msra.mxu0 0.0
  %3023 = vmatprep.subr.mxu0 0.0
  %3024 = vmatpush1.msra.mxu0 0.0
  %3025 = vmatprep.subr.mxu0 0.0
  %3026 = vmatpush1.msra.mxu0 0.0
  %3027 = vmatprep.subr.mxu0 0.0
  %3028 = vmatpush1.msra.mxu0 0.0
  %3029 = vmatprep.subr.mxu0 0.0
  %3030 = vmatpush1.msra.mxu0 0.0
  %3031 = vmatprep.subr.mxu0 0.0
  %3032 = vmatpush1.msra.mxu0 0.0
  %3033 = vmatprep.subr.mxu0 0.0
  %3034 = vmatpush1.msra.mxu0 0.0
  %3035 = vmatprep.subr.mxu0 0.0
  %3036 = vmatpush1.msra.mxu0 0.0
  %3037 = vmatprep.subr.mxu0 0.0
  %3038 = vmatpush1.msra.mxu0 0.0
  %3039 = vmatprep.subr.mxu0 0.0
  %3040 = vmatpush1.msra.mxu0 0.0
  %3041 = vmatprep.subr.mxu0 0.0
  %3042 = vmatpush1.msra.mxu0 0.0
  %3043 = vmatprep.subr.mxu0 0.0
  %3044 = vmatpush1.msra.mxu0 0.0
  %3045 = vmatprep.subr.mxu0 0.0
  %3046 = vmatpush1.msra.mxu0 0.0
  %3047 = vmatprep.subr.mxu0 0.0
  %3048 = vmatpush1.msra.mxu0 0.0
  %3049 = vmatprep.subr.mxu0 0.0
  %3050 = vmatpush1.msra.mxu0 0.0
  %3051 = vmatprep.subr.mxu0 0.0
  %3052 = vmatpush1.msra.mxu0 0.0
  %3053 = vmatprep.subr.mxu0 0.0
  %3054 = vmatpush1.msra.mxu0 0.0
  %3055 = vmatprep.subr.mxu0 0.0
  %3056 = vmatpush1.msra.mxu0 0.0
  %3057 = vmatprep.subr.mxu0 0.0
  %3058 = vmatpush1.msra.mxu0 0.0
  %3059 = vmatprep.subr.mxu0 0.0
  %3060 = vmatpush1.msra.mxu0 0.0
  %3061 = vmatprep.subr.mxu0 0.0
  %3062 = vmatpush1.msra.mxu0 0.0
  %3063 = vmatprep.subr.mxu0 0.0
  %3064 = vmatpush1.msra.mxu0 0.0
  %3065 = vmatprep.subr.mxu0 0.0
  %3066 = vmatpush1.msra.mxu0 0.0
  %3067 = vmatprep.subr.mxu0 0.0
  %3068 = vmatpush1.msra.mxu0 0.0
  %3069 = vmatprep.subr.mxu0 0.0
  %3070 = vmatpush1.msra.mxu0 0.0
  %3071 = vmatprep.subr.mxu0 0.0
  %3072 = vmatpush1.msra.mxu0 0.0
  %3073 = vmatprep.mubr.f32.mxu0 0.0
  %v3074 = vand.u32 %v2776, 4294901760
  %v3075 = vsub.f32 %v2776, %v3074
  %v3076 = vand.u32 %v3075, 4294901760
  %3077 = vmatmul.mubr.f32.gmra.mrb[0].mxu0 %v3076
  %v3078 = vpop.f32.mrb[0].mxu0
  %v3079 = vadd.f32 %v3005, %v3078
  %v3080 = vpop.f32.mrb[0].mxu0
  %3081 = vdwg.mxu0
  %3082 = vmatprep.subr.mxu0 0.0
  %v3083 = vand.u32 %v2780, 4294901760
  %v3084 = vsub.f32 %v2780, %v3083
  %v3085 = vand.u32 %v3084, 4294901760
  %3086 = vmatpush1.msra.mxu0 %v3085
  %3087 = vmatprep.subr.mxu0 0.0
  %3088 = vmatpush1.msra.mxu0 0.0
  %3089 = vmatprep.subr.mxu0 0.0
  %3090 = vmatpush1.msra.mxu0 0.0
  %3091 = vmatprep.subr.mxu0 0.0
  %3092 = vmatpush1.msra.mxu0 0.0
  %3093 = vmatprep.subr.mxu0 0.0
  %3094 = vmatpush1.msra.mxu0 0.0
  %3095 = vmatprep.subr.mxu0 0.0
  %3096 = vmatpush1.msra.mxu0 0.0
  %3097 = vmatprep.subr.mxu0 0.0
  %3098 = vmatpush1.msra.mxu0 0.0
  %3099 = vmatprep.subr.mxu0 0.0
  %3100 = vmatpush1.msra.mxu0 0.0
  %3101 = vmatprep.subr.mxu0 0.0
  %3102 = vmatpush1.msra.mxu0 0.0
  %3103 = vmatprep.subr.mxu0 0.0
  %3104 = vmatpush1.msra.mxu0 0.0
  %3105 = vmatprep.subr.mxu0 0.0
  %3106 = vmatpush1.msra.mxu0 0.0
  %3107 = vmatprep.subr.mxu0 0.0
  %3108 = vmatpush1.msra.mxu0 0.0
  %3109 = vmatprep.subr.mxu0 0.0
  %3110 = vmatpush1.msra.mxu0 0.0
  %3111 = vmatprep.subr.mxu0 0.0
  %3112 = vmatpush1.msra.mxu0 0.0
  %3113 = vmatprep.subr.mxu0 0.0
  %3114 = vmatpush1.msra.mxu0 0.0
  %3115 = vmatprep.subr.mxu0 0.0
  %3116 = vmatpush1.msra.mxu0 0.0
  %3117 = vmatprep.subr.mxu0 0.0
  %3118 = vmatpush1.msra.mxu0 0.0
  %3119 = vmatprep.subr.mxu0 0.0
  %3120 = vmatpush1.msra.mxu0 0.0
  %3121 = vmatprep.subr.mxu0 0.0
  %3122 = vmatpush1.msra.mxu0 0.0
  %3123 = vmatprep.subr.mxu0 0.0
  %3124 = vmatpush1.msra.mxu0 0.0
  %3125 = vmatprep.subr.mxu0 0.0
  %3126 = vmatpush1.msra.mxu0 0.0
  %3127 = vmatprep.subr.mxu0 0.0
  %3128 = vmatpush1.msra.mxu0 0.0
  %3129 = vmatprep.subr.mxu0 0.0
  %3130 = vmatpush1.msra.mxu0 0.0
  %3131 = vmatprep.subr.mxu0 0.0
  %3132 = vmatpush1.msra.mxu0 0.0
  %3133 = vmatprep.subr.mxu0 0.0
  %3134 = vmatpush1.msra.mxu0 0.0
  %3135 = vmatprep.subr.mxu0 0.0
  %3136 = vmatpush1.msra.mxu0 0.0
  %3137 = vmatprep.subr.mxu0 0.0
  %3138 = vmatpush1.msra.mxu0 0.0
  %3139 = vmatprep.subr.mxu0 0.0
  %3140 = vmatpush1.msra.mxu0 0.0
  %3141 = vmatprep.subr.mxu0 0.0
  %3142 = vmatpush1.msra.mxu0 0.0
  %3143 = vmatprep.subr.mxu0 0.0
  %3144 = vmatpush1.msra.mxu0 0.0
  %3145 = vmatprep.subr.mxu0 0.0
  %3146 = vmatpush1.msra.mxu0 0.0
  %3147 = vmatprep.subr.mxu0 0.0
  %3148 = vmatpush1.msra.mxu0 0.0
  %3149 = vmatprep.mubr.f32.mxu0 0.0
  %v3150 = vand.u32 %v2776, 4294901760
  %3151 = vmatmul.mubr.f32.gmra.mrb[0].mxu0 %v3150
  %v3152 = vpop.f32.mrb[0].mxu0
  %v3153 = vadd.f32 %v3079, %v3152
  %v3154 = vpop.f32.mrb[0].mxu0
  %3155 = vdwg.mxu0
  %3156 = vmatprep.subr.mxu0 0.0
  %v3157 = vand.u32 %v2780, 4294901760
  %3158 = vmatpush1.msra.mxu0 %v3157
  %3159 = vmatprep.subr.mxu0 0.0
  %3160 = vmatpush1.msra.mxu0 0.0
  %3161 = vmatprep.subr.mxu0 0.0
  %3162 = vmatpush1.msra.mxu0 0.0
  %3163 = vmatprep.subr.mxu0 0.0
  %3164 = vmatpush1.msra.mxu0 0.0
  %3165 = vmatprep.subr.mxu0 0.0
  %3166 = vmatpush1.msra.mxu0 0.0
  %3167 = vmatprep.subr.mxu0 0.0
  %3168 = vmatpush1.msra.mxu0 0.0
  %3169 = vmatprep.subr.mxu0 0.0
  %3170 = vmatpush1.msra.mxu0 0.0
  %3171 = vmatprep.subr.mxu0 0.0
  %3172 = vmatpush1.msra.mxu0 0.0
  %3173 = vmatprep.subr.mxu0 0.0
  %3174 = vmatpush1.msra.mxu0 0.0
  %3175 = vmatprep.subr.mxu0 0.0
  %3176 = vmatpush1.msra.mxu0 0.0
  %3177 = vmatprep.subr.mxu0 0.0
  %3178 = vmatpush1.msra.mxu0 0.0
  %3179 = vmatprep.subr.mxu0 0.0
  %3180 = vmatpush1.msra.mxu0 0.0
  %3181 = vmatprep.subr.mxu0 0.0
  %3182 = vmatpush1.msra.mxu0 0.0
  %3183 = vmatprep.subr.mxu0 0.0
  %3184 = vmatpush1.msra.mxu0 0.0
  %3185 = vmatprep.subr.mxu0 0.0
  %3186 = vmatpush1.msra.mxu0 0.0
  %3187 = vmatprep.subr.mxu0 0.0
  %3188 = vmatpush1.msra.mxu0 0.0
  %3189 = vmatprep.subr.mxu0 0.0
  %3190 = vmatpush1.msra.mxu0 0.0
  %3191 = vmatprep.subr.mxu0 0.0
  %3192 = vmatpush1.msra.mxu0 0.0
  %3193 = vmatprep.subr.mxu0 0.0
  %3194 = vmatpush1.msra.mxu0 0.0
  %3195 = vmatprep.subr.mxu0 0.0
  %3196 = vmatpush1.msra.mxu0 0.0
  %3197 = vmatprep.subr.mxu0 0.0
  %3198 = vmatpush1.msra.mxu0 0.0
  %3199 = vmatprep.subr.mxu0 0.0
  %3200 = vmatpush1.msra.mxu0 0.0
  %3201 = vmatprep.subr.mxu0 0.0
  %3202 = vmatpush1.msra.mxu0 0.0
  %3203 = vmatprep.subr.mxu0 0.0
  %3204 = vmatpush1.msra.mxu0 0.0
  %3205 = vmatprep.subr.mxu0 0.0
  %3206 = vmatpush1.msra.mxu0 0.0
  %3207 = vmatprep.subr.mxu0 0.0
  %3208 = vmatpush1.msra.mxu0 0.0
  %3209 = vmatprep.subr.mxu0 0.0
  %3210 = vmatpush1.msra.mxu0 0.0
  %3211 = vmatprep.subr.mxu0 0.0
  %3212 = vmatpush1.msra.mxu0 0.0
  %3213 = vmatprep.subr.mxu0 0.0
  %3214 = vmatpush1.msra.mxu0 0.0
  %3215 = vmatprep.subr.mxu0 0.0
  %3216 = vmatpush1.msra.mxu0 0.0
  %3217 = vmatprep.subr.mxu0 0.0
  %3218 = vmatpush1.msra.mxu0 0.0
  %3219 = vmatprep.subr.mxu0 0.0
  %3220 = vmatpush1.msra.mxu0 0.0
  %3221 = vmatprep.mubr.f32.mxu0 0.0
  %v3222 = vand.u32 %v2776, 4294901760
  %3223 = vmatmul.mubr.f32.gmra.mrb[0].mxu0 %v3222
  %v3224 = vpop.f32.mrb[0].mxu0
  %v3225 = vadd.f32 %v3153, %v3224
  %v3226 = vpop.f32.mrb[0].mxu0
  %3227 = vdwg.mxu0
  %vm3228 = vcmask 64512
  %v3230 = vsel %vm3228, %v973, 0
  %3232 = vmatprep.subr.mxu0 0.0
  %v3233 = vand.u32 %v2772, 4294901760
  %3234 = vmatpush1.msra.mxu0 %v3233
  %3235 = vmatprep.subr.mxu0 0.0
  %3236 = vmatpush1.msra.mxu0 0.0
  %3237 = vmatprep.subr.mxu0 0.0
  %3238 = vmatpush1.msra.mxu0 0.0
  %3239 = vmatprep.subr.mxu0 0.0
  %3240 = vmatpush1.msra.mxu0 0.0
  %3241 = vmatprep.subr.mxu0 0.0
  %3242 = vmatpush1.msra.mxu0 0.0
  %3243 = vmatprep.subr.mxu0 0.0
  %3244 = vmatpush1.msra.mxu0 0.0
  %3245 = vmatprep.subr.mxu0 0.0
  %3246 = vmatpush1.msra.mxu0 0.0
  %3247 = vmatprep.subr.mxu0 0.0
  %3248 = vmatpush1.msra.mxu0 0.0
  %3249 = vmatprep.subr.mxu0 0.0
  %3250 = vmatpush1.msra.mxu0 0.0
  %3251 = vmatprep.subr.mxu0 0.0
  %3252 = vmatpush1.msra.mxu0 0.0
  %3253 = vmatprep.subr.mxu0 0.0
  %3254 = vmatpush1.msra.mxu0 0.0
  %3255 = vmatprep.subr.mxu0 0.0
  %3256 = vmatpush1.msra.mxu0 0.0
  %3257 = vmatprep.subr.mxu0 0.0
  %3258 = vmatpush1.msra.mxu0 0.0
  %3259 = vmatprep.subr.mxu0 0.0
  %3260 = vmatpush1.msra.mxu0 0.0
  %3261 = vmatprep.subr.mxu0 0.0
  %3262 = vmatpush1.msra.mxu0 0.0
  %3263 = vmatprep.subr.mxu0 0.0
  %3264 = vmatpush1.msra.mxu0 0.0
  %3265 = vmatprep.subr.mxu0 0.0
  %3266 = vmatpush1.msra.mxu0 0.0
  %3267 = vmatprep.subr.mxu0 0.0
  %3268 = vmatpush1.msra.mxu0 0.0
  %3269 = vmatprep.subr.mxu0 0.0
  %3270 = vmatpush1.msra.mxu0 0.0
  %3271 = vmatprep.subr.mxu0 0.0
  %3272 = vmatpush1.msra.mxu0 0.0
  %3273 = vmatprep.subr.mxu0 0.0
  %3274 = vmatpush1.msra.mxu0 0.0
  %3275 = vmatprep.subr.mxu0 0.0
  %3276 = vmatpush1.msra.mxu0 0.0
  %3277 = vmatprep.subr.mxu0 0.0
  %3278 = vmatpush1.msra.mxu0 0.0
  %3279 = vmatprep.subr.mxu0 0.0
  %3280 = vmatpush1.msra.mxu0 0.0
  %3281 = vmatprep.subr.mxu0 0.0
  %3282 = vmatpush1.msra.mxu0 0.0
  %3283 = vmatprep.subr.mxu0 0.0
  %3284 = vmatpush1.msra.mxu0 0.0
  %3285 = vmatprep.subr.mxu0 0.0
  %3286 = vmatpush1.msra.mxu0 0.0
  %3287 = vmatprep.subr.mxu0 0.0
  %3288 = vmatpush1.msra.mxu0 0.0
  %3289 = vmatprep.subr.mxu0 0.0
  %3290 = vmatpush1.msra.mxu0 0.0
  %3291 = vmatprep.subr.mxu0 0.0
  %3292 = vmatpush1.msra.mxu0 0.0
  %3293 = vmatprep.subr.mxu0 0.0
  %3294 = vmatpush1.msra.mxu0 0.0
  %3295 = vmatprep.subr.mxu0 0.0
  %3296 = vmatpush1.msra.mxu0 0.0
  %3297 = vmatprep.mubr.f32.mxu0 0.0
  %v3298 = vand.u32 %v3230, 4294901760
  %v3299 = vsub.f32 %v3230, %v3298
  %v3300 = vand.u32 %v3299, 4294901760
  %v3301 = vsub.f32 %v3299, %v3300
  %v3302 = vand.u32 %v3301, 4294901760
  %3303 = vmatmul.mubr.f32.gmra.mrb[0].mxu0 %v3302
  %v3304 = vpop.f32.mrb[0].mxu0
  %v3305 = vadd.f32 %v3225, %v3304
  %v3306 = vpop.f32.mrb[0].mxu0
  %3307 = vdwg.mxu0
  %3308 = vmatprep.subr.mxu0 0.0
  %v3309 = vand.u32 %v2772, 4294901760
  %v3310 = vsub.f32 %v2772, %v3309
  %v3311 = vand.u32 %v3310, 4294901760
  %v3312 = vsub.f32 %v3310, %v3311
  %v3313 = vand.u32 %v3312, 4294901760
  %3314 = vmatpush1.msra.mxu0 %v3313
  %3315 = vmatprep.subr.mxu0 0.0
  %3316 = vmatpush1.msra.mxu0 0.0
  %3317 = vmatprep.subr.mxu0 0.0
  %3318 = vmatpush1.msra.mxu0 0.0
  %3319 = vmatprep.subr.mxu0 0.0
  %3320 = vmatpush1.msra.mxu0 0.0
  %3321 = vmatprep.subr.mxu0 0.0
  %3322 = vmatpush1.msra.mxu0 0.0
  %3323 = vmatprep.subr.mxu0 0.0
  %3324 = vmatpush1.msra.mxu0 0.0
  %3325 = vmatprep.subr.mxu0 0.0
  %3326 = vmatpush1.msra.mxu0 0.0
  %3327 = vmatprep.subr.mxu0 0.0
  %3328 = vmatpush1.msra.mxu0 0.0
  %3329 = vmatprep.subr.mxu0 0.0
  %3330 = vmatpush1.msra.mxu0 0.0
  %3331 = vmatprep.subr.mxu0 0.0
  %3332 = vmatpush1.msra.mxu0 0.0
  %3333 = vmatprep.subr.mxu0 0.0
  %3334 = vmatpush1.msra.mxu0 0.0
  %3335 = vmatprep.subr.mxu0 0.0
  %3336 = vmatpush1.msra.mxu0 0.0
  %3337 = vmatprep.subr.mxu0 0.0
  %3338 = vmatpush1.msra.mxu0 0.0
  %3339 = vmatprep.subr.mxu0 0.0
  %3340 = vmatpush1.msra.mxu0 0.0
  %3341 = vmatprep.subr.mxu0 0.0
  %3342 = vmatpush1.msra.mxu0 0.0
  %3343 = vmatprep.subr.mxu0 0.0
  %3344 = vmatpush1.msra.mxu0 0.0
  %3345 = vmatprep.subr.mxu0 0.0
  %3346 = vmatpush1.msra.mxu0 0.0
  %3347 = vmatprep.subr.mxu0 0.0
  %3348 = vmatpush1.msra.mxu0 0.0
  %3349 = vmatprep.subr.mxu0 0.0
  %3350 = vmatpush1.msra.mxu0 0.0
  %3351 = vmatprep.subr.mxu0 0.0
  %3352 = vmatpush1.msra.mxu0 0.0
  %3353 = vmatprep.subr.mxu0 0.0
  %3354 = vmatpush1.msra.mxu0 0.0
  %3355 = vmatprep.subr.mxu0 0.0
  %3356 = vmatpush1.msra.mxu0 0.0
  %3357 = vmatprep.subr.mxu0 0.0
  %3358 = vmatpush1.msra.mxu0 0.0
  %3359 = vmatprep.subr.mxu0 0.0
  %3360 = vmatpush1.msra.mxu0 0.0
  %3361 = vmatprep.subr.mxu0 0.0
  %3362 = vmatpush1.msra.mxu0 0.0
  %3363 = vmatprep.subr.mxu0 0.0
  %3364 = vmatpush1.msra.mxu0 0.0
  %3365 = vmatprep.subr.mxu0 0.0
  %3366 = vmatpush1.msra.mxu0 0.0
  %3367 = vmatprep.subr.mxu0 0.0
  %3368 = vmatpush1.msra.mxu0 0.0
  %3369 = vmatprep.subr.mxu0 0.0
  %3370 = vmatpush1.msra.mxu0 0.0
  %3371 = vmatprep.subr.mxu0 0.0
  %3372 = vmatpush1.msra.mxu0 0.0
  %3373 = vmatprep.subr.mxu0 0.0
  %3374 = vmatpush1.msra.mxu0 0.0
  %3375 = vmatprep.subr.mxu0 0.0
  %3376 = vmatpush1.msra.mxu0 0.0
  %3377 = vmatprep.mubr.f32.mxu0 0.0
  %v3378 = vand.u32 %v3230, 4294901760
  %3379 = vmatmul.mubr.f32.gmra.mrb[0].mxu0 %v3378
  %v3380 = vpop.f32.mrb[0].mxu0
  %v3381 = vadd.f32 %v3305, %v3380
  %v3382 = vpop.f32.mrb[0].mxu0
  %3383 = vdwg.mxu0
  %3384 = vmatprep.subr.mxu0 0.0
  %v3385 = vand.u32 %v2772, 4294901760
  %v3386 = vsub.f32 %v2772, %v3385
  %3387 = vmatpush1.msra.mxu0 %v3386
  %3388 = vmatprep.subr.mxu0 0.0
  %3389 = vmatpush1.msra.mxu0 0.0
  %3390 = vmatprep.subr.mxu0 0.0
  %3391 = vmatpush1.msra.mxu0 0.0
  %3392 = vmatprep.subr.mxu0 0.0
  %3393 = vmatpush1.msra.mxu0 0.0
  %3394 = vmatprep.subr.mxu0 0.0
  %3395 = vmatpush1.msra.mxu0 0.0
  %3396 = vmatprep.subr.mxu0 0.0
  %3397 = vmatpush1.msra.mxu0 0.0
  %3398 = vmatprep.subr.mxu0 0.0
  %3399 = vmatpush1.msra.mxu0 0.0
  %3400 = vmatprep.subr.mxu0 0.0
  %3401 = vmatpush1.msra.mxu0 0.0
  %3402 = vmatprep.subr.mxu0 0.0
  %3403 = vmatpush1.msra.mxu0 0.0
  %3404 = vmatprep.subr.mxu0 0.0
  %3405 = vmatpush1.msra.mxu0 0.0
  %3406 = vmatprep.subr.mxu0 0.0
  %3407 = vmatpush1.msra.mxu0 0.0
  %3408 = vmatprep.subr.mxu0 0.0
  %3409 = vmatpush1.msra.mxu0 0.0
  %3410 = vmatprep.subr.mxu0 0.0
  %3411 = vmatpush1.msra.mxu0 0.0
  %3412 = vmatprep.subr.mxu0 0.0
  %3413 = vmatpush1.msra.mxu0 0.0
  %3414 = vmatprep.subr.mxu0 0.0
  %3415 = vmatpush1.msra.mxu0 0.0
  %3416 = vmatprep.subr.mxu0 0.0
  %3417 = vmatpush1.msra.mxu0 0.0
  %3418 = vmatprep.subr.mxu0 0.0
  %3419 = vmatpush1.msra.mxu0 0.0
  %3420 = vmatprep.subr.mxu0 0.0
  %3421 = vmatpush1.msra.mxu0 0.0
  %3422 = vmatprep.subr.mxu0 0.0
  %3423 = vmatpush1.msra.mxu0 0.0
  %3424 = vmatprep.subr.mxu0 0.0
  %3425 = vmatpush1.msra.mxu0 0.0
  %3426 = vmatprep.subr.mxu0 0.0
  %3427 = vmatpush1.msra.mxu0 0.0
  %3428 = vmatprep.subr.mxu0 0.0
  %3429 = vmatpush1.msra.mxu0 0.0
  %3430 = vmatprep.subr.mxu0 0.0
  %3431 = vmatpush1.msra.mxu0 0.0
  %3432 = vmatprep.subr.mxu0 0.0
  %3433 = vmatpush1.msra.mxu0 0.0
  %3434 = vmatprep.subr.mxu0 0.0
  %3435 = vmatpush1.msra.mxu0 0.0
  %3436 = vmatprep.subr.mxu0 0.0
  %3437 = vmatpush1.msra.mxu0 0.0
  %3438 = vmatprep.subr.mxu0 0.0
  %3439 = vmatpush1.msra.mxu0 0.0
  %3440 = vmatprep.subr.mxu0 0.0
  %3441 = vmatpush1.msra.mxu0 0.0
  %3442 = vmatprep.subr.mxu0 0.0
  %3443 = vmatpush1.msra.mxu0 0.0
  %3444 = vmatprep.subr.mxu0 0.0
  %3445 = vmatpush1.msra.mxu0 0.0
  %3446 = vmatprep.subr.mxu0 0.0
  %3447 = vmatpush1.msra.mxu0 0.0
  %3448 = vmatprep.subr.mxu0 0.0
  %3449 = vmatpush1.msra.mxu0 0.0
  %3450 = vmatprep.mubr.f32.mxu0 0.0
  %v3451 = vand.u32 %v3230, 4294901760
  %v3452 = vsub.f32 %v3230, %v3451
  %3453 = vmatmul.mubr.f32.gmra.mrb[0].mxu0 %v3452
  %v3454 = vpop.f32.mrb[0].mxu0
  %v3455 = vadd.f32 %v3381, %v3454
  %v3456 = vpop.f32.mrb[0].mxu0
  %3457 = vdwg.mxu0
  %3458 = vmatprep.subr.mxu0 0.0
  %v3459 = vand.u32 %v2772, 4294901760
  %3460 = vmatpush1.msra.mxu0 %v3459
  %3461 = vmatprep.subr.mxu0 0.0
  %3462 = vmatpush1.msra.mxu0 0.0
  %3463 = vmatprep.subr.mxu0 0.0
  %3464 = vmatpush1.msra.mxu0 0.0
  %3465 = vmatprep.subr.mxu0 0.0
  %3466 = vmatpush1.msra.mxu0 0.0
  %3467 = vmatprep.subr.mxu0 0.0
  %3468 = vmatpush1.msra.mxu0 0.0
  %3469 = vmatprep.subr.mxu0 0.0
  %3470 = vmatpush1.msra.mxu0 0.0
  %3471 = vmatprep.subr.mxu0 0.0
  %3472 = vmatpush1.msra.mxu0 0.0
  %3473 = vmatprep.subr.mxu0 0.0
  %3474 = vmatpush1.msra.mxu0 0.0
  %3475 = vmatprep.subr.mxu0 0.0
  %3476 = vmatpush1.msra.mxu0 0.0
  %3477 = vmatprep.subr.mxu0 0.0
  %3478 = vmatpush1.msra.mxu0 0.0
  %3479 = vmatprep.subr.mxu0 0.0
  %3480 = vmatpush1.msra.mxu0 0.0
  %3481 = vmatprep.subr.mxu0 0.0
  %3482 = vmatpush1.msra.mxu0 0.0
  %3483 = vmatprep.subr.mxu0 0.0
  %3484 = vmatpush1.msra.mxu0 0.0
  %3485 = vmatprep.subr.mxu0 0.0
  %3486 = vmatpush1.msra.mxu0 0.0
  %3487 = vmatprep.subr.mxu0 0.0
  %3488 = vmatpush1.msra.mxu0 0.0
  %3489 = vmatprep.subr.mxu0 0.0
  %3490 = vmatpush1.msra.mxu0 0.0
  %3491 = vmatprep.subr.mxu0 0.0
  %3492 = vmatpush1.msra.mxu0 0.0
  %3493 = vmatprep.subr.mxu0 0.0
  %3494 = vmatpush1.msra.mxu0 0.0
  %3495 = vmatprep.subr.mxu0 0.0
  %3496 = vmatpush1.msra.mxu0 0.0
  %3497 = vmatprep.subr.mxu0 0.0
  %3498 = vmatpush1.msra.mxu0 0.0
  %3499 = vmatprep.subr.mxu0 0.0
  %3500 = vmatpush1.msra.mxu0 0.0
  %3501 = vmatprep.subr.mxu0 0.0
  %3502 = vmatpush1.msra.mxu0 0.0
  %3503 = vmatprep.subr.mxu0 0.0
  %3504 = vmatpush1.msra.mxu0 0.0
  %3505 = vmatprep.subr.mxu0 0.0
  %3506 = vmatpush1.msra.mxu0 0.0
  %3507 = vmatprep.subr.mxu0 0.0
  %3508 = vmatpush1.msra.mxu0 0.0
  %3509 = vmatprep.subr.mxu0 0.0
  %3510 = vmatpush1.msra.mxu0 0.0
  %3511 = vmatprep.subr.mxu0 0.0
  %3512 = vmatpush1.msra.mxu0 0.0
  %3513 = vmatprep.subr.mxu0 0.0
  %3514 = vmatpush1.msra.mxu0 0.0
  %3515 = vmatprep.subr.mxu0 0.0
  %3516 = vmatpush1.msra.mxu0 0.0
  %3517 = vmatprep.subr.mxu0 0.0
  %3518 = vmatpush1.msra.mxu0 0.0
  %3519 = vmatprep.subr.mxu0 0.0
  %3520 = vmatpush1.msra.mxu0 0.0
  %3521 = vmatprep.subr.mxu0 0.0
  %3522 = vmatpush1.msra.mxu0 0.0
  %3523 = vmatprep.mubr.f32.mxu0 0.0
  %v3524 = vand.u32 %v3230, 4294901760
  %v3525 = vsub.f32 %v3230, %v3524
  %v3526 = vand.u32 %v3525, 4294901760
  %3527 = vmatmul.mubr.f32.gmra.mrb[0].mxu0 %v3526
  %v3528 = vpop.f32.mrb[0].mxu0
  %v3529 = vadd.f32 %v3455, %v3528
  %v3530 = vpop.f32.mrb[0].mxu0
  %3531 = vdwg.mxu0
  %3532 = vmatprep.subr.mxu0 0.0
  %v3533 = vand.u32 %v2772, 4294901760
  %v3534 = vsub.f32 %v2772, %v3533
  %v3535 = vand.u32 %v3534, 4294901760
  %3536 = vmatpush1.msra.mxu0 %v3535
  %3537 = vmatprep.subr.mxu0 0.0
  %3538 = vmatpush1.msra.mxu0 0.0
  %3539 = vmatprep.subr.mxu0 0.0
  %3540 = vmatpush1.msra.mxu0 0.0
  %3541 = vmatprep.subr.mxu0 0.0
  %3542 = vmatpush1.msra.mxu0 0.0
  %3543 = vmatprep.subr.mxu0 0.0
  %3544 = vmatpush1.msra.mxu0 0.0
  %3545 = vmatprep.subr.mxu0 0.0
  %3546 = vmatpush1.msra.mxu0 0.0
  %3547 = vmatprep.subr.mxu0 0.0
  %3548 = vmatpush1.msra.mxu0 0.0
  %3549 = vmatprep.subr.mxu0 0.0
  %3550 = vmatpush1.msra.mxu0 0.0
  %3551 = vmatprep.subr.mxu0 0.0
  %3552 = vmatpush1.msra.mxu0 0.0
  %3553 = vmatprep.subr.mxu0 0.0
  %3554 = vmatpush1.msra.mxu0 0.0
  %3555 = vmatprep.subr.mxu0 0.0
  %3556 = vmatpush1.msra.mxu0 0.0
  %3557 = vmatprep.subr.mxu0 0.0
  %3558 = vmatpush1.msra.mxu0 0.0
  %3559 = vmatprep.subr.mxu0 0.0
  %3560 = vmatpush1.msra.mxu0 0.0
  %3561 = vmatprep.subr.mxu0 0.0
  %3562 = vmatpush1.msra.mxu0 0.0
  %3563 = vmatprep.subr.mxu0 0.0
  %3564 = vmatpush1.msra.mxu0 0.0
  %3565 = vmatprep.subr.mxu0 0.0
  %3566 = vmatpush1.msra.mxu0 0.0
  %3567 = vmatprep.subr.mxu0 0.0
  %3568 = vmatpush1.msra.mxu0 0.0
  %3569 = vmatprep.subr.mxu0 0.0
  %3570 = vmatpush1.msra.mxu0 0.0
  %3571 = vmatprep.subr.mxu0 0.0
  %3572 = vmatpush1.msra.mxu0 0.0
  %3573 = vmatprep.subr.mxu0 0.0
  %3574 = vmatpush1.msra.mxu0 0.0
  %3575 = vmatprep.subr.mxu0 0.0
  %3576 = vmatpush1.msra.mxu0 0.0
  %3577 = vmatprep.subr.mxu0 0.0
  %3578 = vmatpush1.msra.mxu0 0.0
  %3579 = vmatprep.subr.mxu0 0.0
  %3580 = vmatpush1.msra.mxu0 0.0
  %3581 = vmatprep.subr.mxu0 0.0
  %3582 = vmatpush1.msra.mxu0 0.0
  %3583 = vmatprep.subr.mxu0 0.0
  %3584 = vmatpush1.msra.mxu0 0.0
  %3585 = vmatprep.subr.mxu0 0.0
  %3586 = vmatpush1.msra.mxu0 0.0
  %3587 = vmatprep.subr.mxu0 0.0
  %3588 = vmatpush1.msra.mxu0 0.0
  %3589 = vmatprep.subr.mxu0 0.0
  %3590 = vmatpush1.msra.mxu0 0.0
  %3591 = vmatprep.subr.mxu0 0.0
  %3592 = vmatpush1.msra.mxu0 0.0
  %3593 = vmatprep.subr.mxu0 0.0
  %3594 = vmatpush1.msra.mxu0 0.0
  %3595 = vmatprep.subr.mxu0 0.0
  %3596 = vmatpush1.msra.mxu0 0.0
  %3597 = vmatprep.subr.mxu0 0.0
  %3598 = vmatpush1.msra.mxu0 0.0
  %3599 = vmatprep.mubr.f32.mxu0 0.0
  %v3600 = vand.u32 %v3230, 4294901760
  %3601 = vmatmul.mubr.f32.gmra.mrb[0].mxu0 %v3600
  %v3602 = vpop.f32.mrb[0].mxu0
  %v3603 = vadd.f32 %v3529, %v3602
  %v3604 = vpop.f32.mrb[0].mxu0
  %3605 = vdwg.mxu0
  %3606 = vmatprep.subr.mxu0 0.0
  %v3607 = vand.u32 %v2772, 4294901760
  %3608 = vmatpush1.msra.mxu0 %v3607
  %3609 = vmatprep.subr.mxu0 0.0
  %3610 = vmatpush1.msra.mxu0 0.0
  %3611 = vmatprep.subr.mxu0 0.0
  %3612 = vmatpush1.msra.mxu0 0.0
  %3613 = vmatprep.subr.mxu0 0.0
  %3614 = vmatpush1.msra.mxu0 0.0
  %3615 = vmatprep.subr.mxu0 0.0
  %3616 = vmatpush1.msra.mxu0 0.0
  %3617 = vmatprep.subr.mxu0 0.0
  %3618 = vmatpush1.msra.mxu0 0.0
  %3619 = vmatprep.subr.mxu0 0.0
  %3620 = vmatpush1.msra.mxu0 0.0
  %3621 = vmatprep.subr.mxu0 0.0
  %3622 = vmatpush1.msra.mxu0 0.0
  %3623 = vmatprep.subr.mxu0 0.0
  %3624 = vmatpush1.msra.mxu0 0.0
  %3625 = vmatprep.subr.mxu0 0.0
  %3626 = vmatpush1.msra.mxu0 0.0
  %3627 = vmatprep.subr.mxu0 0.0
  %3628 = vmatpush1.msra.mxu0 0.0
  %3629 = vmatprep.subr.mxu0 0.0
  %3630 = vmatpush1.msra.mxu0 0.0
  %3631 = vmatprep.subr.mxu0 0.0
  %3632 = vmatpush1.msra.mxu0 0.0
  %3633 = vmatprep.subr.mxu0 0.0
  %3634 = vmatpush1.msra.mxu0 0.0
  %3635 = vmatprep.subr.mxu0 0.0
  %3636 = vmatpush1.msra.mxu0 0.0
  %3637 = vmatprep.subr.mxu0 0.0
  %3638 = vmatpush1.msra.mxu0 0.0
  %3639 = vmatprep.subr.mxu0 0.0
  %3640 = vmatpush1.msra.mxu0 0.0
  %3641 = vmatprep.subr.mxu0 0.0
  %3642 = vmatpush1.msra.mxu0 0.0
  %3643 = vmatprep.subr.mxu0 0.0
  %3644 = vmatpush1.msra.mxu0 0.0
  %3645 = vmatprep.subr.mxu0 0.0
  %3646 = vmatpush1.msra.mxu0 0.0
  %3647 = vmatprep.subr.mxu0 0.0
  %3648 = vmatpush1.msra.mxu0 0.0
  %3649 = vmatprep.subr.mxu0 0.0
  %3650 = vmatpush1.msra.mxu0 0.0
  %3651 = vmatprep.subr.mxu0 0.0
  %3652 = vmatpush1.msra.mxu0 0.0
  %3653 = vmatprep.subr.mxu0 0.0
  %3654 = vmatpush1.msra.mxu0 0.0
  %3655 = vmatprep.subr.mxu0 0.0
  %3656 = vmatpush1.msra.mxu0 0.0
  %3657 = vmatprep.subr.mxu0 0.0
  %3658 = vmatpush1.msra.mxu0 0.0
  %3659 = vmatprep.subr.mxu0 0.0
  %3660 = vmatpush1.msra.mxu0 0.0
  %3661 = vmatprep.subr.mxu0 0.0
  %3662 = vmatpush1.msra.mxu0 0.0
  %3663 = vmatprep.subr.mxu0 0.0
  %3664 = vmatpush1.msra.mxu0 0.0
  %3665 = vmatprep.subr.mxu0 0.0
  %3666 = vmatpush1.msra.mxu0 0.0
  %3667 = vmatprep.subr.mxu0 0.0
  %3668 = vmatpush1.msra.mxu0 0.0
  %3669 = vmatprep.subr.mxu0 0.0
  %3670 = vmatpush1.msra.mxu0 0.0
  %3671 = vmatprep.mubr.f32.mxu0 0.0
  %v3672 = vand.u32 %v3230, 4294901760
  %3673 = vmatmul.mubr.f32.gmra.mrb[0].mxu0 %v3672
  %v3674 = vpop.f32.mrb[0].mxu0
  %v3675 = vadd.f32 %v3603, %v3674
  %v3676 = vpop.f32.mrb[0].mxu0
  %3677 = vdwg.mxu0
  %v3678 = vld [vmem:[%s3 + $0x48] sm:$0x1]
  %v3679 = vlaneseq
  %v3680 = vshrl.u32 %v3679, 7
  %v3681 = vsub.s32 0, %v3680
  %v3682 = vrot.slane %v3678, %v3681
  %v3683 = vadd.f32 %v3675, %v3682
  %3684 = vrot.lane.b32.xlu0 %v2771, 8
  %v3685 = vpop.permute.xlu0 %3684
  %v3687 = vsel %vm3228, %v973, %v3685
  %v3688 = vadd.f32 %v3687, %v3683
  %vm3689 = vcmask 97280
  %v3690 = vsel %vm3689, %v3688, 0.0
  %3691 = vadd.xlane.f32.xlu0 %v3690
  %v3692 = vpop.xlane.xlu0 %3691
  %v3693 = vrcp.pop 12.0
  %v3694 = vmul.f32 %v3692, %v3693
  %v3695 = vsub.f32 %v3688, %v3694
  %v3696 = vmul.f32 %v3695, %v3695
  %v3697 = vsel %vm3689, %v3696, 0.0
  %3698 = vadd.xlane.f32.xlu0 %v3697
  %v3699 = vpop.xlane.xlu0 %3698
  %v3700 = vmul.f32 %v3699, %v3693
  %v3701 = vadd.f32 %v3700, 1e-05
  %v3702 = vrsqrt.pop %v3701
  %v3703 = vmul.f32 %v3695, %v3702
  %v3704 = vld [vmem:[%s3 + $0x50] sm:$0x1]
  %v3705 = vlaneseq
  %v3706 = vshrl.u32 %v3705, 7
  %v3707 = vsub.s32 0, %v3706
  %v3708 = vrot.slane %v3704, %v3707
  %v3709 = vmul.f32 %v3703, %v3708
  %v3710 = vld [vmem:[%s3 + $0x58] sm:$0x1]
  %v3711 = vlaneseq
  %v3712 = vshrl.u32 %v3711, 7
  %v3713 = vsub.s32 0, %v3712
  %v3714 = vrot.slane %v3710, %v3713
  %v3715 = vadd.f32 %v3709, %v3714
  %v3716 = vsel %vm3689, %v3715, 0.0
  %v3717 = vrot.slane %v3716, 4
  %v3718 = vadd.f32 %v3716, %v3717
  %v3719 = vrot.slane %v3718, 2
  %v3720 = vadd.f32 %v3718, %v3719
  %v3721 = vrot.slane %v3720, 1
  %v3722 = vadd.f32 %v3720, %v3721
  %v3723 = vrcp.pop 8.0
  %v3724 = vmul.f32 %v3722, %v3723
  %v3725 = vsub.f32 %v3715, %v3724
  %v3726 = vmul.f32 %v3725, %v3725
  %v3727 = vsel %vm3689, %v3726, 0.0
  %v3728 = vrot.slane %v3727, 4
  %v3729 = vadd.f32 %v3727, %v3728
  %v3730 = vrot.slane %v3729, 2
  %v3731 = vadd.f32 %v3729, %v3730
  %v3732 = vrot.slane %v3731, 1
  %v3733 = vadd.f32 %v3731, %v3732
  %v3734 = vmul.f32 %v3733, %v3723
  %v3735 = vadd.f32 %v3734, 1e-05
  %v3736 = vrsqrt.pop %v3735
  %v3737 = vmul.f32 %v3725, %v3736
  %v3738 = vld [vmem:[%s3 + $0x60] sm:$0xff]
  %v3739 = vld [vmem:[%s3 + $0x68] sm:$0xf]
  %v3740 = vld [vmem:[%s3 + $0x70] sm:$0x1]
  %v3741 = vlaneseq
  %v3742 = vshrl.u32 %v3741, 7
  %v3743 = vsub.s32 0, %v3742
  %v3744 = vrot.slane %v3740, %v3743
  %v3746 = vsel %vm3689, %v3737, 0
  %v3749 = vsel %vm2778, %v3739, 0
  %3751 = vmatprep.subr.mxu0 0.0
  %v3752 = vand.u32 %v3738, 4294901760
  %3753 = vmatpush1.msra.mxu0 %v3752
  %3754 = vmatprep.subr.mxu0 0.0
  %v3755 = vand.u32 %v3749, 4294901760
  %3756 = vmatpush1.msra.mxu0 %v3755
  %3757 = vmatprep.subr.mxu0 0.0
  %3758 = vmatpush1.msra.mxu0 0.0
  %3759 = vmatprep.subr.mxu0 0.0
  %3760 = vmatpush1.msra.mxu0 0.0
  %3761 = vmatprep.subr.mxu0 0.0
  %3762 = vmatpush1.msra.mxu0 0.0
  %3763 = vmatprep.subr.mxu0 0.0
  %3764 = vmatpush1.msra.mxu0 0.0
  %3765 = vmatprep.subr.mxu0 0.0
  %3766 = vmatpush1.msra.mxu0 0.0
  %3767 = vmatprep.subr.mxu0 0.0
  %3768 = vmatpush1.msra.mxu0 0.0
  %3769 = vmatprep.subr.mxu0 0.0
  %3770 = vmatpush1.msra.mxu0 0.0
  %3771 = vmatprep.subr.mxu0 0.0
  %3772 = vmatpush1.msra.mxu0 0.0
  %3773 = vmatprep.subr.mxu0 0.0
  %3774 = vmatpush1.msra.mxu0 0.0
  %3775 = vmatprep.subr.mxu0 0.0
  %3776 = vmatpush1.msra.mxu0 0.0
  %3777 = vmatprep.subr.mxu0 0.0
  %3778 = vmatpush1.msra.mxu0 0.0
  %3779 = vmatprep.subr.mxu0 0.0
  %3780 = vmatpush1.msra.mxu0 0.0
  %3781 = vmatprep.subr.mxu0 0.0
  %3782 = vmatpush1.msra.mxu0 0.0
  %3783 = vmatprep.subr.mxu0 0.0
  %3784 = vmatpush1.msra.mxu0 0.0
  %3785 = vmatprep.subr.mxu0 0.0
  %3786 = vmatpush1.msra.mxu0 0.0
  %3787 = vmatprep.subr.mxu0 0.0
  %3788 = vmatpush1.msra.mxu0 0.0
  %3789 = vmatprep.subr.mxu0 0.0
  %3790 = vmatpush1.msra.mxu0 0.0
  %3791 = vmatprep.subr.mxu0 0.0
  %3792 = vmatpush1.msra.mxu0 0.0
  %3793 = vmatprep.subr.mxu0 0.0
  %3794 = vmatpush1.msra.mxu0 0.0
  %3795 = vmatprep.subr.mxu0 0.0
  %3796 = vmatpush1.msra.mxu0 0.0
  %3797 = vmatprep.subr.mxu0 0.0
  %3798 = vmatpush1.msra.mxu0 0.0
  %3799 = vmatprep.subr.mxu0 0.0
  %3800 = vmatpush1.msra.mxu0 0.0
  %3801 = vmatprep.subr.mxu0 0.0
  %3802 = vmatpush1.msra.mxu0 0.0
  %3803 = vmatprep.subr.mxu0 0.0
  %3804 = vmatpush1.msra.mxu0 0.0
  %3805 = vmatprep.subr.mxu0 0.0
  %3806 = vmatpush1.msra.mxu0 0.0
  %3807 = vmatprep.subr.mxu0 0.0
  %3808 = vmatpush1.msra.mxu0 0.0
  %3809 = vmatprep.subr.mxu0 0.0
  %3810 = vmatpush1.msra.mxu0 0.0
  %3811 = vmatprep.subr.mxu0 0.0
  %3812 = vmatpush1.msra.mxu0 0.0
  %3813 = vmatprep.subr.mxu0 0.0
  %3814 = vmatpush1.msra.mxu0 0.0
  %3815 = vmatprep.subr.mxu0 0.0
  %3816 = vmatpush1.msra.mxu0 0.0
  %3817 = vmatprep.mubr.f32.mxu0 0.0
  %v3818 = vand.u32 %v3746, 4294901760
  %v3819 = vsub.f32 %v3746, %v3818
  %v3820 = vand.u32 %v3819, 4294901760
  %v3821 = vsub.f32 %v3819, %v3820
  %v3822 = vand.u32 %v3821, 4294901760
  %3823 = vmatmul.mubr.f32.gmra.mrb[0].mxu0 %v3822
  %v3824 = vpop.f32.mrb[0].mxu0
  %v3825 = vadd.f32 %v3744, %v3824
  %v3826 = vpop.f32.mrb[0].mxu0
  %3827 = vdwg.mxu0
  %3828 = vmatprep.subr.mxu0 0.0
  %v3829 = vand.u32 %v3738, 4294901760
  %v3830 = vsub.f32 %v3738, %v3829
  %v3831 = vand.u32 %v3830, 4294901760
  %v3832 = vsub.f32 %v3830, %v3831
  %v3833 = vand.u32 %v3832, 4294901760
  %3834 = vmatpush1.msra.mxu0 %v3833
  %3835 = vmatprep.subr.mxu0 0.0
  %v3836 = vand.u32 %v3749, 4294901760
  %v3837 = vsub.f32 %v3749, %v3836
  %v3838 = vand.u32 %v3837, 4294901760
  %v3839 = vsub.f32 %v3837, %v3838
  %v3840 = vand.u32 %v3839, 4294901760
  %3841 = vmatpush1.msra.mxu0 %v3840
  %3842 = vmatprep.subr.mxu0 0.0
  %3843 = vmatpush1.msra.mxu0 0.0
  %3844 = vmatprep.subr.mxu0 0.0
  %3845 = vmatpush1.msra.mxu0 0.0
  %3846 = vmatprep.subr.mxu0 0.0
  %3847 = vmatpush1.msra.mxu0 0.0
  %3848 = vmatprep.subr.mxu0 0.0
  %3849 = vmatpush1.msra.mxu0 0.0
  %3850 = vmatprep.subr.mxu0 0.0
  %3851 = vmatpush1.msra.mxu0 0.0
  %3852 = vmatprep.subr.mxu0 0.0
  %3853 = vmatpush1.msra.mxu0 0.0
  %3854 = vmatprep.subr.mxu0 0.0
  %3855 = vmatpush1.msra.mxu0 0.0
  %3856 = vmatprep.subr.mxu0 0.0
  %3857 = vmatpush1.msra.mxu0 0.0
  %3858 = vmatprep.subr.mxu0 0.0
  %3859 = vmatpush1.msra.mxu0 0.0
  %3860 = vmatprep.subr.mxu0 0.0
  %3861 = vmatpush1.msra.mxu0 0.0
  %3862 = vmatprep.subr.mxu0 0.0
  %3863 = vmatpush1.msra.mxu0 0.0
  %3864 = vmatprep.subr.mxu0 0.0
  %3865 = vmatpush1.msra.mxu0 0.0
  %3866 = vmatprep.subr.mxu0 0.0
  %3867 = vmatpush1.msra.mxu0 0.0
  %3868 = vmatprep.subr.mxu0 0.0
  %3869 = vmatpush1.msra.mxu0 0.0
  %3870 = vmatprep.subr.mxu0 0.0
  %3871 = vmatpush1.msra.mxu0 0.0
  %3872 = vmatprep.subr.mxu0 0.0
  %3873 = vmatpush1.msra.mxu0 0.0
  %3874 = vmatprep.subr.mxu0 0.0
  %3875 = vmatpush1.msra.mxu0 0.0
  %3876 = vmatprep.subr.mxu0 0.0
  %3877 = vmatpush1.msra.mxu0 0.0
  %3878 = vmatprep.subr.mxu0 0.0
  %3879 = vmatpush1.msra.mxu0 0.0
  %3880 = vmatprep.subr.mxu0 0.0
  %3881 = vmatpush1.msra.mxu0 0.0
  %3882 = vmatprep.subr.mxu0 0.0
  %3883 = vmatpush1.msra.mxu0 0.0
  %3884 = vmatprep.subr.mxu0 0.0
  %3885 = vmatpush1.msra.mxu0 0.0
  %3886 = vmatprep.subr.mxu0 0.0
  %3887 = vmatpush1.msra.mxu0 0.0
  %3888 = vmatprep.subr.mxu0 0.0
  %3889 = vmatpush1.msra.mxu0 0.0
  %3890 = vmatprep.subr.mxu0 0.0
  %3891 = vmatpush1.msra.mxu0 0.0
  %3892 = vmatprep.subr.mxu0 0.0
  %3893 = vmatpush1.msra.mxu0 0.0
  %3894 = vmatprep.subr.mxu0 0.0
  %3895 = vmatpush1.msra.mxu0 0.0
  %3896 = vmatprep.subr.mxu0 0.0
  %3897 = vmatpush1.msra.mxu0 0.0
  %3898 = vmatprep.subr.mxu0 0.0
  %3899 = vmatpush1.msra.mxu0 0.0
  %3900 = vmatprep.subr.mxu0 0.0
  %3901 = vmatpush1.msra.mxu0 0.0
  %3902 = vmatprep.mubr.f32.mxu0 0.0
  %v3903 = vand.u32 %v3746, 4294901760
  %3904 = vmatmul.mubr.f32.gmra.mrb[0].mxu0 %v3903
  %v3905 = vpop.f32.mrb[0].mxu0
  %v3906 = vadd.f32 %v3825, %v3905
  %v3907 = vpop.f32.mrb[0].mxu0
  %3908 = vdwg.mxu0
  %3909 = vmatprep.subr.mxu0 0.0
  %v3910 = vand.u32 %v3738, 4294901760
  %v3911 = vsub.f32 %v3738, %v3910
  %3912 = vmatpush1.msra.mxu0 %v3911
  %3913 = vmatprep.subr.mxu0 0.0
  %v3914 = vand.u32 %v3749, 4294901760
  %v3915 = vsub.f32 %v3749, %v3914
  %3916 = vmatpush1.msra.mxu0 %v3915
  %3917 = vmatprep.subr.mxu0 0.0
  %3918 = vmatpush1.msra.mxu0 0.0
  %3919 = vmatprep.subr.mxu0 0.0
  %3920 = vmatpush1.msra.mxu0 0.0
  %3921 = vmatprep.subr.mxu0 0.0
  %3922 = vmatpush1.msra.mxu0 0.0
  %3923 = vmatprep.subr.mxu0 0.0
  %3924 = vmatpush1.msra.mxu0 0.0
  %3925 = vmatprep.subr.mxu0 0.0
  %3926 = vmatpush1.msra.mxu0 0.0
  %3927 = vmatprep.subr.mxu0 0.0
  %3928 = vmatpush1.msra.mxu0 0.0
  %3929 = vmatprep.subr.mxu0 0.0
  %3930 = vmatpush1.msra.mxu0 0.0
  %3931 = vmatprep.subr.mxu0 0.0
  %3932 = vmatpush1.msra.mxu0 0.0
  %3933 = vmatprep.subr.mxu0 0.0
  %3934 = vmatpush1.msra.mxu0 0.0
  %3935 = vmatprep.subr.mxu0 0.0
  %3936 = vmatpush1.msra.mxu0 0.0
  %3937 = vmatprep.subr.mxu0 0.0
  %3938 = vmatpush1.msra.mxu0 0.0
  %3939 = vmatprep.subr.mxu0 0.0
  %3940 = vmatpush1.msra.mxu0 0.0
  %3941 = vmatprep.subr.mxu0 0.0
  %3942 = vmatpush1.msra.mxu0 0.0
  %3943 = vmatprep.subr.mxu0 0.0
  %3944 = vmatpush1.msra.mxu0 0.0
  %3945 = vmatprep.subr.mxu0 0.0
  %3946 = vmatpush1.msra.mxu0 0.0
  %3947 = vmatprep.subr.mxu0 0.0
  %3948 = vmatpush1.msra.mxu0 0.0
  %3949 = vmatprep.subr.mxu0 0.0
  %3950 = vmatpush1.msra.mxu0 0.0
  %3951 = vmatprep.subr.mxu0 0.0
  %3952 = vmatpush1.msra.mxu0 0.0
  %3953 = vmatprep.subr.mxu0 0.0
  %3954 = vmatpush1.msra.mxu0 0.0
  %3955 = vmatprep.subr.mxu0 0.0
  %3956 = vmatpush1.msra.mxu0 0.0
  %3957 = vmatprep.subr.mxu0 0.0
  %3958 = vmatpush1.msra.mxu0 0.0
  %3959 = vmatprep.subr.mxu0 0.0
  %3960 = vmatpush1.msra.mxu0 0.0
  %3961 = vmatprep.subr.mxu0 0.0
  %3962 = vmatpush1.msra.mxu0 0.0
  %3963 = vmatprep.subr.mxu0 0.0
  %3964 = vmatpush1.msra.mxu0 0.0
  %3965 = vmatprep.subr.mxu0 0.0
  %3966 = vmatpush1.msra.mxu0 0.0
  %3967 = vmatprep.subr.mxu0 0.0
  %3968 = vmatpush1.msra.mxu0 0.0
  %3969 = vmatprep.subr.mxu0 0.0
  %3970 = vmatpush1.msra.mxu0 0.0
  %3971 = vmatprep.subr.mxu0 0.0
  %3972 = vmatpush1.msra.mxu0 0.0
  %3973 = vmatprep.subr.mxu0 0.0
  %3974 = vmatpush1.msra.mxu0 0.0
  %3975 = vmatprep.subr.mxu0 0.0
  %3976 = vmatpush1.msra.mxu0 0.0
  %3977 = vmatprep.mubr.f32.mxu0 0.0
  %v3978 = vand.u32 %v3746, 4294901760
  %v3979 = vsub.f32 %v3746, %v3978
  %3980 = vmatmul.mubr.f32.gmra.mrb[0].mxu0 %v3979
  %v3981 = vpop.f32.mrb[0].mxu0
  %v3982 = vadd.f32 %v3906, %v3981
  %v3983 = vpop.f32.mrb[0].mxu0
  %3984 = vdwg.mxu0
  %3985 = vmatprep.subr.mxu0 0.0
  %v3986 = vand.u32 %v3738, 4294901760
  %3987 = vmatpush1.msra.mxu0 %v3986
  %3988 = vmatprep.subr.mxu0 0.0
  %v3989 = vand.u32 %v3749, 4294901760
  %3990 = vmatpush1.msra.mxu0 %v3989
  %3991 = vmatprep.subr.mxu0 0.0
  %3992 = vmatpush1.msra.mxu0 0.0
  %3993 = vmatprep.subr.mxu0 0.0
  %3994 = vmatpush1.msra.mxu0 0.0
  %3995 = vmatprep.subr.mxu0 0.0
  %3996 = vmatpush1.msra.mxu0 0.0
  %3997 = vmatprep.subr.mxu0 0.0
  %3998 = vmatpush1.msra.mxu0 0.0
  %3999 = vmatprep.subr.mxu0 0.0
  %4000 = vmatpush1.msra.mxu0 0.0
  %4001 = vmatprep.subr.mxu0 0.0
  %4002 = vmatpush1.msra.mxu0 0.0
  %4003 = vmatprep.subr.mxu0 0.0
  %4004 = vmatpush1.msra.mxu0 0.0
  %4005 = vmatprep.subr.mxu0 0.0
  %4006 = vmatpush1.msra.mxu0 0.0
  %4007 = vmatprep.subr.mxu0 0.0
  %4008 = vmatpush1.msra.mxu0 0.0
  %4009 = vmatprep.subr.mxu0 0.0
  %4010 = vmatpush1.msra.mxu0 0.0
  %4011 = vmatprep.subr.mxu0 0.0
  %4012 = vmatpush1.msra.mxu0 0.0
  %4013 = vmatprep.subr.mxu0 0.0
  %4014 = vmatpush1.msra.mxu0 0.0
  %4015 = vmatprep.subr.mxu0 0.0
  %4016 = vmatpush1.msra.mxu0 0.0
  %4017 = vmatprep.subr.mxu0 0.0
  %4018 = vmatpush1.msra.mxu0 0.0
  %4019 = vmatprep.subr.mxu0 0.0
  %4020 = vmatpush1.msra.mxu0 0.0
  %4021 = vmatprep.subr.mxu0 0.0
  %4022 = vmatpush1.msra.mxu0 0.0
  %4023 = vmatprep.subr.mxu0 0.0
  %4024 = vmatpush1.msra.mxu0 0.0
  %4025 = vmatprep.subr.mxu0 0.0
  %4026 = vmatpush1.msra.mxu0 0.0
  %4027 = vmatprep.subr.mxu0 0.0
  %4028 = vmatpush1.msra.mxu0 0.0
  %4029 = vmatprep.subr.mxu0 0.0
  %4030 = vmatpush1.msra.mxu0 0.0
  %4031 = vmatprep.subr.mxu0 0.0
  %4032 = vmatpush1.msra.mxu0 0.0
  %4033 = vmatprep.subr.mxu0 0.0
  %4034 = vmatpush1.msra.mxu0 0.0
  %4035 = vmatprep.subr.mxu0 0.0
  %4036 = vmatpush1.msra.mxu0 0.0
  %4037 = vmatprep.subr.mxu0 0.0
  %4038 = vmatpush1.msra.mxu0 0.0
  %4039 = vmatprep.subr.mxu0 0.0
  %4040 = vmatpush1.msra.mxu0 0.0
  %4041 = vmatprep.subr.mxu0 0.0
  %4042 = vmatpush1.msra.mxu0 0.0
  %4043 = vmatprep.subr.mxu0 0.0
  %4044 = vmatpush1.msra.mxu0 0.0
  %4045 = vmatprep.subr.mxu0 0.0
  %4046 = vmatpush1.msra.mxu0 0.0
  %4047 = vmatprep.subr.mxu0 0.0
  %4048 = vmatpush1.msra.mxu0 0.0
  %4049 = vmatprep.subr.mxu0 0.0
  %4050 = vmatpush1.msra.mxu0 0.0
  %4051 = vmatprep.mubr.f32.mxu0 0.0
  %v4052 = vand.u32 %v3746, 4294901760
  %v4053 = vsub.f32 %v3746, %v4052
  %v4054 = vand.u32 %v4053, 4294901760
  %4055 = vmatmul.mubr.f32.gmra.mrb[0].mxu0 %v4054
  %v4056 = vpop.f32.mrb[0].mxu0
  %v4057 = vadd.f32 %v3982, %v4056
  %v4058 = vpop.f32.mrb[0].mxu0
  %4059 = vdwg.mxu0
  %4060 = vmatprep.subr.mxu0 0.0
  %v4061 = vand.u32 %v3738, 4294901760
  %v4062 = vsub.f32 %v3738, %v4061
  %v4063 = vand.u32 %v4062, 4294901760
  %4064 = vmatpush1.msra.mxu0 %v4063
  %4065 = vmatprep.subr.mxu0 0.0
  %v4066 = vand.u32 %v3749, 4294901760
  %v4067 = vsub.f32 %v3749, %v4066
  %v4068 = vand.u32 %v4067, 4294901760
  %4069 = vmatpush1.msra.mxu0 %v4068
  %4070 = vmatprep.subr.mxu0 0.0
  %4071 = vmatpush1.msra.mxu0 0.0
  %4072 = vmatprep.subr.mxu0 0.0
  %4073 = vmatpush1.msra.mxu0 0.0
  %4074 = vmatprep.subr.mxu0 0.0
  %4075 = vmatpush1.msra.mxu0 0.0
  %4076 = vmatprep.subr.mxu0 0.0
  %4077 = vmatpush1.msra.mxu0 0.0
  %4078 = vmatprep.subr.mxu0 0.0
  %4079 = vmatpush1.msra.mxu0 0.0
  %4080 = vmatprep.subr.mxu0 0.0
  %4081 = vmatpush1.msra.mxu0 0.0
  %4082 = vmatprep.subr.mxu0 0.0
  %4083 = vmatpush1.msra.mxu0 0.0
  %4084 = vmatprep.subr.mxu0 0.0
  %4085 = vmatpush1.msra.mxu0 0.0
  %4086 = vmatprep.subr.mxu0 0.0
  %4087 = vmatpush1.msra.mxu0 0.0
  %4088 = vmatprep.subr.mxu0 0.0
  %4089 = vmatpush1.msra.mxu0 0.0
  %4090 = vmatprep.subr.mxu0 0.0
  %4091 = vmatpush1.msra.mxu0 0.0
  %4092 = vmatprep.subr.mxu0 0.0
  %4093 = vmatpush1.msra.mxu0 0.0
  %4094 = vmatprep.subr.mxu0 0.0
  %4095 = vmatpush1.msra.mxu0 0.0
  %4096 = vmatprep.subr.mxu0 0.0
  %4097 = vmatpush1.msra.mxu0 0.0
  %4098 = vmatprep.subr.mxu0 0.0
  %4099 = vmatpush1.msra.mxu0 0.0
  %4100 = vmatprep.subr.mxu0 0.0
  %4101 = vmatpush1.msra.mxu0 0.0
  %4102 = vmatprep.subr.mxu0 0.0
  %4103 = vmatpush1.msra.mxu0 0.0
  %4104 = vmatprep.subr.mxu0 0.0
  %4105 = vmatpush1.msra.mxu0 0.0
  %4106 = vmatprep.subr.mxu0 0.0
  %4107 = vmatpush1.msra.mxu0 0.0
  %4108 = vmatprep.subr.mxu0 0.0
  %4109 = vmatpush1.msra.mxu0 0.0
  %4110 = vmatprep.subr.mxu0 0.0
  %4111 = vmatpush1.msra.mxu0 0.0
  %4112 = vmatprep.subr.mxu0 0.0
  %4113 = vmatpush1.msra.mxu0 0.0
  %4114 = vmatprep.subr.mxu0 0.0
  %4115 = vmatpush1.msra.mxu0 0.0
  %4116 = vmatprep.subr.mxu0 0.0
  %4117 = vmatpush1.msra.mxu0 0.0
  %4118 = vmatprep.subr.mxu0 0.0
  %4119 = vmatpush1.msra.mxu0 0.0
  %4120 = vmatprep.subr.mxu0 0.0
  %4121 = vmatpush1.msra.mxu0 0.0
  %4122 = vmatprep.subr.mxu0 0.0
  %4123 = vmatpush1.msra.mxu0 0.0
  %4124 = vmatprep.subr.mxu0 0.0
  %4125 = vmatpush1.msra.mxu0 0.0
  %4126 = vmatprep.subr.mxu0 0.0
  %4127 = vmatpush1.msra.mxu0 0.0
  %4128 = vmatprep.subr.mxu0 0.0
  %4129 = vmatpush1.msra.mxu0 0.0
  %4130 = vmatprep.mubr.f32.mxu0 0.0
  %v4131 = vand.u32 %v3746, 4294901760
  %4132 = vmatmul.mubr.f32.gmra.mrb[0].mxu0 %v4131
  %v4133 = vpop.f32.mrb[0].mxu0
  %v4134 = vadd.f32 %v4057, %v4133
  %v4135 = vpop.f32.mrb[0].mxu0
  %4136 = vdwg.mxu0
  %4137 = vmatprep.subr.mxu0 0.0
  %v4138 = vand.u32 %v3738, 4294901760
  %4139 = vmatpush1.msra.mxu0 %v4138
  %4140 = vmatprep.subr.mxu0 0.0
  %v4141 = vand.u32 %v3749, 4294901760
  %4142 = vmatpush1.msra.mxu0 %v4141
  %4143 = vmatprep.subr.mxu0 0.0
  %4144 = vmatpush1.msra.mxu0 0.0
  %4145 = vmatprep.subr.mxu0 0.0
  %4146 = vmatpush1.msra.mxu0 0.0
  %4147 = vmatprep.subr.mxu0 0.0
  %4148 = vmatpush1.msra.mxu0 0.0
  %4149 = vmatprep.subr.mxu0 0.0
  %4150 = vmatpush1.msra.mxu0 0.0
  %4151 = vmatprep.subr.mxu0 0.0
  %4152 = vmatpush1.msra.mxu0 0.0
  %4153 = vmatprep.subr.mxu0 0.0
  %4154 = vmatpush1.msra.mxu0 0.0
  %4155 = vmatprep.subr.mxu0 0.0
  %4156 = vmatpush1.msra.mxu0 0.0
  %4157 = vmatprep.subr.mxu0 0.0
  %4158 = vmatpush1.msra.mxu0 0.0
  %4159 = vmatprep.subr.mxu0 0.0
  %4160 = vmatpush1.msra.mxu0 0.0
  %4161 = vmatprep.subr.mxu0 0.0
  %4162 = vmatpush1.msra.mxu0 0.0
  %4163 = vmatprep.subr.mxu0 0.0
  %4164 = vmatpush1.msra.mxu0 0.0
  %4165 = vmatprep.subr.mxu0 0.0
  %4166 = vmatpush1.msra.mxu0 0.0
  %4167 = vmatprep.subr.mxu0 0.0
  %4168 = vmatpush1.msra.mxu0 0.0
  %4169 = vmatprep.subr.mxu0 0.0
  %4170 = vmatpush1.msra.mxu0 0.0
  %4171 = vmatprep.subr.mxu0 0.0
  %4172 = vmatpush1.msra.mxu0 0.0
  %4173 = vmatprep.subr.mxu0 0.0
  %4174 = vmatpush1.msra.mxu0 0.0
  %4175 = vmatprep.subr.mxu0 0.0
  %4176 = vmatpush1.msra.mxu0 0.0
  %4177 = vmatprep.subr.mxu0 0.0
  %4178 = vmatpush1.msra.mxu0 0.0
  %4179 = vmatprep.subr.mxu0 0.0
  %4180 = vmatpush1.msra.mxu0 0.0
  %4181 = vmatprep.subr.mxu0 0.0
  %4182 = vmatpush1.msra.mxu0 0.0
  %4183 = vmatprep.subr.mxu0 0.0
  %4184 = vmatpush1.msra.mxu0 0.0
  %4185 = vmatprep.subr.mxu0 0.0
  %4186 = vmatpush1.msra.mxu0 0.0
  %4187 = vmatprep.subr.mxu0 0.0
  %4188 = vmatpush1.msra.mxu0 0.0
  %4189 = vmatprep.subr.mxu0 0.0
  %4190 = vmatpush1.msra.mxu0 0.0
  %4191 = vmatprep.subr.mxu0 0.0
  %4192 = vmatpush1.msra.mxu0 0.0
  %4193 = vmatprep.subr.mxu0 0.0
  %4194 = vmatpush1.msra.mxu0 0.0
  %4195 = vmatprep.subr.mxu0 0.0
  %4196 = vmatpush1.msra.mxu0 0.0
  %4197 = vmatprep.subr.mxu0 0.0
  %4198 = vmatpush1.msra.mxu0 0.0
  %4199 = vmatprep.subr.mxu0 0.0
  %4200 = vmatpush1.msra.mxu0 0.0
  %4201 = vmatprep.subr.mxu0 0.0
  %4202 = vmatpush1.msra.mxu0 0.0
  %4203 = vmatprep.mubr.f32.mxu0 0.0
  %v4204 = vand.u32 %v3746, 4294901760
  %4205 = vmatmul.mubr.f32.gmra.mrb[0].mxu0 %v4204
  %v4206 = vpop.f32.mrb[0].mxu0
  %v4207 = vadd.f32 %v4134, %v4206
  %v4208 = vpop.f32.mrb[0].mxu0
  %4209 = vdwg.mxu0
  %v4210 = vmax.f32 %v4207, 0.0
  %v4211 = vld [vmem:[%s3 + $0x78] sm:$0xff]
  %v4212 = vld [vmem:[%s3 + $0x80] sm:$0x1]
  %v4213 = vlaneseq
  %v4214 = vshrl.u32 %v4213, 7
  %v4215 = vsub.s32 0, %v4214
  %v4216 = vrot.slane %v4212, %v4215
  %v4218 = vsel %vm3228, %v4210, 0
  %4220 = vmatprep.subr.mxu0 0.0
  %v4221 = vand.u32 %v4211, 4294901760
  %4222 = vmatpush1.msra.mxu0 %v4221
  %4223 = vmatprep.subr.mxu0 0.0
  %4224 = vmatpush1.msra.mxu0 0.0
  %4225 = vmatprep.subr.mxu0 0.0
  %4226 = vmatpush1.msra.mxu0 0.0
  %4227 = vmatprep.subr.mxu0 0.0
  %4228 = vmatpush1.msra.mxu0 0.0
  %4229 = vmatprep.subr.mxu0 0.0
  %4230 = vmatpush1.msra.mxu0 0.0
  %4231 = vmatprep.subr.mxu0 0.0
  %4232 = vmatpush1.msra.mxu0 0.0
  %4233 = vmatprep.subr.mxu0 0.0
  %4234 = vmatpush1.msra.mxu0 0.0
  %4235 = vmatprep.subr.mxu0 0.0
  %4236 = vmatpush1.msra.mxu0 0.0
  %4237 = vmatprep.subr.mxu0 0.0
  %4238 = vmatpush1.msra.mxu0 0.0
  %4239 = vmatprep.subr.mxu0 0.0
  %4240 = vmatpush1.msra.mxu0 0.0
  %4241 = vmatprep.subr.mxu0 0.0
  %4242 = vmatpush1.msra.mxu0 0.0
  %4243 = vmatprep.subr.mxu0 0.0
  %4244 = vmatpush1.msra.mxu0 0.0
  %4245 = vmatprep.subr.mxu0 0.0
  %4246 = vmatpush1.msra.mxu0 0.0
  %4247 = vmatprep.subr.mxu0 0.0
  %4248 = vmatpush1.msra.mxu0 0.0
  %4249 = vmatprep.subr.mxu0 0.0
  %4250 = vmatpush1.msra.mxu0 0.0
  %4251 = vmatprep.subr.mxu0 0.0
  %4252 = vmatpush1.msra.mxu0 0.0
  %4253 = vmatprep.subr.mxu0 0.0
  %4254 = vmatpush1.msra.mxu0 0.0
  %4255 = vmatprep.subr.mxu0 0.0
  %4256 = vmatpush1.msra.mxu0 0.0
  %4257 = vmatprep.subr.mxu0 0.0
  %4258 = vmatpush1.msra.mxu0 0.0
  %4259 = vmatprep.subr.mxu0 0.0
  %4260 = vmatpush1.msra.mxu0 0.0
  %4261 = vmatprep.subr.mxu0 0.0
  %4262 = vmatpush1.msra.mxu0 0.0
  %4263 = vmatprep.subr.mxu0 0.0
  %4264 = vmatpush1.msra.mxu0 0.0
  %4265 = vmatprep.subr.mxu0 0.0
  %4266 = vmatpush1.msra.mxu0 0.0
  %4267 = vmatprep.subr.mxu0 0.0
  %4268 = vmatpush1.msra.mxu0 0.0
  %4269 = vmatprep.subr.mxu0 0.0
  %4270 = vmatpush1.msra.mxu0 0.0
  %4271 = vmatprep.subr.mxu0 0.0
  %4272 = vmatpush1.msra.mxu0 0.0
  %4273 = vmatprep.subr.mxu0 0.0
  %4274 = vmatpush1.msra.mxu0 0.0
  %4275 = vmatprep.subr.mxu0 0.0
  %4276 = vmatpush1.msra.mxu0 0.0
  %4277 = vmatprep.subr.mxu0 0.0
  %4278 = vmatpush1.msra.mxu0 0.0
  %4279 = vmatprep.subr.mxu0 0.0
  %4280 = vmatpush1.msra.mxu0 0.0
  %4281 = vmatprep.subr.mxu0 0.0
  %4282 = vmatpush1.msra.mxu0 0.0
  %4283 = vmatprep.subr.mxu0 0.0
  %4284 = vmatpush1.msra.mxu0 0.0
  %4285 = vmatprep.mubr.f32.mxu0 0.0
  %v4286 = vand.u32 %v4218, 4294901760
  %v4287 = vsub.f32 %v4218, %v4286
  %v4288 = vand.u32 %v4287, 4294901760
  %v4289 = vsub.f32 %v4287, %v4288
  %v4290 = vand.u32 %v4289, 4294901760
  %4291 = vmatmul.mubr.f32.gmra.mrb[0].mxu0 %v4290
  %v4292 = vpop.f32.mrb[0].mxu0
  %v4293 = vadd.f32 %v4216, %v4292
  %v4294 = vpop.f32.mrb[0].mxu0
  %4295 = vdwg.mxu0
  %4296 = vmatprep.subr.mxu0 0.0
  %v4297 = vand.u32 %v4211, 4294901760
  %v4298 = vsub.f32 %v4211, %v4297
  %v4299 = vand.u32 %v4298, 4294901760
  %v4300 = vsub.f32 %v4298, %v4299
  %v4301 = vand.u32 %v4300, 4294901760
  %4302 = vmatpush1.msra.mxu0 %v4301
  %4303 = vmatprep.subr.mxu0 0.0
  %4304 = vmatpush1.msra.mxu0 0.0
  %4305 = vmatprep.subr.mxu0 0.0
  %4306 = vmatpush1.msra.mxu0 0.0
  %4307 = vmatprep.subr.mxu0 0.0
  %4308 = vmatpush1.msra.mxu0 0.0
  %4309 = vmatprep.subr.mxu0 0.0
  %4310 = vmatpush1.msra.mxu0 0.0
  %4311 = vmatprep.subr.mxu0 0.0
  %4312 = vmatpush1.msra.mxu0 0.0
  %4313 = vmatprep.subr.mxu0 0.0
  %4314 = vmatpush1.msra.mxu0 0.0
  %4315 = vmatprep.subr.mxu0 0.0
  %4316 = vmatpush1.msra.mxu0 0.0
  %4317 = vmatprep.subr.mxu0 0.0
  %4318 = vmatpush1.msra.mxu0 0.0
  %4319 = vmatprep.subr.mxu0 0.0
  %4320 = vmatpush1.msra.mxu0 0.0
  %4321 = vmatprep.subr.mxu0 0.0
  %4322 = vmatpush1.msra.mxu0 0.0
  %4323 = vmatprep.subr.mxu0 0.0
  %4324 = vmatpush1.msra.mxu0 0.0
  %4325 = vmatprep.subr.mxu0 0.0
  %4326 = vmatpush1.msra.mxu0 0.0
  %4327 = vmatprep.subr.mxu0 0.0
  %4328 = vmatpush1.msra.mxu0 0.0
  %4329 = vmatprep.subr.mxu0 0.0
  %4330 = vmatpush1.msra.mxu0 0.0
  %4331 = vmatprep.subr.mxu0 0.0
  %4332 = vmatpush1.msra.mxu0 0.0
  %4333 = vmatprep.subr.mxu0 0.0
  %4334 = vmatpush1.msra.mxu0 0.0
  %4335 = vmatprep.subr.mxu0 0.0
  %4336 = vmatpush1.msra.mxu0 0.0
  %4337 = vmatprep.subr.mxu0 0.0
  %4338 = vmatpush1.msra.mxu0 0.0
  %4339 = vmatprep.subr.mxu0 0.0
  %4340 = vmatpush1.msra.mxu0 0.0
  %4341 = vmatprep.subr.mxu0 0.0
  %4342 = vmatpush1.msra.mxu0 0.0
  %4343 = vmatprep.subr.mxu0 0.0
  %4344 = vmatpush1.msra.mxu0 0.0
  %4345 = vmatprep.subr.mxu0 0.0
  %4346 = vmatpush1.msra.mxu0 0.0
  %4347 = vmatprep.subr.mxu0 0.0
  %4348 = vmatpush1.msra.mxu0 0.0
  %4349 = vmatprep.subr.mxu0 0.0
  %4350 = vmatpush1.msra.mxu0 0.0
  %4351 = vmatprep.subr.mxu0 0.0
  %4352 = vmatpush1.msra.mxu0 0.0
  %4353 = vmatprep.subr.mxu0 0.0
  %4354 = vmatpush1.msra.mxu0 0.0
  %4355 = vmatprep.subr.mxu0 0.0
  %4356 = vmatpush1.msra.mxu0 0.0
  %4357 = vmatprep.subr.mxu0 0.0
  %4358 = vmatpush1.msra.mxu0 0.0
  %4359 = vmatprep.subr.mxu0 0.0
  %4360 = vmatpush1.msra.mxu0 0.0
  %4361 = vmatprep.subr.mxu0 0.0
  %4362 = vmatpush1.msra.mxu0 0.0
  %4363 = vmatprep.subr.mxu0 0.0
  %4364 = vmatpush1.msra.mxu0 0.0
  %4365 = vmatprep.mubr.f32.mxu0 0.0
  %v4366 = vand.u32 %v4218, 4294901760
  %4367 = vmatmul.mubr.f32.gmra.mrb[0].mxu0 %v4366
  %v4368 = vpop.f32.mrb[0].mxu0
  %v4369 = vadd.f32 %v4293, %v4368
  %v4370 = vpop.f32.mrb[0].mxu0
  %4371 = vdwg.mxu0
  %4372 = vmatprep.subr.mxu0 0.0
  %v4373 = vand.u32 %v4211, 4294901760
  %v4374 = vsub.f32 %v4211, %v4373
  %4375 = vmatpush1.msra.mxu0 %v4374
  %4376 = vmatprep.subr.mxu0 0.0
  %4377 = vmatpush1.msra.mxu0 0.0
  %4378 = vmatprep.subr.mxu0 0.0
  %4379 = vmatpush1.msra.mxu0 0.0
  %4380 = vmatprep.subr.mxu0 0.0
  %4381 = vmatpush1.msra.mxu0 0.0
  %4382 = vmatprep.subr.mxu0 0.0
  %4383 = vmatpush1.msra.mxu0 0.0
  %4384 = vmatprep.subr.mxu0 0.0
  %4385 = vmatpush1.msra.mxu0 0.0
  %4386 = vmatprep.subr.mxu0 0.0
  %4387 = vmatpush1.msra.mxu0 0.0
  %4388 = vmatprep.subr.mxu0 0.0
  %4389 = vmatpush1.msra.mxu0 0.0
  %4390 = vmatprep.subr.mxu0 0.0
  %4391 = vmatpush1.msra.mxu0 0.0
  %4392 = vmatprep.subr.mxu0 0.0
  %4393 = vmatpush1.msra.mxu0 0.0
  %4394 = vmatprep.subr.mxu0 0.0
  %4395 = vmatpush1.msra.mxu0 0.0
  %4396 = vmatprep.subr.mxu0 0.0
  %4397 = vmatpush1.msra.mxu0 0.0
  %4398 = vmatprep.subr.mxu0 0.0
  %4399 = vmatpush1.msra.mxu0 0.0
  %4400 = vmatprep.subr.mxu0 0.0
  %4401 = vmatpush1.msra.mxu0 0.0
  %4402 = vmatprep.subr.mxu0 0.0
  %4403 = vmatpush1.msra.mxu0 0.0
  %4404 = vmatprep.subr.mxu0 0.0
  %4405 = vmatpush1.msra.mxu0 0.0
  %4406 = vmatprep.subr.mxu0 0.0
  %4407 = vmatpush1.msra.mxu0 0.0
  %4408 = vmatprep.subr.mxu0 0.0
  %4409 = vmatpush1.msra.mxu0 0.0
  %4410 = vmatprep.subr.mxu0 0.0
  %4411 = vmatpush1.msra.mxu0 0.0
  %4412 = vmatprep.subr.mxu0 0.0
  %4413 = vmatpush1.msra.mxu0 0.0
  %4414 = vmatprep.subr.mxu0 0.0
  %4415 = vmatpush1.msra.mxu0 0.0
  %4416 = vmatprep.subr.mxu0 0.0
  %4417 = vmatpush1.msra.mxu0 0.0
  %4418 = vmatprep.subr.mxu0 0.0
  %4419 = vmatpush1.msra.mxu0 0.0
  %4420 = vmatprep.subr.mxu0 0.0
  %4421 = vmatpush1.msra.mxu0 0.0
  %4422 = vmatprep.subr.mxu0 0.0
  %4423 = vmatpush1.msra.mxu0 0.0
  %4424 = vmatprep.subr.mxu0 0.0
  %4425 = vmatpush1.msra.mxu0 0.0
  %4426 = vmatprep.subr.mxu0 0.0
  %4427 = vmatpush1.msra.mxu0 0.0
  %4428 = vmatprep.subr.mxu0 0.0
  %4429 = vmatpush1.msra.mxu0 0.0
  %4430 = vmatprep.subr.mxu0 0.0
  %4431 = vmatpush1.msra.mxu0 0.0
  %4432 = vmatprep.subr.mxu0 0.0
  %4433 = vmatpush1.msra.mxu0 0.0
  %4434 = vmatprep.subr.mxu0 0.0
  %4435 = vmatpush1.msra.mxu0 0.0
  %4436 = vmatprep.subr.mxu0 0.0
  %4437 = vmatpush1.msra.mxu0 0.0
  %4438 = vmatprep.mubr.f32.mxu0 0.0
  %v4439 = vand.u32 %v4218, 4294901760
  %v4440 = vsub.f32 %v4218, %v4439
  %4441 = vmatmul.mubr.f32.gmra.mrb[0].mxu0 %v4440
  %v4442 = vpop.f32.mrb[0].mxu0
  %v4443 = vadd.f32 %v4369, %v4442
  %v4444 = vpop.f32.mrb[0].mxu0
  %4445 = vdwg.mxu0
  %4446 = vmatprep.subr.mxu0 0.0
  %v4447 = vand.u32 %v4211, 4294901760
  %4448 = vmatpush1.msra.mxu0 %v4447
  %4449 = vmatprep.subr.mxu0 0.0
  %4450 = vmatpush1.msra.mxu0 0.0
  %4451 = vmatprep.subr.mxu0 0.0
  %4452 = vmatpush1.msra.mxu0 0.0
  %4453 = vmatprep.subr.mxu0 0.0
  %4454 = vmatpush1.msra.mxu0 0.0
  %4455 = vmatprep.subr.mxu0 0.0
  %4456 = vmatpush1.msra.mxu0 0.0
  %4457 = vmatprep.subr.mxu0 0.0
  %4458 = vmatpush1.msra.mxu0 0.0
  %4459 = vmatprep.subr.mxu0 0.0
  %4460 = vmatpush1.msra.mxu0 0.0
  %4461 = vmatprep.subr.mxu0 0.0
  %4462 = vmatpush1.msra.mxu0 0.0
  %4463 = vmatprep.subr.mxu0 0.0
  %4464 = vmatpush1.msra.mxu0 0.0
  %4465 = vmatprep.subr.mxu0 0.0
  %4466 = vmatpush1.msra.mxu0 0.0
  %4467 = vmatprep.subr.mxu0 0.0
  %4468 = vmatpush1.msra.mxu0 0.0
  %4469 = vmatprep.subr.mxu0 0.0
  %4470 = vmatpush1.msra.mxu0 0.0
  %4471 = vmatprep.subr.mxu0 0.0
  %4472 = vmatpush1.msra.mxu0 0.0
  %4473 = vmatprep.subr.mxu0 0.0
  %4474 = vmatpush1.msra.mxu0 0.0
  %4475 = vmatprep.subr.mxu0 0.0
  %4476 = vmatpush1.msra.mxu0 0.0
  %4477 = vmatprep.subr.mxu0 0.0
  %4478 = vmatpush1.msra.mxu0 0.0
  %4479 = vmatprep.subr.mxu0 0.0
  %4480 = vmatpush1.msra.mxu0 0.0
  %4481 = vmatprep.subr.mxu0 0.0
  %4482 = vmatpush1.msra.mxu0 0.0
  %4483 = vmatprep.subr.mxu0 0.0
  %4484 = vmatpush1.msra.mxu0 0.0
  %4485 = vmatprep.subr.mxu0 0.0
  %4486 = vmatpush1.msra.mxu0 0.0
  %4487 = vmatprep.subr.mxu0 0.0
  %4488 = vmatpush1.msra.mxu0 0.0
  %4489 = vmatprep.subr.mxu0 0.0
  %4490 = vmatpush1.msra.mxu0 0.0
  %4491 = vmatprep.subr.mxu0 0.0
  %4492 = vmatpush1.msra.mxu0 0.0
  %4493 = vmatprep.subr.mxu0 0.0
  %4494 = vmatpush1.msra.mxu0 0.0
  %4495 = vmatprep.subr.mxu0 0.0
  %4496 = vmatpush1.msra.mxu0 0.0
  %4497 = vmatprep.subr.mxu0 0.0
  %4498 = vmatpush1.msra.mxu0 0.0
  %4499 = vmatprep.subr.mxu0 0.0
  %4500 = vmatpush1.msra.mxu0 0.0
  %4501 = vmatprep.subr.mxu0 0.0
  %4502 = vmatpush1.msra.mxu0 0.0
  %4503 = vmatprep.subr.mxu0 0.0
  %4504 = vmatpush1.msra.mxu0 0.0
  %4505 = vmatprep.subr.mxu0 0.0
  %4506 = vmatpush1.msra.mxu0 0.0
  %4507 = vmatprep.subr.mxu0 0.0
  %4508 = vmatpush1.msra.mxu0 0.0
  %4509 = vmatprep.subr.mxu0 0.0
  %4510 = vmatpush1.msra.mxu0 0.0
  %4511 = vmatprep.mubr.f32.mxu0 0.0
  %v4512 = vand.u32 %v4218, 4294901760
  %v4513 = vsub.f32 %v4218, %v4512
  %v4514 = vand.u32 %v4513, 4294901760
  %4515 = vmatmul.mubr.f32.gmra.mrb[0].mxu0 %v4514
  %v4516 = vpop.f32.mrb[0].mxu0
  %v4517 = vadd.f32 %v4443, %v4516
  %v4518 = vpop.f32.mrb[0].mxu0
  %4519 = vdwg.mxu0
  %4520 = vmatprep.subr.mxu0 0.0
  %v4521 = vand.u32 %v4211, 4294901760
  %v4522 = vsub.f32 %v4211, %v4521
  %v4523 = vand.u32 %v4522, 4294901760
  %4524 = vmatpush1.msra.mxu0 %v4523
  %4525 = vmatprep.subr.mxu0 0.0
  %4526 = vmatpush1.msra.mxu0 0.0
  %4527 = vmatprep.subr.mxu0 0.0
  %4528 = vmatpush1.msra.mxu0 0.0
  %4529 = vmatprep.subr.mxu0 0.0
  %4530 = vmatpush1.msra.mxu0 0.0
  %4531 = vmatprep.subr.mxu0 0.0
  %4532 = vmatpush1.msra.mxu0 0.0
  %4533 = vmatprep.subr.mxu0 0.0
  %4534 = vmatpush1.msra.mxu0 0.0
  %4535 = vmatprep.subr.mxu0 0.0
  %4536 = vmatpush1.msra.mxu0 0.0
  %4537 = vmatprep.subr.mxu0 0.0
  %4538 = vmatpush1.msra.mxu0 0.0
  %4539 = vmatprep.subr.mxu0 0.0
  %4540 = vmatpush1.msra.mxu0 0.0
  %4541 = vmatprep.subr.mxu0 0.0
  %4542 = vmatpush1.msra.mxu0 0.0
  %4543 = vmatprep.subr.mxu0 0.0
  %4544 = vmatpush1.msra.mxu0 0.0
  %4545 = vmatprep.subr.mxu0 0.0
  %4546 = vmatpush1.msra.mxu0 0.0
  %4547 = vmatprep.subr.mxu0 0.0
  %4548 = vmatpush1.msra.mxu0 0.0
  %4549 = vmatprep.subr.mxu0 0.0
  %4550 = vmatpush1.msra.mxu0 0.0
  %4551 = vmatprep.subr.mxu0 0.0
  %4552 = vmatpush1.msra.mxu0 0.0
  %4553 = vmatprep.subr.mxu0 0.0
  %4554 = vmatpush1.msra.mxu0 0.0
  %4555 = vmatprep.subr.mxu0 0.0
  %4556 = vmatpush1.msra.mxu0 0.0
  %4557 = vmatprep.subr.mxu0 0.0
  %4558 = vmatpush1.msra.mxu0 0.0
  %4559 = vmatprep.subr.mxu0 0.0
  %4560 = vmatpush1.msra.mxu0 0.0
  %4561 = vmatprep.subr.mxu0 0.0
  %4562 = vmatpush1.msra.mxu0 0.0
  %4563 = vmatprep.subr.mxu0 0.0
  %4564 = vmatpush1.msra.mxu0 0.0
  %4565 = vmatprep.subr.mxu0 0.0
  %4566 = vmatpush1.msra.mxu0 0.0
  %4567 = vmatprep.subr.mxu0 0.0
  %4568 = vmatpush1.msra.mxu0 0.0
  %4569 = vmatprep.subr.mxu0 0.0
  %4570 = vmatpush1.msra.mxu0 0.0
  %4571 = vmatprep.subr.mxu0 0.0
  %4572 = vmatpush1.msra.mxu0 0.0
  %4573 = vmatprep.subr.mxu0 0.0
  %4574 = vmatpush1.msra.mxu0 0.0
  %4575 = vmatprep.subr.mxu0 0.0
  %4576 = vmatpush1.msra.mxu0 0.0
  %4577 = vmatprep.subr.mxu0 0.0
  %4578 = vmatpush1.msra.mxu0 0.0
  %4579 = vmatprep.subr.mxu0 0.0
  %4580 = vmatpush1.msra.mxu0 0.0
  %4581 = vmatprep.subr.mxu0 0.0
  %4582 = vmatpush1.msra.mxu0 0.0
  %4583 = vmatprep.subr.mxu0 0.0
  %4584 = vmatpush1.msra.mxu0 0.0
  %4585 = vmatprep.subr.mxu0 0.0
  %4586 = vmatpush1.msra.mxu0 0.0
  %4587 = vmatprep.mubr.f32.mxu0 0.0
  %v4588 = vand.u32 %v4218, 4294901760
  %4589 = vmatmul.mubr.f32.gmra.mrb[0].mxu0 %v4588
  %v4590 = vpop.f32.mrb[0].mxu0
  %v4591 = vadd.f32 %v4517, %v4590
  %v4592 = vpop.f32.mrb[0].mxu0
  %4593 = vdwg.mxu0
  %4594 = vmatprep.subr.mxu0 0.0
  %v4595 = vand.u32 %v4211, 4294901760
  %4596 = vmatpush1.msra.mxu0 %v4595
  %4597 = vmatprep.subr.mxu0 0.0
  %4598 = vmatpush1.msra.mxu0 0.0
  %4599 = vmatprep.subr.mxu0 0.0
  %4600 = vmatpush1.msra.mxu0 0.0
  %4601 = vmatprep.subr.mxu0 0.0
  %4602 = vmatpush1.msra.mxu0 0.0
  %4603 = vmatprep.subr.mxu0 0.0
  %4604 = vmatpush1.msra.mxu0 0.0
  %4605 = vmatprep.subr.mxu0 0.0
  %4606 = vmatpush1.msra.mxu0 0.0
  %4607 = vmatprep.subr.mxu0 0.0
  %4608 = vmatpush1.msra.mxu0 0.0
  %4609 = vmatprep.subr.mxu0 0.0
  %4610 = vmatpush1.msra.mxu0 0.0
  %4611 = vmatprep.subr.mxu0 0.0
  %4612 = vmatpush1.msra.mxu0 0.0
  %4613 = vmatprep.subr.mxu0 0.0
  %4614 = vmatpush1.msra.mxu0 0.0
  %4615 = vmatprep.subr.mxu0 0.0
  %4616 = vmatpush1.msra.mxu0 0.0
  %4617 = vmatprep.subr.mxu0 0.0
  %4618 = vmatpush1.msra.mxu0 0.0
  %4619 = vmatprep.subr.mxu0 0.0
  %4620 = vmatpush1.msra.mxu0 0.0
  %4621 = vmatprep.subr.mxu0 0.0
  %4622 = vmatpush1.msra.mxu0 0.0
  %4623 = vmatprep.subr.mxu0 0.0
  %4624 = vmatpush1.msra.mxu0 0.0
  %4625 = vmatprep.subr.mxu0 0.0
  %4626 = vmatpush1.msra.mxu0 0.0
  %4627 = vmatprep.subr.mxu0 0.0
  %4628 = vmatpush1.msra.mxu0 0.0
  %4629 = vmatprep.subr.mxu0 0.0
  %4630 = vmatpush1.msra.mxu0 0.0
  %4631 = vmatprep.subr.mxu0 0.0
  %4632 = vmatpush1.msra.mxu0 0.0
  %4633 = vmatprep.subr.mxu0 0.0
  %4634 = vmatpush1.msra.mxu0 0.0
  %4635 = vmatprep.subr.mxu0 0.0
  %4636 = vmatpush1.msra.mxu0 0.0
  %4637 = vmatprep.subr.mxu0 0.0
  %4638 = vmatpush1.msra.mxu0 0.0
  %4639 = vmatprep.subr.mxu0 0.0
  %4640 = vmatpush1.msra.mxu0 0.0
  %4641 = vmatprep.subr.mxu0 0.0
  %4642 = vmatpush1.msra.mxu0 0.0
  %4643 = vmatprep.subr.mxu0 0.0
  %4644 = vmatpush1.msra.mxu0 0.0
  %4645 = vmatprep.subr.mxu0 0.0
  %4646 = vmatpush1.msra.mxu0 0.0
  %4647 = vmatprep.subr.mxu0 0.0
  %4648 = vmatpush1.msra.mxu0 0.0
  %4649 = vmatprep.subr.mxu0 0.0
  %4650 = vmatpush1.msra.mxu0 0.0
  %4651 = vmatprep.subr.mxu0 0.0
  %4652 = vmatpush1.msra.mxu0 0.0
  %4653 = vmatprep.subr.mxu0 0.0
  %4654 = vmatpush1.msra.mxu0 0.0
  %4655 = vmatprep.subr.mxu0 0.0
  %4656 = vmatpush1.msra.mxu0 0.0
  %4657 = vmatprep.subr.mxu0 0.0
  %4658 = vmatpush1.msra.mxu0 0.0
  %4659 = vmatprep.mubr.f32.mxu0 0.0
  %v4660 = vand.u32 %v4218, 4294901760
  %4661 = vmatmul.mubr.f32.gmra.mrb[0].mxu0 %v4660
  %v4662 = vpop.f32.mrb[0].mxu0
  %v4663 = vadd.f32 %v4591, %v4662
  %v4664 = vpop.f32.mrb[0].mxu0
  %4665 = vdwg.mxu0
  %v4666 = vmax.f32 %v4663, 0.0
  %v4667 = vld [vmem:[%s3 + $0x88] sm:$0x1]
  %v4668 = vlaneseq
  %v4669 = vshrl.u32 %v4668, 7
  %v4670 = vsub.s32 0, %v4669
  %v4671 = vrot.slane %v4667, %v4670
  %v4672 = vmul.f32 %v4666, %v4671
  %v4673 = vsel %vm2774, %v4672, 0.0
  %4674 = vadd.xlane.f32.xlu0 %v4673
  %v4675 = vpop.xlane.xlu0 %4674
  %v4676 = vld [vmem:[%s3 + $0x90] sm:$0x1]
  %v4677 = vlaneseq
  %v4678 = vshrl.u32 %v4677, 7
  %v4679 = vsub.s32 0, %v4678
  %v4680 = vrot.slane %v4676, %v4679
  %v4681 = vadd.f32 %v4675, %v4680
  %vm4682 = vcmask 7168
  %4683 = vst.msk [vmem:[%s4] sm:$0xff] %vm4682, %v4681
  // Predicated region
  $region18: #{fwd.1} parent=0 // pred_check
    _
  $region19: #{fwd.1} parent=0 // pred_check_branch
    %4685 = sbr.rel (0) target = $region21
  $region20: #{fwd.1} parent=0 // pred_region
    _
  $region21: #{fwd.1} parent=0 // pred_fallthru
    _
  // Predicated region
  $region22: #{fwd.1} parent=0 // pred_check
    _
  $region23: #{fwd.1} parent=0 // pred_check_branch
    %4687 = sbr.rel (0) target = $region25
  $region24: #{fwd.1} parent=0 // pred_region
    _
  $region25: #{fwd.1} parent=0 // pred_fallthru
    _

</llo_original>
